<compile_context>
chip_gen: v7x
topology: tpu7x:2x2x1
jax: 0.10.0
libtpu: 0.0.40
codegen_flags: <defaults>
</compile_context>

<pallas_src>
import jax
import jax.numpy as jnp
from jax.experimental import pallas as pl
from jax.experimental.pallas import tpu as pltpu


def _scale_matmul_kernel(x_ref, s_ref, w_ref, o_ref):
    # x_ref: (Cin, HW)        f32   one sample's feature map, channels x spatial
    # s_ref: (Cin, 1)         f32   this sample's per-channel SE scale
    # w_ref: (Cout_blk, Cin)  bf16  pre-reshaped conv weight (possibly a Cout slice)
    # o_ref: (Cout_blk, HW)   f32
    xs = (x_ref[...] * s_ref[...]).astype(jnp.bfloat16)  # f32 VPU multiply, bf16 feed to MXU
    o_ref[...] = jnp.dot(
        w_ref[...], xs, preferred_element_type=jnp.float32
    ).astype(o_ref.dtype)


def prepare_conv_weight(weight_oihw):
    """One-time parameter prep: (Cout, Cin, 1, 1) f32 -> (Cout, Cin) bf16 (no transpose needed)."""
    Cout, Cin = weight_oihw.shape[0], weight_oihw.shape[1]
    return weight_oihw.reshape(Cout, Cin).astype(jnp.bfloat16)


def _default_cout_split(cout):
    """Split the weight DMA across the 2 TensorCores on v7x only; 1 elsewhere."""
    try:
        kind = jax.devices()[0].device_kind.lower()
    except Exception:
        return 1
    if "v7" in kind and cout % 2 == 0 and (cout // 2) % 8 == 0:
        return 2
    return 1


def scaled_pointwise_conv_nchw(x_nchw, scale_nc11, w_mat, cout_split=None):
    """Fused SE-scale + 1x1 conv, NCHW-native (no layout transposes).

    x_nchw:     (N, Cin, H, W) f32
    scale_nc11: (N, Cin, 1, 1) f32  per-sample, per-channel scale
    w_mat:      (Cout, Cin) bf16 from prepare_conv_weight
    returns     (N, Cout, H, W) f32
    """
    N, Cin, H, W = x_nchw.shape
    Cout = w_mat.shape[0]
    HW = H * W

    if cout_split is None:
        cout_split = _default_cout_split(Cout)
    assert Cout % cout_split == 0
    cout_blk = Cout // cout_split

    # Contiguous-dim reshapes: pure metadata, no data-movement kernels.
    x3 = x_nchw.reshape(N, Cin, HW)
    s3 = scale_nc11.reshape(N, Cin, 1).astype(x_nchw.dtype)

    out3 = pl.pallas_call(
        _scale_matmul_kernel,
        out_shape=jax.ShapeDtypeStruct((N, Cout, HW), x_nchw.dtype),
        grid=(N, cout_split),
        in_specs=[
            pl.BlockSpec((None, Cin, HW), lambda n, s: (n, 0, 0)),
            pl.BlockSpec((None, Cin, 1), lambda n, s: (n, 0, 0)),
            pl.BlockSpec((cout_blk, Cin), lambda n, s: (s, 0)),
        ],
        out_specs=pl.BlockSpec((None, cout_blk, HW), lambda n, s: (n, s, 0)),
        compiler_params=pltpu.CompilerParams(
            dimension_semantics=("parallel", "parallel"),
        ),
    )(x3, s3, w_mat)

    return out3.reshape(N, Cout, H, W)


def _reference_bf16(x_nchw, scale_nc11, w_mat):
    """Same precision as the kernel (bf16 operands, f32 accumulation)."""
    N, Cin, H, W = x_nchw.shape
    Cout = w_mat.shape[0]
    scaled = (x_nchw * scale_nc11).reshape(N, Cin, H * W).astype(jnp.bfloat16)
    out = jnp.einsum("oc,nck->nok", w_mat, scaled, preferred_element_type=jnp.float32)
    return out.reshape(N, Cout, H, W).astype(x_nchw.dtype)


def _reference_f32(x_nchw, scale_nc11, w_oihw):
    """Full-f32 semantics of the PyTorch module."""
    Cout, Cin = w_oihw.shape[0], w_oihw.shape[1]
    scaled = x_nchw * scale_nc11
    return jnp.einsum("nchw,oc->nohw", scaled, w_oihw.reshape(Cout, Cin))


if __name__ == "__main__":
    key = jax.random.PRNGKey(0)
    k1, k2, k3, k4, k5 = jax.random.split(key, 5)

    N, Cin, H, W, Cout = 1, 1824, 7, 7, 304

    x612 = jax.random.normal(k1, (N, Cin, H, W), dtype=jnp.float32)   # feature map
    x617 = jax.random.normal(k2, (N, Cin, 1, 1), dtype=jnp.float32)   # per-channel SE scale
    w = jax.random.normal(k3, (Cout, Cin, 1, 1), dtype=jnp.float32) * 0.02

    # One-time weight prep (reshape + bf16 cast), outside the per-call path.
    w_mat = jax.block_until_ready(prepare_conv_weight(w))

    # ---- Module-spec shapes (N=1), forward(x617, x612) = conv(x617 * x612) ----
    out = jax.block_until_ready(scaled_pointwise_conv_nchw(x612, x617, w_mat))
    assert out.shape == (N, Cout, H, W), out.shape

    ref_b = _reference_bf16(x612, x617, w_mat)
    assert jnp.allclose(out, ref_b, atol=1e-2, rtol=1e-2), float(jnp.max(jnp.abs(out - ref_b)))

    ref_f = _reference_f32(x612, x617, w)
    assert jnp.allclose(out, ref_f, atol=5e-2, rtol=5e-2), float(jnp.max(jnp.abs(out - ref_f)))

    # ---- Batched check (N=2): verifies the per-sample scale path ----
    N2 = 2
    xb = jax.random.normal(k4, (N2, Cin, H, W), dtype=jnp.float32)
    sb = jax.random.normal(k5, (N2, Cin, 1, 1), dtype=jnp.float32)
    outb = jax.block_until_ready(scaled_pointwise_conv_nchw(xb, sb, w_mat))
    assert outb.shape == (N2, Cout, H, W), outb.shape
    refb_b = _reference_bf16(xb, sb, w_mat)
    assert jnp.allclose(outb, refb_b, atol=1e-2, rtol=1e-2), float(
        jnp.max(jnp.abs(outb - refb_b))
    )
    refb_f = _reference_f32(xb, sb, w)
    assert jnp.allclose(outb, refb_f, atol=5e-2, rtol=5e-2), float(
        jnp.max(jnp.abs(outb - refb_f))
    )

    print("KERNEL_OK")
</pallas_src>

<mosaic_0001>
module attributes {stable_mosaic.version = 11 : i64} {
  func.func @_scale_matmul_kernel(%arg0: i32, %arg1: i32, %arg2: memref<1x1824x49xf32, #tpu.memory_space<vmem>>, %arg3: memref<1x1824x1xf32, #tpu.memory_space<vmem>>, %arg4: memref<304x1824xbf16, #tpu.memory_space<vmem>>, %arg5: memref<1x304x49xf32, #tpu.memory_space<vmem>>) attributes {dimension_semantics = [#tpu.dimension_semantics<parallel>, #tpu.dimension_semantics<parallel>], iteration_bounds = array<i64: 1, 1>, scalar_prefetch = 0 : i64, scratch_operands = 0 : i64, tpu.core_type = #tpu.core_type<tc>, window_params = [{transform_indices = @transform_0, window_bounds = array<i64: 1, 1824, 49>}, {transform_indices = @transform_1, window_bounds = array<i64: 1, 1824, 1>}, {transform_indices = @transform_2, window_bounds = array<i64: 304, 1824>}, {transform_indices = @transform_3, window_bounds = array<i64: 1, 304, 49>}]} {
    %c0 = arith.constant 0 : index
    %c0_0 = arith.constant 0 : index
    %c0_1 = arith.constant 0 : index
    %0 = vector.load %arg2[%c0, %c0_0, %c0_1] : memref<1x1824x49xf32, #tpu.memory_space<vmem>>, vector<1x1824x49xf32>
    %1 = vector.shape_cast %0 : vector<1x1824x49xf32> to vector<1824x49xf32>
    %c0_2 = arith.constant 0 : index
    %c0_3 = arith.constant 0 : index
    %c0_4 = arith.constant 0 : index
    %2 = vector.load %arg3[%c0_2, %c0_3, %c0_4] : memref<1x1824x1xf32, #tpu.memory_space<vmem>>, vector<1x1824x1xf32>
    %3 = vector.shape_cast %2 : vector<1x1824x1xf32> to vector<1824x1xf32>
    %4 = vector.broadcast %3 : vector<1824x1xf32> to vector<1824x49xf32>
    %5 = arith.mulf %1, %4 : vector<1824x49xf32>
    %6 = arith.truncf %5 : vector<1824x49xf32> to vector<1824x49xbf16>
    %c0_5 = arith.constant 0 : index
    %c0_6 = arith.constant 0 : index
    %7 = vector.load %arg4[%c0_5, %c0_6] : memref<304x1824xbf16, #tpu.memory_space<vmem>>, vector<304x1824xbf16>
    %cst = arith.constant dense<0.000000e+00> : vector<304x49xf32>
    %8 = tpu.matmul %7, %6, %cst {dimension_numbers = #tpu.dot_dimension_numbers<[1], [0], [0], [1], [0, 0, 1, 1], [], []>} : vector<304x1824xbf16>, vector<1824x49xbf16>, vector<304x49xf32> -> vector<304x49xf32>
    %c0_7 = arith.constant 0 : index
    %c0_8 = arith.constant 0 : index
    %c0_9 = arith.constant 0 : index
    %9 = vector.load %arg5[%c0_7, %c0_8, %c0_9] : memref<1x304x49xf32, #tpu.memory_space<vmem>>, vector<1x304x49xf32>
    %10 = vector.shape_cast %9 : vector<1x304x49xf32> to vector<304x49xf32>
    %11 = vector.shape_cast %8 : vector<304x49xf32> to vector<1x304x49xf32>
    tpu.vector_store %arg5[%c0_7, %c0_8, %c0_9], %11 {strides = array<i32>} : memref<1x304x49xf32, #tpu.memory_space<vmem>>, vector<1x304x49xf32>,
    return
  }
  func.func @transform_0(%arg0: i32, %arg1: i32) -> (i32, i32, i32) {
    %c0_i32 = arith.constant 0 : i32
    %c0_i32_0 = arith.constant 0 : i32
    %c0_i32_1 = arith.constant 0 : i32
    return %arg0, %c0_i32, %c0_i32_0 : i32, i32, i32
  }
  func.func @transform_1(%arg0: i32, %arg1: i32) -> (i32, i32, i32) {
    %c0_i32 = arith.constant 0 : i32
    %c0_i32_0 = arith.constant 0 : i32
    %c0_i32_1 = arith.constant 0 : i32
    return %arg0, %c0_i32, %c0_i32_0 : i32, i32, i32
  }
  func.func @transform_2(%arg0: i32, %arg1: i32) -> (i32, i32) {
    %c0_i32 = arith.constant 0 : i32
    %c0_i32_0 = arith.constant 0 : i32
    return %arg1, %c0_i32 : i32, i32
  }
  func.func @transform_3(%arg0: i32, %arg1: i32) -> (i32, i32, i32) {
    %c0_i32 = arith.constant 0 : i32
    %c0_i32_0 = arith.constant 0 : i32
    return %arg0, %arg1, %c0_i32 : i32, i32, i32
  }
}

</mosaic_0001>

<llo_original>
// kernel: tpu_custom_call.1
$region0: #{tpu_custom_call.1}
  #allocation0 [shape = 'u32[]', space=smem, size = 0x4, offset = 0x4, fixed_abs, tag = 'smem constant byte address 0x4 - core index']
  #allocation1 [shape = 'u32[144,128]{1,0:T(1,128)}', space=vmem, size = 0x12000, scoped, tag = 'internal scratch']
  %s0 = inlined_call_operand.vmem [shape: f32[1,1824,49], index: 0, kind: input, shape index: {}]
  %s1 = inlined_call_operand.vmem [shape: f32[1,1824,1], index: 1, kind: input, shape index: {}]
  %s2 = inlined_call_operand.vmem [shape: bf16[304,1824], index: 2, kind: input, shape index: {}]
  %s3 = inlined_call_operand.vmem [shape: f32[1,304,49], index: 3, kind: output, shape index: {}]
  %s4 = sld [smem:[#allocation0]]
  $region22: #{tpu_custom_call.1} parent=0
    _
  %s6 = ssub.s32 1, %s4
  %s7 = scalar_select 0, %s6, %s4
  // Predicated region
  $region2: #{tpu_custom_call.1} parent=0 // pred_check
    _
  $region3: #{tpu_custom_call.1} parent=0 // pred_check_branch
    %9 = sbr.rel (0) target = $region5
  $region4: #{tpu_custom_call.1} parent=0 // pred_region
    _
  $region5: #{tpu_custom_call.1} parent=0 // pred_fallthru
    _
  // Predicated region
  $region6: #{tpu_custom_call.1} parent=0 // pred_check
    _
  $region7: #{tpu_custom_call.1} parent=0 // pred_check_branch
    %11 = sbr.rel (0) target = $region9
  $region8: #{tpu_custom_call.1} parent=0 // pred_region
    _
  $region9: #{tpu_custom_call.1} parent=0 // pred_fallthru
    _
  // Predicated region
  $region10: #{tpu_custom_call.1} parent=0 // pred_check
    _
  $region11: #{tpu_custom_call.1} parent=0 // pred_check_branch
    %13 = sbr.rel (0) target = $region13
  $region12: #{tpu_custom_call.1} parent=0 // pred_region
    _
  $region13: #{tpu_custom_call.1} parent=0 // pred_fallthru
    _
  %v15 = vld [vmem:[%s0] sm:$0xff]
  %v16 = vld [vmem:[%s0 + $0x8] sm:$0xff]
  %v17 = vld [vmem:[%s0 + $0x10] sm:$0xff]
  %v18 = vld [vmem:[%s0 + $0x18] sm:$0xff]
  %v19 = vld [vmem:[%s0 + $0x20] sm:$0xff]
  %v20 = vld [vmem:[%s0 + $0x28] sm:$0xff]
  %v21 = vld [vmem:[%s0 + $0x30] sm:$0xff]
  %v22 = vld [vmem:[%s0 + $0x38] sm:$0xff]
  %v23 = vld [vmem:[%s0 + $0x40] sm:$0xff]
  %v24 = vld [vmem:[%s0 + $0x48] sm:$0xff]
  %v25 = vld [vmem:[%s0 + $0x50] sm:$0xff]
  %v26 = vld [vmem:[%s0 + $0x58] sm:$0xff]
  %v27 = vld [vmem:[%s0 + $0x60] sm:$0xff]
  %v28 = vld [vmem:[%s0 + $0x68] sm:$0xff]
  %v29 = vld [vmem:[%s0 + $0x70] sm:$0xff]
  %v30 = vld [vmem:[%s0 + $0x78] sm:$0xff]
  %v31 = vld [vmem:[%s0 + $0x80] sm:$0xff]
  %v32 = vld [vmem:[%s0 + $0x88] sm:$0xff]
  %v33 = vld [vmem:[%s0 + $0x90] sm:$0xff]
  %v34 = vld [vmem:[%s0 + $0x98] sm:$0xff]
  %v35 = vld [vmem:[%s0 + $0xa0] sm:$0xff]
  %v36 = vld [vmem:[%s0 + $0xa8] sm:$0xff]
  %v37 = vld [vmem:[%s0 + $0xb0] sm:$0xff]
  %v38 = vld [vmem:[%s0 + $0xb8] sm:$0xff]
  %v39 = vld [vmem:[%s0 + $0xc0] sm:$0xff]
  %v40 = vld [vmem:[%s0 + $0xc8] sm:$0xff]
  %v41 = vld [vmem:[%s0 + $0xd0] sm:$0xff]
  %v42 = vld [vmem:[%s0 + $0xd8] sm:$0xff]
  %v43 = vld [vmem:[%s0 + $0xe0] sm:$0xff]
  %v44 = vld [vmem:[%s0 + $0xe8] sm:$0xff]
  %v45 = vld [vmem:[%s0 + $0xf0] sm:$0xff]
  %v46 = vld [vmem:[%s0 + $0xf8] sm:$0xff]
  %v47 = vld [vmem:[%s0 + $0x100] sm:$0xff]
  %v48 = vld [vmem:[%s0 + $0x108] sm:$0xff]
  %v49 = vld [vmem:[%s0 + $0x110] sm:$0xff]
  %v50 = vld [vmem:[%s0 + $0x118] sm:$0xff]
  %v51 = vld [vmem:[%s0 + $0x120] sm:$0xff]
  %v52 = vld [vmem:[%s0 + $0x128] sm:$0xff]
  %v53 = vld [vmem:[%s0 + $0x130] sm:$0xff]
  %v54 = vld [vmem:[%s0 + $0x138] sm:$0xff]
  %v55 = vld [vmem:[%s0 + $0x140] sm:$0xff]
  %v56 = vld [vmem:[%s0 + $0x148] sm:$0xff]
  %v57 = vld [vmem:[%s0 + $0x150] sm:$0xff]
  %v58 = vld [vmem:[%s0 + $0x158] sm:$0xff]
  %v59 = vld [vmem:[%s0 + $0x160] sm:$0xff]
  %v60 = vld [vmem:[%s0 + $0x168] sm:$0xff]
  %v61 = vld [vmem:[%s0 + $0x170] sm:$0xff]
  %v62 = vld [vmem:[%s0 + $0x178] sm:$0xff]
  %v63 = vld [vmem:[%s0 + $0x180] sm:$0xff]
  %v64 = vld [vmem:[%s0 + $0x188] sm:$0xff]
  %v65 = vld [vmem:[%s0 + $0x190] sm:$0xff]
  %v66 = vld [vmem:[%s0 + $0x198] sm:$0xff]
  %v67 = vld [vmem:[%s0 + $0x1a0] sm:$0xff]
  %v68 = vld [vmem:[%s0 + $0x1a8] sm:$0xff]
  %v69 = vld [vmem:[%s0 + $0x1b0] sm:$0xff]
  %v70 = vld [vmem:[%s0 + $0x1b8] sm:$0xff]
  %v71 = vld [vmem:[%s0 + $0x1c0] sm:$0xff]
  %v72 = vld [vmem:[%s0 + $0x1c8] sm:$0xff]
  %v73 = vld [vmem:[%s0 + $0x1d0] sm:$0xff]
  %v74 = vld [vmem:[%s0 + $0x1d8] sm:$0xff]
  %v75 = vld [vmem:[%s0 + $0x1e0] sm:$0xff]
  %v76 = vld [vmem:[%s0 + $0x1e8] sm:$0xff]
  %v77 = vld [vmem:[%s0 + $0x1f0] sm:$0xff]
  %v78 = vld [vmem:[%s0 + $0x1f8] sm:$0xff]
  %v79 = vld [vmem:[%s0 + $0x200] sm:$0xff]
  %v80 = vld [vmem:[%s0 + $0x208] sm:$0xff]
  %v81 = vld [vmem:[%s0 + $0x210] sm:$0xff]
  %v82 = vld [vmem:[%s0 + $0x218] sm:$0xff]
  %v83 = vld [vmem:[%s0 + $0x220] sm:$0xff]
  %v84 = vld [vmem:[%s0 + $0x228] sm:$0xff]
  %v85 = vld [vmem:[%s0 + $0x230] sm:$0xff]
  %v86 = vld [vmem:[%s0 + $0x238] sm:$0xff]
  %v87 = vld [vmem:[%s0 + $0x240] sm:$0xff]
  %v88 = vld [vmem:[%s0 + $0x248] sm:$0xff]
  %v89 = vld [vmem:[%s0 + $0x250] sm:$0xff]
  %v90 = vld [vmem:[%s0 + $0x258] sm:$0xff]
  %v91 = vld [vmem:[%s0 + $0x260] sm:$0xff]
  %v92 = vld [vmem:[%s0 + $0x268] sm:$0xff]
  %v93 = vld [vmem:[%s0 + $0x270] sm:$0xff]
  %v94 = vld [vmem:[%s0 + $0x278] sm:$0xff]
  %v95 = vld [vmem:[%s0 + $0x280] sm:$0xff]
  %v96 = vld [vmem:[%s0 + $0x288] sm:$0xff]
  %v97 = vld [vmem:[%s0 + $0x290] sm:$0xff]
  %v98 = vld [vmem:[%s0 + $0x298] sm:$0xff]
  %v99 = vld [vmem:[%s0 + $0x2a0] sm:$0xff]
  %v100 = vld [vmem:[%s0 + $0x2a8] sm:$0xff]
  %v101 = vld [vmem:[%s0 + $0x2b0] sm:$0xff]
  %v102 = vld [vmem:[%s0 + $0x2b8] sm:$0xff]
  %v103 = vld [vmem:[%s0 + $0x2c0] sm:$0xff]
  %v104 = vld [vmem:[%s0 + $0x2c8] sm:$0xff]
  %v105 = vld [vmem:[%s0 + $0x2d0] sm:$0xff]
  %v106 = vld [vmem:[%s0 + $0x2d8] sm:$0xff]
  %v107 = vld [vmem:[%s0 + $0x2e0] sm:$0xff]
  %v108 = vld [vmem:[%s0 + $0x2e8] sm:$0xff]
  %v109 = vld [vmem:[%s0 + $0x2f0] sm:$0xff]
  %v110 = vld [vmem:[%s0 + $0x2f8] sm:$0xff]
  %v111 = vld [vmem:[%s0 + $0x300] sm:$0xff]
  %v112 = vld [vmem:[%s0 + $0x308] sm:$0xff]
  %v113 = vld [vmem:[%s0 + $0x310] sm:$0xff]
  %v114 = vld [vmem:[%s0 + $0x318] sm:$0xff]
  %v115 = vld [vmem:[%s0 + $0x320] sm:$0xff]
  %v116 = vld [vmem:[%s0 + $0x328] sm:$0xff]
  %v117 = vld [vmem:[%s0 + $0x330] sm:$0xff]
  %v118 = vld [vmem:[%s0 + $0x338] sm:$0xff]
  %v119 = vld [vmem:[%s0 + $0x340] sm:$0xff]
  %v120 = vld [vmem:[%s0 + $0x348] sm:$0xff]
  %v121 = vld [vmem:[%s0 + $0x350] sm:$0xff]
  %v122 = vld [vmem:[%s0 + $0x358] sm:$0xff]
  %v123 = vld [vmem:[%s0 + $0x360] sm:$0xff]
  %v124 = vld [vmem:[%s0 + $0x368] sm:$0xff]
  %v125 = vld [vmem:[%s0 + $0x370] sm:$0xff]
  %v126 = vld [vmem:[%s0 + $0x378] sm:$0xff]
  %v127 = vld [vmem:[%s0 + $0x380] sm:$0xff]
  %v128 = vld [vmem:[%s0 + $0x388] sm:$0xff]
  %v129 = vld [vmem:[%s0 + $0x390] sm:$0xff]
  %v130 = vld [vmem:[%s0 + $0x398] sm:$0xff]
  %v131 = vld [vmem:[%s0 + $0x3a0] sm:$0xff]
  %v132 = vld [vmem:[%s0 + $0x3a8] sm:$0xff]
  %v133 = vld [vmem:[%s0 + $0x3b0] sm:$0xff]
  %v134 = vld [vmem:[%s0 + $0x3b8] sm:$0xff]
  %v135 = vld [vmem:[%s0 + $0x3c0] sm:$0xff]
  %v136 = vld [vmem:[%s0 + $0x3c8] sm:$0xff]
  %v137 = vld [vmem:[%s0 + $0x3d0] sm:$0xff]
  %v138 = vld [vmem:[%s0 + $0x3d8] sm:$0xff]
  %v139 = vld [vmem:[%s0 + $0x3e0] sm:$0xff]
  %v140 = vld [vmem:[%s0 + $0x3e8] sm:$0xff]
  %v141 = vld [vmem:[%s0 + $0x3f0] sm:$0xff]
  %v142 = vld [vmem:[%s0 + $0x3f8] sm:$0xff]
  %v143 = vld [vmem:[%s0 + $0x400] sm:$0xff]
  %v144 = vld [vmem:[%s0 + $0x408] sm:$0xff]
  %v145 = vld [vmem:[%s0 + $0x410] sm:$0xff]
  %v146 = vld [vmem:[%s0 + $0x418] sm:$0xff]
  %v147 = vld [vmem:[%s0 + $0x420] sm:$0xff]
  %v148 = vld [vmem:[%s0 + $0x428] sm:$0xff]
  %v149 = vld [vmem:[%s0 + $0x430] sm:$0xff]
  %v150 = vld [vmem:[%s0 + $0x438] sm:$0xff]
  %v151 = vld [vmem:[%s0 + $0x440] sm:$0xff]
  %v152 = vld [vmem:[%s0 + $0x448] sm:$0xff]
  %v153 = vld [vmem:[%s0 + $0x450] sm:$0xff]
  %v154 = vld [vmem:[%s0 + $0x458] sm:$0xff]
  %v155 = vld [vmem:[%s0 + $0x460] sm:$0xff]
  %v156 = vld [vmem:[%s0 + $0x468] sm:$0xff]
  %v157 = vld [vmem:[%s0 + $0x470] sm:$0xff]
  %v158 = vld [vmem:[%s0 + $0x478] sm:$0xff]
  %v159 = vld [vmem:[%s0 + $0x480] sm:$0xff]
  %v160 = vld [vmem:[%s0 + $0x488] sm:$0xff]
  %v161 = vld [vmem:[%s0 + $0x490] sm:$0xff]
  %v162 = vld [vmem:[%s0 + $0x498] sm:$0xff]
  %v163 = vld [vmem:[%s0 + $0x4a0] sm:$0xff]
  %v164 = vld [vmem:[%s0 + $0x4a8] sm:$0xff]
  %v165 = vld [vmem:[%s0 + $0x4b0] sm:$0xff]
  %v166 = vld [vmem:[%s0 + $0x4b8] sm:$0xff]
  %v167 = vld [vmem:[%s0 + $0x4c0] sm:$0xff]
  %v168 = vld [vmem:[%s0 + $0x4c8] sm:$0xff]
  %v169 = vld [vmem:[%s0 + $0x4d0] sm:$0xff]
  %v170 = vld [vmem:[%s0 + $0x4d8] sm:$0xff]
  %v171 = vld [vmem:[%s0 + $0x4e0] sm:$0xff]
  %v172 = vld [vmem:[%s0 + $0x4e8] sm:$0xff]
  %v173 = vld [vmem:[%s0 + $0x4f0] sm:$0xff]
  %v174 = vld [vmem:[%s0 + $0x4f8] sm:$0xff]
  %v175 = vld [vmem:[%s0 + $0x500] sm:$0xff]
  %v176 = vld [vmem:[%s0 + $0x508] sm:$0xff]
  %v177 = vld [vmem:[%s0 + $0x510] sm:$0xff]
  %v178 = vld [vmem:[%s0 + $0x518] sm:$0xff]
  %v179 = vld [vmem:[%s0 + $0x520] sm:$0xff]
  %v180 = vld [vmem:[%s0 + $0x528] sm:$0xff]
  %v181 = vld [vmem:[%s0 + $0x530] sm:$0xff]
  %v182 = vld [vmem:[%s0 + $0x538] sm:$0xff]
  %v183 = vld [vmem:[%s0 + $0x540] sm:$0xff]
  %v184 = vld [vmem:[%s0 + $0x548] sm:$0xff]
  %v185 = vld [vmem:[%s0 + $0x550] sm:$0xff]
  %v186 = vld [vmem:[%s0 + $0x558] sm:$0xff]
  %v187 = vld [vmem:[%s0 + $0x560] sm:$0xff]
  %v188 = vld [vmem:[%s0 + $0x568] sm:$0xff]
  %v189 = vld [vmem:[%s0 + $0x570] sm:$0xff]
  %v190 = vld [vmem:[%s0 + $0x578] sm:$0xff]
  %v191 = vld [vmem:[%s0 + $0x580] sm:$0xff]
  %v192 = vld [vmem:[%s0 + $0x588] sm:$0xff]
  %v193 = vld [vmem:[%s0 + $0x590] sm:$0xff]
  %v194 = vld [vmem:[%s0 + $0x598] sm:$0xff]
  %v195 = vld [vmem:[%s0 + $0x5a0] sm:$0xff]
  %v196 = vld [vmem:[%s0 + $0x5a8] sm:$0xff]
  %v197 = vld [vmem:[%s0 + $0x5b0] sm:$0xff]
  %v198 = vld [vmem:[%s0 + $0x5b8] sm:$0xff]
  %v199 = vld [vmem:[%s0 + $0x5c0] sm:$0xff]
  %v200 = vld [vmem:[%s0 + $0x5c8] sm:$0xff]
  %v201 = vld [vmem:[%s0 + $0x5d0] sm:$0xff]
  %v202 = vld [vmem:[%s0 + $0x5d8] sm:$0xff]
  %v203 = vld [vmem:[%s0 + $0x5e0] sm:$0xff]
  %v204 = vld [vmem:[%s0 + $0x5e8] sm:$0xff]
  %v205 = vld [vmem:[%s0 + $0x5f0] sm:$0xff]
  %v206 = vld [vmem:[%s0 + $0x5f8] sm:$0xff]
  %v207 = vld [vmem:[%s0 + $0x600] sm:$0xff]
  %v208 = vld [vmem:[%s0 + $0x608] sm:$0xff]
  %v209 = vld [vmem:[%s0 + $0x610] sm:$0xff]
  %v210 = vld [vmem:[%s0 + $0x618] sm:$0xff]
  %v211 = vld [vmem:[%s0 + $0x620] sm:$0xff]
  %v212 = vld [vmem:[%s0 + $0x628] sm:$0xff]
  %v213 = vld [vmem:[%s0 + $0x630] sm:$0xff]
  %v214 = vld [vmem:[%s0 + $0x638] sm:$0xff]
  %v215 = vld [vmem:[%s0 + $0x640] sm:$0xff]
  %v216 = vld [vmem:[%s0 + $0x648] sm:$0xff]
  %v217 = vld [vmem:[%s0 + $0x650] sm:$0xff]
  %v218 = vld [vmem:[%s0 + $0x658] sm:$0xff]
  %v219 = vld [vmem:[%s0 + $0x660] sm:$0xff]
  %v220 = vld [vmem:[%s0 + $0x668] sm:$0xff]
  %v221 = vld [vmem:[%s0 + $0x670] sm:$0xff]
  %v222 = vld [vmem:[%s0 + $0x678] sm:$0xff]
  %v223 = vld [vmem:[%s0 + $0x680] sm:$0xff]
  %v224 = vld [vmem:[%s0 + $0x688] sm:$0xff]
  %v225 = vld [vmem:[%s0 + $0x690] sm:$0xff]
  %v226 = vld [vmem:[%s0 + $0x698] sm:$0xff]
  %v227 = vld [vmem:[%s0 + $0x6a0] sm:$0xff]
  %v228 = vld [vmem:[%s0 + $0x6a8] sm:$0xff]
  %v229 = vld [vmem:[%s0 + $0x6b0] sm:$0xff]
  %v230 = vld [vmem:[%s0 + $0x6b8] sm:$0xff]
  %v231 = vld [vmem:[%s0 + $0x6c0] sm:$0xff]
  %v232 = vld [vmem:[%s0 + $0x6c8] sm:$0xff]
  %v233 = vld [vmem:[%s0 + $0x6d0] sm:$0xff]
  %v234 = vld [vmem:[%s0 + $0x6d8] sm:$0xff]
  %v235 = vld [vmem:[%s0 + $0x6e0] sm:$0xff]
  %v236 = vld [vmem:[%s0 + $0x6e8] sm:$0xff]
  %v237 = vld [vmem:[%s0 + $0x6f0] sm:$0xff]
  %v238 = vld [vmem:[%s0 + $0x6f8] sm:$0xff]
  %v239 = vld [vmem:[%s0 + $0x700] sm:$0xff]
  %v240 = vld [vmem:[%s0 + $0x708] sm:$0xff]
  %v241 = vld [vmem:[%s0 + $0x710] sm:$0xff]
  %v242 = vld [vmem:[%s0 + $0x718] sm:$0xff]
  %v243 = vld [vmem:[%s1] sm:$0xff]
  %v244 = vld [vmem:[%s1 + $0x8] sm:$0xff]
  %v245 = vld [vmem:[%s1 + $0x10] sm:$0xff]
  %v246 = vld [vmem:[%s1 + $0x18] sm:$0xff]
  %v247 = vld [vmem:[%s1 + $0x20] sm:$0xff]
  %v248 = vld [vmem:[%s1 + $0x28] sm:$0xff]
  %v249 = vld [vmem:[%s1 + $0x30] sm:$0xff]
  %v250 = vld [vmem:[%s1 + $0x38] sm:$0xff]
  %v251 = vld [vmem:[%s1 + $0x40] sm:$0xff]
  %v252 = vld [vmem:[%s1 + $0x48] sm:$0xff]
  %v253 = vld [vmem:[%s1 + $0x50] sm:$0xff]
  %v254 = vld [vmem:[%s1 + $0x58] sm:$0xff]
  %v255 = vld [vmem:[%s1 + $0x60] sm:$0xff]
  %v256 = vld [vmem:[%s1 + $0x68] sm:$0xff]
  %v257 = vld [vmem:[%s1 + $0x70] sm:$0xff]
  %v258 = vld [vmem:[%s1 + $0x78] sm:$0xff]
  %v259 = vld [vmem:[%s1 + $0x80] sm:$0xff]
  %v260 = vld [vmem:[%s1 + $0x88] sm:$0xff]
  %v261 = vld [vmem:[%s1 + $0x90] sm:$0xff]
  %v262 = vld [vmem:[%s1 + $0x98] sm:$0xff]
  %v263 = vld [vmem:[%s1 + $0xa0] sm:$0xff]
  %v264 = vld [vmem:[%s1 + $0xa8] sm:$0xff]
  %v265 = vld [vmem:[%s1 + $0xb0] sm:$0xff]
  %v266 = vld [vmem:[%s1 + $0xb8] sm:$0xff]
  %v267 = vld [vmem:[%s1 + $0xc0] sm:$0xff]
  %v268 = vld [vmem:[%s1 + $0xc8] sm:$0xff]
  %v269 = vld [vmem:[%s1 + $0xd0] sm:$0xff]
  %v270 = vld [vmem:[%s1 + $0xd8] sm:$0xff]
  %v271 = vld [vmem:[%s1 + $0xe0] sm:$0xff]
  %v272 = vld [vmem:[%s1 + $0xe8] sm:$0xff]
  %v273 = vld [vmem:[%s1 + $0xf0] sm:$0xff]
  %v274 = vld [vmem:[%s1 + $0xf8] sm:$0xff]
  %v275 = vld [vmem:[%s1 + $0x100] sm:$0xff]
  %v276 = vld [vmem:[%s1 + $0x108] sm:$0xff]
  %v277 = vld [vmem:[%s1 + $0x110] sm:$0xff]
  %v278 = vld [vmem:[%s1 + $0x118] sm:$0xff]
  %v279 = vld [vmem:[%s1 + $0x120] sm:$0xff]
  %v280 = vld [vmem:[%s1 + $0x128] sm:$0xff]
  %v281 = vld [vmem:[%s1 + $0x130] sm:$0xff]
  %v282 = vld [vmem:[%s1 + $0x138] sm:$0xff]
  %v283 = vld [vmem:[%s1 + $0x140] sm:$0xff]
  %v284 = vld [vmem:[%s1 + $0x148] sm:$0xff]
  %v285 = vld [vmem:[%s1 + $0x150] sm:$0xff]
  %v286 = vld [vmem:[%s1 + $0x158] sm:$0xff]
  %v287 = vld [vmem:[%s1 + $0x160] sm:$0xff]
  %v288 = vld [vmem:[%s1 + $0x168] sm:$0xff]
  %v289 = vld [vmem:[%s1 + $0x170] sm:$0xff]
  %v290 = vld [vmem:[%s1 + $0x178] sm:$0xff]
  %v291 = vld [vmem:[%s1 + $0x180] sm:$0xff]
  %v292 = vld [vmem:[%s1 + $0x188] sm:$0xff]
  %v293 = vld [vmem:[%s1 + $0x190] sm:$0xff]
  %v294 = vld [vmem:[%s1 + $0x198] sm:$0xff]
  %v295 = vld [vmem:[%s1 + $0x1a0] sm:$0xff]
  %v296 = vld [vmem:[%s1 + $0x1a8] sm:$0xff]
  %v297 = vld [vmem:[%s1 + $0x1b0] sm:$0xff]
  %v298 = vld [vmem:[%s1 + $0x1b8] sm:$0xff]
  %v299 = vld [vmem:[%s1 + $0x1c0] sm:$0xff]
  %v300 = vld [vmem:[%s1 + $0x1c8] sm:$0xff]
  %v301 = vld [vmem:[%s1 + $0x1d0] sm:$0xff]
  %v302 = vld [vmem:[%s1 + $0x1d8] sm:$0xff]
  %v303 = vld [vmem:[%s1 + $0x1e0] sm:$0xff]
  %v304 = vld [vmem:[%s1 + $0x1e8] sm:$0xff]
  %v305 = vld [vmem:[%s1 + $0x1f0] sm:$0xff]
  %v306 = vld [vmem:[%s1 + $0x1f8] sm:$0xff]
  %v307 = vld [vmem:[%s1 + $0x200] sm:$0xff]
  %v308 = vld [vmem:[%s1 + $0x208] sm:$0xff]
  %v309 = vld [vmem:[%s1 + $0x210] sm:$0xff]
  %v310 = vld [vmem:[%s1 + $0x218] sm:$0xff]
  %v311 = vld [vmem:[%s1 + $0x220] sm:$0xff]
  %v312 = vld [vmem:[%s1 + $0x228] sm:$0xff]
  %v313 = vld [vmem:[%s1 + $0x230] sm:$0xff]
  %v314 = vld [vmem:[%s1 + $0x238] sm:$0xff]
  %v315 = vld [vmem:[%s1 + $0x240] sm:$0xff]
  %v316 = vld [vmem:[%s1 + $0x248] sm:$0xff]
  %v317 = vld [vmem:[%s1 + $0x250] sm:$0xff]
  %v318 = vld [vmem:[%s1 + $0x258] sm:$0xff]
  %v319 = vld [vmem:[%s1 + $0x260] sm:$0xff]
  %v320 = vld [vmem:[%s1 + $0x268] sm:$0xff]
  %v321 = vld [vmem:[%s1 + $0x270] sm:$0xff]
  %v322 = vld [vmem:[%s1 + $0x278] sm:$0xff]
  %v323 = vld [vmem:[%s1 + $0x280] sm:$0xff]
  %v324 = vld [vmem:[%s1 + $0x288] sm:$0xff]
  %v325 = vld [vmem:[%s1 + $0x290] sm:$0xff]
  %v326 = vld [vmem:[%s1 + $0x298] sm:$0xff]
  %v327 = vld [vmem:[%s1 + $0x2a0] sm:$0xff]
  %v328 = vld [vmem:[%s1 + $0x2a8] sm:$0xff]
  %v329 = vld [vmem:[%s1 + $0x2b0] sm:$0xff]
  %v330 = vld [vmem:[%s1 + $0x2b8] sm:$0xff]
  %v331 = vld [vmem:[%s1 + $0x2c0] sm:$0xff]
  %v332 = vld [vmem:[%s1 + $0x2c8] sm:$0xff]
  %v333 = vld [vmem:[%s1 + $0x2d0] sm:$0xff]
  %v334 = vld [vmem:[%s1 + $0x2d8] sm:$0xff]
  %v335 = vld [vmem:[%s1 + $0x2e0] sm:$0xff]
  %v336 = vld [vmem:[%s1 + $0x2e8] sm:$0xff]
  %v337 = vld [vmem:[%s1 + $0x2f0] sm:$0xff]
  %v338 = vld [vmem:[%s1 + $0x2f8] sm:$0xff]
  %v339 = vld [vmem:[%s1 + $0x300] sm:$0xff]
  %v340 = vld [vmem:[%s1 + $0x308] sm:$0xff]
  %v341 = vld [vmem:[%s1 + $0x310] sm:$0xff]
  %v342 = vld [vmem:[%s1 + $0x318] sm:$0xff]
  %v343 = vld [vmem:[%s1 + $0x320] sm:$0xff]
  %v344 = vld [vmem:[%s1 + $0x328] sm:$0xff]
  %v345 = vld [vmem:[%s1 + $0x330] sm:$0xff]
  %v346 = vld [vmem:[%s1 + $0x338] sm:$0xff]
  %v347 = vld [vmem:[%s1 + $0x340] sm:$0xff]
  %v348 = vld [vmem:[%s1 + $0x348] sm:$0xff]
  %v349 = vld [vmem:[%s1 + $0x350] sm:$0xff]
  %v350 = vld [vmem:[%s1 + $0x358] sm:$0xff]
  %v351 = vld [vmem:[%s1 + $0x360] sm:$0xff]
  %v352 = vld [vmem:[%s1 + $0x368] sm:$0xff]
  %v353 = vld [vmem:[%s1 + $0x370] sm:$0xff]
  %v354 = vld [vmem:[%s1 + $0x378] sm:$0xff]
  %v355 = vld [vmem:[%s1 + $0x380] sm:$0xff]
  %v356 = vld [vmem:[%s1 + $0x388] sm:$0xff]
  %v357 = vld [vmem:[%s1 + $0x390] sm:$0xff]
  %v358 = vld [vmem:[%s1 + $0x398] sm:$0xff]
  %v359 = vld [vmem:[%s1 + $0x3a0] sm:$0xff]
  %v360 = vld [vmem:[%s1 + $0x3a8] sm:$0xff]
  %v361 = vld [vmem:[%s1 + $0x3b0] sm:$0xff]
  %v362 = vld [vmem:[%s1 + $0x3b8] sm:$0xff]
  %v363 = vld [vmem:[%s1 + $0x3c0] sm:$0xff]
  %v364 = vld [vmem:[%s1 + $0x3c8] sm:$0xff]
  %v365 = vld [vmem:[%s1 + $0x3d0] sm:$0xff]
  %v366 = vld [vmem:[%s1 + $0x3d8] sm:$0xff]
  %v367 = vld [vmem:[%s1 + $0x3e0] sm:$0xff]
  %v368 = vld [vmem:[%s1 + $0x3e8] sm:$0xff]
  %v369 = vld [vmem:[%s1 + $0x3f0] sm:$0xff]
  %v370 = vld [vmem:[%s1 + $0x3f8] sm:$0xff]
  %v371 = vld [vmem:[%s1 + $0x400] sm:$0xff]
  %v372 = vld [vmem:[%s1 + $0x408] sm:$0xff]
  %v373 = vld [vmem:[%s1 + $0x410] sm:$0xff]
  %v374 = vld [vmem:[%s1 + $0x418] sm:$0xff]
  %v375 = vld [vmem:[%s1 + $0x420] sm:$0xff]
  %v376 = vld [vmem:[%s1 + $0x428] sm:$0xff]
  %v377 = vld [vmem:[%s1 + $0x430] sm:$0xff]
  %v378 = vld [vmem:[%s1 + $0x438] sm:$0xff]
  %v379 = vld [vmem:[%s1 + $0x440] sm:$0xff]
  %v380 = vld [vmem:[%s1 + $0x448] sm:$0xff]
  %v381 = vld [vmem:[%s1 + $0x450] sm:$0xff]
  %v382 = vld [vmem:[%s1 + $0x458] sm:$0xff]
  %v383 = vld [vmem:[%s1 + $0x460] sm:$0xff]
  %v384 = vld [vmem:[%s1 + $0x468] sm:$0xff]
  %v385 = vld [vmem:[%s1 + $0x470] sm:$0xff]
  %v386 = vld [vmem:[%s1 + $0x478] sm:$0xff]
  %v387 = vld [vmem:[%s1 + $0x480] sm:$0xff]
  %v388 = vld [vmem:[%s1 + $0x488] sm:$0xff]
  %v389 = vld [vmem:[%s1 + $0x490] sm:$0xff]
  %v390 = vld [vmem:[%s1 + $0x498] sm:$0xff]
  %v391 = vld [vmem:[%s1 + $0x4a0] sm:$0xff]
  %v392 = vld [vmem:[%s1 + $0x4a8] sm:$0xff]
  %v393 = vld [vmem:[%s1 + $0x4b0] sm:$0xff]
  %v394 = vld [vmem:[%s1 + $0x4b8] sm:$0xff]
  %v395 = vld [vmem:[%s1 + $0x4c0] sm:$0xff]
  %v396 = vld [vmem:[%s1 + $0x4c8] sm:$0xff]
  %v397 = vld [vmem:[%s1 + $0x4d0] sm:$0xff]
  %v398 = vld [vmem:[%s1 + $0x4d8] sm:$0xff]
  %v399 = vld [vmem:[%s1 + $0x4e0] sm:$0xff]
  %v400 = vld [vmem:[%s1 + $0x4e8] sm:$0xff]
  %v401 = vld [vmem:[%s1 + $0x4f0] sm:$0xff]
  %v402 = vld [vmem:[%s1 + $0x4f8] sm:$0xff]
  %v403 = vld [vmem:[%s1 + $0x500] sm:$0xff]
  %v404 = vld [vmem:[%s1 + $0x508] sm:$0xff]
  %v405 = vld [vmem:[%s1 + $0x510] sm:$0xff]
  %v406 = vld [vmem:[%s1 + $0x518] sm:$0xff]
  %v407 = vld [vmem:[%s1 + $0x520] sm:$0xff]
  %v408 = vld [vmem:[%s1 + $0x528] sm:$0xff]
  %v409 = vld [vmem:[%s1 + $0x530] sm:$0xff]
  %v410 = vld [vmem:[%s1 + $0x538] sm:$0xff]
  %v411 = vld [vmem:[%s1 + $0x540] sm:$0xff]
  %v412 = vld [vmem:[%s1 + $0x548] sm:$0xff]
  %v413 = vld [vmem:[%s1 + $0x550] sm:$0xff]
  %v414 = vld [vmem:[%s1 + $0x558] sm:$0xff]
  %v415 = vld [vmem:[%s1 + $0x560] sm:$0xff]
  %v416 = vld [vmem:[%s1 + $0x568] sm:$0xff]
  %v417 = vld [vmem:[%s1 + $0x570] sm:$0xff]
  %v418 = vld [vmem:[%s1 + $0x578] sm:$0xff]
  %v419 = vld [vmem:[%s1 + $0x580] sm:$0xff]
  %v420 = vld [vmem:[%s1 + $0x588] sm:$0xff]
  %v421 = vld [vmem:[%s1 + $0x590] sm:$0xff]
  %v422 = vld [vmem:[%s1 + $0x598] sm:$0xff]
  %v423 = vld [vmem:[%s1 + $0x5a0] sm:$0xff]
  %v424 = vld [vmem:[%s1 + $0x5a8] sm:$0xff]
  %v425 = vld [vmem:[%s1 + $0x5b0] sm:$0xff]
  %v426 = vld [vmem:[%s1 + $0x5b8] sm:$0xff]
  %v427 = vld [vmem:[%s1 + $0x5c0] sm:$0xff]
  %v428 = vld [vmem:[%s1 + $0x5c8] sm:$0xff]
  %v429 = vld [vmem:[%s1 + $0x5d0] sm:$0xff]
  %v430 = vld [vmem:[%s1 + $0x5d8] sm:$0xff]
  %v431 = vld [vmem:[%s1 + $0x5e0] sm:$0xff]
  %v432 = vld [vmem:[%s1 + $0x5e8] sm:$0xff]
  %v433 = vld [vmem:[%s1 + $0x5f0] sm:$0xff]
  %v434 = vld [vmem:[%s1 + $0x5f8] sm:$0xff]
  %v435 = vld [vmem:[%s1 + $0x600] sm:$0xff]
  %v436 = vld [vmem:[%s1 + $0x608] sm:$0xff]
  %v437 = vld [vmem:[%s1 + $0x610] sm:$0xff]
  %v438 = vld [vmem:[%s1 + $0x618] sm:$0xff]
  %v439 = vld [vmem:[%s1 + $0x620] sm:$0xff]
  %v440 = vld [vmem:[%s1 + $0x628] sm:$0xff]
  %v441 = vld [vmem:[%s1 + $0x630] sm:$0xff]
  %v442 = vld [vmem:[%s1 + $0x638] sm:$0xff]
  %v443 = vld [vmem:[%s1 + $0x640] sm:$0xff]
  %v444 = vld [vmem:[%s1 + $0x648] sm:$0xff]
  %v445 = vld [vmem:[%s1 + $0x650] sm:$0xff]
  %v446 = vld [vmem:[%s1 + $0x658] sm:$0xff]
  %v447 = vld [vmem:[%s1 + $0x660] sm:$0xff]
  %v448 = vld [vmem:[%s1 + $0x668] sm:$0xff]
  %v449 = vld [vmem:[%s1 + $0x670] sm:$0xff]
  %v450 = vld [vmem:[%s1 + $0x678] sm:$0xff]
  %v451 = vld [vmem:[%s1 + $0x680] sm:$0xff]
  %v452 = vld [vmem:[%s1 + $0x688] sm:$0xff]
  %v453 = vld [vmem:[%s1 + $0x690] sm:$0xff]
  %v454 = vld [vmem:[%s1 + $0x698] sm:$0xff]
  %v455 = vld [vmem:[%s1 + $0x6a0] sm:$0xff]
  %v456 = vld [vmem:[%s1 + $0x6a8] sm:$0xff]
  %v457 = vld [vmem:[%s1 + $0x6b0] sm:$0xff]
  %v458 = vld [vmem:[%s1 + $0x6b8] sm:$0xff]
  %v459 = vld [vmem:[%s1 + $0x6c0] sm:$0xff]
  %v460 = vld [vmem:[%s1 + $0x6c8] sm:$0xff]
  %v461 = vld [vmem:[%s1 + $0x6d0] sm:$0xff]
  %v462 = vld [vmem:[%s1 + $0x6d8] sm:$0xff]
  %v463 = vld [vmem:[%s1 + $0x6e0] sm:$0xff]
  %v464 = vld [vmem:[%s1 + $0x6e8] sm:$0xff]
  %v465 = vld [vmem:[%s1 + $0x6f0] sm:$0xff]
  %v466 = vld [vmem:[%s1 + $0x6f8] sm:$0xff]
  %v467 = vld [vmem:[%s1 + $0x700] sm:$0xff]
  %v468 = vld [vmem:[%s1 + $0x708] sm:$0xff]
  %v469 = vld [vmem:[%s1 + $0x710] sm:$0xff]
  %v470 = vld [vmem:[%s1 + $0x718] sm:$0xff]
  %472 = vset.pattern.permute.xlu0 0
  %473 = vperm.xlu0 %472, %v243
  %v474 = vpop.permute.xlu0 %473
  %477 = vset.pattern.permute.xlu0 0
  %478 = vperm.xlu0 %477, %v244
  %v479 = vpop.permute.xlu0 %478
  %482 = vset.pattern.permute.xlu0 0
  %483 = vperm.xlu0 %482, %v245
  %v484 = vpop.permute.xlu0 %483
  %487 = vset.pattern.permute.xlu0 0
  %488 = vperm.xlu0 %487, %v246
  %v489 = vpop.permute.xlu0 %488
  %492 = vset.pattern.permute.xlu0 0
  %493 = vperm.xlu0 %492, %v247
  %v494 = vpop.permute.xlu0 %493
  %497 = vset.pattern.permute.xlu0 0
  %498 = vperm.xlu0 %497, %v248
  %v499 = vpop.permute.xlu0 %498
  %502 = vset.pattern.permute.xlu0 0
  %503 = vperm.xlu0 %502, %v249
  %v504 = vpop.permute.xlu0 %503
  %507 = vset.pattern.permute.xlu0 0
  %508 = vperm.xlu0 %507, %v250
  %v509 = vpop.permute.xlu0 %508
  %512 = vset.pattern.permute.xlu0 0
  %513 = vperm.xlu0 %512, %v251
  %v514 = vpop.permute.xlu0 %513
  %517 = vset.pattern.permute.xlu0 0
  %518 = vperm.xlu0 %517, %v252
  %v519 = vpop.permute.xlu0 %518
  %522 = vset.pattern.permute.xlu0 0
  %523 = vperm.xlu0 %522, %v253
  %v524 = vpop.permute.xlu0 %523
  %527 = vset.pattern.permute.xlu0 0
  %528 = vperm.xlu0 %527, %v254
  %v529 = vpop.permute.xlu0 %528
  %532 = vset.pattern.permute.xlu0 0
  %533 = vperm.xlu0 %532, %v255
  %v534 = vpop.permute.xlu0 %533
  %537 = vset.pattern.permute.xlu0 0
  %538 = vperm.xlu0 %537, %v256
  %v539 = vpop.permute.xlu0 %538
  %542 = vset.pattern.permute.xlu0 0
  %543 = vperm.xlu0 %542, %v257
  %v544 = vpop.permute.xlu0 %543
  %547 = vset.pattern.permute.xlu0 0
  %548 = vperm.xlu0 %547, %v258
  %v549 = vpop.permute.xlu0 %548
  %552 = vset.pattern.permute.xlu0 0
  %553 = vperm.xlu0 %552, %v259
  %v554 = vpop.permute.xlu0 %553
  %557 = vset.pattern.permute.xlu0 0
  %558 = vperm.xlu0 %557, %v260
  %v559 = vpop.permute.xlu0 %558
  %562 = vset.pattern.permute.xlu0 0
  %563 = vperm.xlu0 %562, %v261
  %v564 = vpop.permute.xlu0 %563
  %567 = vset.pattern.permute.xlu0 0
  %568 = vperm.xlu0 %567, %v262
  %v569 = vpop.permute.xlu0 %568
  %572 = vset.pattern.permute.xlu0 0
  %573 = vperm.xlu0 %572, %v263
  %v574 = vpop.permute.xlu0 %573
  %577 = vset.pattern.permute.xlu0 0
  %578 = vperm.xlu0 %577, %v264
  %v579 = vpop.permute.xlu0 %578
  %582 = vset.pattern.permute.xlu0 0
  %583 = vperm.xlu0 %582, %v265
  %v584 = vpop.permute.xlu0 %583
  %587 = vset.pattern.permute.xlu0 0
  %588 = vperm.xlu0 %587, %v266
  %v589 = vpop.permute.xlu0 %588
  %592 = vset.pattern.permute.xlu0 0
  %593 = vperm.xlu0 %592, %v267
  %v594 = vpop.permute.xlu0 %593
  %597 = vset.pattern.permute.xlu0 0
  %598 = vperm.xlu0 %597, %v268
  %v599 = vpop.permute.xlu0 %598
  %602 = vset.pattern.permute.xlu0 0
  %603 = vperm.xlu0 %602, %v269
  %v604 = vpop.permute.xlu0 %603
  %607 = vset.pattern.permute.xlu0 0
  %608 = vperm.xlu0 %607, %v270
  %v609 = vpop.permute.xlu0 %608
  %612 = vset.pattern.permute.xlu0 0
  %613 = vperm.xlu0 %612, %v271
  %v614 = vpop.permute.xlu0 %613
  %617 = vset.pattern.permute.xlu0 0
  %618 = vperm.xlu0 %617, %v272
  %v619 = vpop.permute.xlu0 %618
  %622 = vset.pattern.permute.xlu0 0
  %623 = vperm.xlu0 %622, %v273
  %v624 = vpop.permute.xlu0 %623
  %627 = vset.pattern.permute.xlu0 0
  %628 = vperm.xlu0 %627, %v274
  %v629 = vpop.permute.xlu0 %628
  %632 = vset.pattern.permute.xlu0 0
  %633 = vperm.xlu0 %632, %v275
  %v634 = vpop.permute.xlu0 %633
  %637 = vset.pattern.permute.xlu0 0
  %638 = vperm.xlu0 %637, %v276
  %v639 = vpop.permute.xlu0 %638
  %642 = vset.pattern.permute.xlu0 0
  %643 = vperm.xlu0 %642, %v277
  %v644 = vpop.permute.xlu0 %643
  %647 = vset.pattern.permute.xlu0 0
  %648 = vperm.xlu0 %647, %v278
  %v649 = vpop.permute.xlu0 %648
  %652 = vset.pattern.permute.xlu0 0
  %653 = vperm.xlu0 %652, %v279
  %v654 = vpop.permute.xlu0 %653
  %657 = vset.pattern.permute.xlu0 0
  %658 = vperm.xlu0 %657, %v280
  %v659 = vpop.permute.xlu0 %658
  %662 = vset.pattern.permute.xlu0 0
  %663 = vperm.xlu0 %662, %v281
  %v664 = vpop.permute.xlu0 %663
  %667 = vset.pattern.permute.xlu0 0
  %668 = vperm.xlu0 %667, %v282
  %v669 = vpop.permute.xlu0 %668
  %672 = vset.pattern.permute.xlu0 0
  %673 = vperm.xlu0 %672, %v283
  %v674 = vpop.permute.xlu0 %673
  %677 = vset.pattern.permute.xlu0 0
  %678 = vperm.xlu0 %677, %v284
  %v679 = vpop.permute.xlu0 %678
  %682 = vset.pattern.permute.xlu0 0
  %683 = vperm.xlu0 %682, %v285
  %v684 = vpop.permute.xlu0 %683
  %687 = vset.pattern.permute.xlu0 0
  %688 = vperm.xlu0 %687, %v286
  %v689 = vpop.permute.xlu0 %688
  %692 = vset.pattern.permute.xlu0 0
  %693 = vperm.xlu0 %692, %v287
  %v694 = vpop.permute.xlu0 %693
  %697 = vset.pattern.permute.xlu0 0
  %698 = vperm.xlu0 %697, %v288
  %v699 = vpop.permute.xlu0 %698
  %702 = vset.pattern.permute.xlu0 0
  %703 = vperm.xlu0 %702, %v289
  %v704 = vpop.permute.xlu0 %703
  %707 = vset.pattern.permute.xlu0 0
  %708 = vperm.xlu0 %707, %v290
  %v709 = vpop.permute.xlu0 %708
  %712 = vset.pattern.permute.xlu0 0
  %713 = vperm.xlu0 %712, %v291
  %v714 = vpop.permute.xlu0 %713
  %717 = vset.pattern.permute.xlu0 0
  %718 = vperm.xlu0 %717, %v292
  %v719 = vpop.permute.xlu0 %718
  %722 = vset.pattern.permute.xlu0 0
  %723 = vperm.xlu0 %722, %v293
  %v724 = vpop.permute.xlu0 %723
  %727 = vset.pattern.permute.xlu0 0
  %728 = vperm.xlu0 %727, %v294
  %v729 = vpop.permute.xlu0 %728
  %732 = vset.pattern.permute.xlu0 0
  %733 = vperm.xlu0 %732, %v295
  %v734 = vpop.permute.xlu0 %733
  %737 = vset.pattern.permute.xlu0 0
  %738 = vperm.xlu0 %737, %v296
  %v739 = vpop.permute.xlu0 %738
  %742 = vset.pattern.permute.xlu0 0
  %743 = vperm.xlu0 %742, %v297
  %v744 = vpop.permute.xlu0 %743
  %747 = vset.pattern.permute.xlu0 0
  %748 = vperm.xlu0 %747, %v298
  %v749 = vpop.permute.xlu0 %748
  %752 = vset.pattern.permute.xlu0 0
  %753 = vperm.xlu0 %752, %v299
  %v754 = vpop.permute.xlu0 %753
  %757 = vset.pattern.permute.xlu0 0
  %758 = vperm.xlu0 %757, %v300
  %v759 = vpop.permute.xlu0 %758
  %762 = vset.pattern.permute.xlu0 0
  %763 = vperm.xlu0 %762, %v301
  %v764 = vpop.permute.xlu0 %763
  %767 = vset.pattern.permute.xlu0 0
  %768 = vperm.xlu0 %767, %v302
  %v769 = vpop.permute.xlu0 %768
  %772 = vset.pattern.permute.xlu0 0
  %773 = vperm.xlu0 %772, %v303
  %v774 = vpop.permute.xlu0 %773
  %777 = vset.pattern.permute.xlu0 0
  %778 = vperm.xlu0 %777, %v304
  %v779 = vpop.permute.xlu0 %778
  %782 = vset.pattern.permute.xlu0 0
  %783 = vperm.xlu0 %782, %v305
  %v784 = vpop.permute.xlu0 %783
  %787 = vset.pattern.permute.xlu0 0
  %788 = vperm.xlu0 %787, %v306
  %v789 = vpop.permute.xlu0 %788
  %792 = vset.pattern.permute.xlu0 0
  %793 = vperm.xlu0 %792, %v307
  %v794 = vpop.permute.xlu0 %793
  %797 = vset.pattern.permute.xlu0 0
  %798 = vperm.xlu0 %797, %v308
  %v799 = vpop.permute.xlu0 %798
  %802 = vset.pattern.permute.xlu0 0
  %803 = vperm.xlu0 %802, %v309
  %v804 = vpop.permute.xlu0 %803
  %807 = vset.pattern.permute.xlu0 0
  %808 = vperm.xlu0 %807, %v310
  %v809 = vpop.permute.xlu0 %808
  %812 = vset.pattern.permute.xlu0 0
  %813 = vperm.xlu0 %812, %v311
  %v814 = vpop.permute.xlu0 %813
  %817 = vset.pattern.permute.xlu0 0
  %818 = vperm.xlu0 %817, %v312
  %v819 = vpop.permute.xlu0 %818
  %822 = vset.pattern.permute.xlu0 0
  %823 = vperm.xlu0 %822, %v313
  %v824 = vpop.permute.xlu0 %823
  %827 = vset.pattern.permute.xlu0 0
  %828 = vperm.xlu0 %827, %v314
  %v829 = vpop.permute.xlu0 %828
  %832 = vset.pattern.permute.xlu0 0
  %833 = vperm.xlu0 %832, %v315
  %v834 = vpop.permute.xlu0 %833
  %837 = vset.pattern.permute.xlu0 0
  %838 = vperm.xlu0 %837, %v316
  %v839 = vpop.permute.xlu0 %838
  %842 = vset.pattern.permute.xlu0 0
  %843 = vperm.xlu0 %842, %v317
  %v844 = vpop.permute.xlu0 %843
  %847 = vset.pattern.permute.xlu0 0
  %848 = vperm.xlu0 %847, %v318
  %v849 = vpop.permute.xlu0 %848
  %852 = vset.pattern.permute.xlu0 0
  %853 = vperm.xlu0 %852, %v319
  %v854 = vpop.permute.xlu0 %853
  %857 = vset.pattern.permute.xlu0 0
  %858 = vperm.xlu0 %857, %v320
  %v859 = vpop.permute.xlu0 %858
  %862 = vset.pattern.permute.xlu0 0
  %863 = vperm.xlu0 %862, %v321
  %v864 = vpop.permute.xlu0 %863
  %867 = vset.pattern.permute.xlu0 0
  %868 = vperm.xlu0 %867, %v322
  %v869 = vpop.permute.xlu0 %868
  %872 = vset.pattern.permute.xlu0 0
  %873 = vperm.xlu0 %872, %v323
  %v874 = vpop.permute.xlu0 %873
  %877 = vset.pattern.permute.xlu0 0
  %878 = vperm.xlu0 %877, %v324
  %v879 = vpop.permute.xlu0 %878
  %882 = vset.pattern.permute.xlu0 0
  %883 = vperm.xlu0 %882, %v325
  %v884 = vpop.permute.xlu0 %883
  %887 = vset.pattern.permute.xlu0 0
  %888 = vperm.xlu0 %887, %v326
  %v889 = vpop.permute.xlu0 %888
  %892 = vset.pattern.permute.xlu0 0
  %893 = vperm.xlu0 %892, %v327
  %v894 = vpop.permute.xlu0 %893
  %897 = vset.pattern.permute.xlu0 0
  %898 = vperm.xlu0 %897, %v328
  %v899 = vpop.permute.xlu0 %898
  %902 = vset.pattern.permute.xlu0 0
  %903 = vperm.xlu0 %902, %v329
  %v904 = vpop.permute.xlu0 %903
  %907 = vset.pattern.permute.xlu0 0
  %908 = vperm.xlu0 %907, %v330
  %v909 = vpop.permute.xlu0 %908
  %912 = vset.pattern.permute.xlu0 0
  %913 = vperm.xlu0 %912, %v331
  %v914 = vpop.permute.xlu0 %913
  %917 = vset.pattern.permute.xlu0 0
  %918 = vperm.xlu0 %917, %v332
  %v919 = vpop.permute.xlu0 %918
  %922 = vset.pattern.permute.xlu0 0
  %923 = vperm.xlu0 %922, %v333
  %v924 = vpop.permute.xlu0 %923
  %927 = vset.pattern.permute.xlu0 0
  %928 = vperm.xlu0 %927, %v334
  %v929 = vpop.permute.xlu0 %928
  %932 = vset.pattern.permute.xlu0 0
  %933 = vperm.xlu0 %932, %v335
  %v934 = vpop.permute.xlu0 %933
  %937 = vset.pattern.permute.xlu0 0
  %938 = vperm.xlu0 %937, %v336
  %v939 = vpop.permute.xlu0 %938
  %942 = vset.pattern.permute.xlu0 0
  %943 = vperm.xlu0 %942, %v337
  %v944 = vpop.permute.xlu0 %943
  %947 = vset.pattern.permute.xlu0 0
  %948 = vperm.xlu0 %947, %v338
  %v949 = vpop.permute.xlu0 %948
  %952 = vset.pattern.permute.xlu0 0
  %953 = vperm.xlu0 %952, %v339
  %v954 = vpop.permute.xlu0 %953
  %957 = vset.pattern.permute.xlu0 0
  %958 = vperm.xlu0 %957, %v340
  %v959 = vpop.permute.xlu0 %958
  %962 = vset.pattern.permute.xlu0 0
  %963 = vperm.xlu0 %962, %v341
  %v964 = vpop.permute.xlu0 %963
  %967 = vset.pattern.permute.xlu0 0
  %968 = vperm.xlu0 %967, %v342
  %v969 = vpop.permute.xlu0 %968
  %972 = vset.pattern.permute.xlu0 0
  %973 = vperm.xlu0 %972, %v343
  %v974 = vpop.permute.xlu0 %973
  %977 = vset.pattern.permute.xlu0 0
  %978 = vperm.xlu0 %977, %v344
  %v979 = vpop.permute.xlu0 %978
  %982 = vset.pattern.permute.xlu0 0
  %983 = vperm.xlu0 %982, %v345
  %v984 = vpop.permute.xlu0 %983
  %987 = vset.pattern.permute.xlu0 0
  %988 = vperm.xlu0 %987, %v346
  %v989 = vpop.permute.xlu0 %988
  %992 = vset.pattern.permute.xlu0 0
  %993 = vperm.xlu0 %992, %v347
  %v994 = vpop.permute.xlu0 %993
  %997 = vset.pattern.permute.xlu0 0
  %998 = vperm.xlu0 %997, %v348
  %v999 = vpop.permute.xlu0 %998
  %1002 = vset.pattern.permute.xlu0 0
  %1003 = vperm.xlu0 %1002, %v349
  %v1004 = vpop.permute.xlu0 %1003
  %1007 = vset.pattern.permute.xlu0 0
  %1008 = vperm.xlu0 %1007, %v350
  %v1009 = vpop.permute.xlu0 %1008
  %1012 = vset.pattern.permute.xlu0 0
  %1013 = vperm.xlu0 %1012, %v351
  %v1014 = vpop.permute.xlu0 %1013
  %1017 = vset.pattern.permute.xlu0 0
  %1018 = vperm.xlu0 %1017, %v352
  %v1019 = vpop.permute.xlu0 %1018
  %1022 = vset.pattern.permute.xlu0 0
  %1023 = vperm.xlu0 %1022, %v353
  %v1024 = vpop.permute.xlu0 %1023
  %1027 = vset.pattern.permute.xlu0 0
  %1028 = vperm.xlu0 %1027, %v354
  %v1029 = vpop.permute.xlu0 %1028
  %1032 = vset.pattern.permute.xlu0 0
  %1033 = vperm.xlu0 %1032, %v355
  %v1034 = vpop.permute.xlu0 %1033
  %1037 = vset.pattern.permute.xlu0 0
  %1038 = vperm.xlu0 %1037, %v356
  %v1039 = vpop.permute.xlu0 %1038
  %1042 = vset.pattern.permute.xlu0 0
  %1043 = vperm.xlu0 %1042, %v357
  %v1044 = vpop.permute.xlu0 %1043
  %1047 = vset.pattern.permute.xlu0 0
  %1048 = vperm.xlu0 %1047, %v358
  %v1049 = vpop.permute.xlu0 %1048
  %1052 = vset.pattern.permute.xlu0 0
  %1053 = vperm.xlu0 %1052, %v359
  %v1054 = vpop.permute.xlu0 %1053
  %1057 = vset.pattern.permute.xlu0 0
  %1058 = vperm.xlu0 %1057, %v360
  %v1059 = vpop.permute.xlu0 %1058
  %1062 = vset.pattern.permute.xlu0 0
  %1063 = vperm.xlu0 %1062, %v361
  %v1064 = vpop.permute.xlu0 %1063
  %1067 = vset.pattern.permute.xlu0 0
  %1068 = vperm.xlu0 %1067, %v362
  %v1069 = vpop.permute.xlu0 %1068
  %1072 = vset.pattern.permute.xlu0 0
  %1073 = vperm.xlu0 %1072, %v363
  %v1074 = vpop.permute.xlu0 %1073
  %1077 = vset.pattern.permute.xlu0 0
  %1078 = vperm.xlu0 %1077, %v364
  %v1079 = vpop.permute.xlu0 %1078
  %1082 = vset.pattern.permute.xlu0 0
  %1083 = vperm.xlu0 %1082, %v365
  %v1084 = vpop.permute.xlu0 %1083
  %1087 = vset.pattern.permute.xlu0 0
  %1088 = vperm.xlu0 %1087, %v366
  %v1089 = vpop.permute.xlu0 %1088
  %1092 = vset.pattern.permute.xlu0 0
  %1093 = vperm.xlu0 %1092, %v367
  %v1094 = vpop.permute.xlu0 %1093
  %1097 = vset.pattern.permute.xlu0 0
  %1098 = vperm.xlu0 %1097, %v368
  %v1099 = vpop.permute.xlu0 %1098
  %1102 = vset.pattern.permute.xlu0 0
  %1103 = vperm.xlu0 %1102, %v369
  %v1104 = vpop.permute.xlu0 %1103
  %1107 = vset.pattern.permute.xlu0 0
  %1108 = vperm.xlu0 %1107, %v370
  %v1109 = vpop.permute.xlu0 %1108
  %1112 = vset.pattern.permute.xlu0 0
  %1113 = vperm.xlu0 %1112, %v371
  %v1114 = vpop.permute.xlu0 %1113
  %1117 = vset.pattern.permute.xlu0 0
  %1118 = vperm.xlu0 %1117, %v372
  %v1119 = vpop.permute.xlu0 %1118
  %1122 = vset.pattern.permute.xlu0 0
  %1123 = vperm.xlu0 %1122, %v373
  %v1124 = vpop.permute.xlu0 %1123
  %1127 = vset.pattern.permute.xlu0 0
  %1128 = vperm.xlu0 %1127, %v374
  %v1129 = vpop.permute.xlu0 %1128
  %1132 = vset.pattern.permute.xlu0 0
  %1133 = vperm.xlu0 %1132, %v375
  %v1134 = vpop.permute.xlu0 %1133
  %1137 = vset.pattern.permute.xlu0 0
  %1138 = vperm.xlu0 %1137, %v376
  %v1139 = vpop.permute.xlu0 %1138
  %1142 = vset.pattern.permute.xlu0 0
  %1143 = vperm.xlu0 %1142, %v377
  %v1144 = vpop.permute.xlu0 %1143
  %1147 = vset.pattern.permute.xlu0 0
  %1148 = vperm.xlu0 %1147, %v378
  %v1149 = vpop.permute.xlu0 %1148
  %1152 = vset.pattern.permute.xlu0 0
  %1153 = vperm.xlu0 %1152, %v379
  %v1154 = vpop.permute.xlu0 %1153
  %1157 = vset.pattern.permute.xlu0 0
  %1158 = vperm.xlu0 %1157, %v380
  %v1159 = vpop.permute.xlu0 %1158
  %1162 = vset.pattern.permute.xlu0 0
  %1163 = vperm.xlu0 %1162, %v381
  %v1164 = vpop.permute.xlu0 %1163
  %1167 = vset.pattern.permute.xlu0 0
  %1168 = vperm.xlu0 %1167, %v382
  %v1169 = vpop.permute.xlu0 %1168
  %1172 = vset.pattern.permute.xlu0 0
  %1173 = vperm.xlu0 %1172, %v383
  %v1174 = vpop.permute.xlu0 %1173
  %1177 = vset.pattern.permute.xlu0 0
  %1178 = vperm.xlu0 %1177, %v384
  %v1179 = vpop.permute.xlu0 %1178
  %1182 = vset.pattern.permute.xlu0 0
  %1183 = vperm.xlu0 %1182, %v385
  %v1184 = vpop.permute.xlu0 %1183
  %1187 = vset.pattern.permute.xlu0 0
  %1188 = vperm.xlu0 %1187, %v386
  %v1189 = vpop.permute.xlu0 %1188
  %1192 = vset.pattern.permute.xlu0 0
  %1193 = vperm.xlu0 %1192, %v387
  %v1194 = vpop.permute.xlu0 %1193
  %1197 = vset.pattern.permute.xlu0 0
  %1198 = vperm.xlu0 %1197, %v388
  %v1199 = vpop.permute.xlu0 %1198
  %1202 = vset.pattern.permute.xlu0 0
  %1203 = vperm.xlu0 %1202, %v389
  %v1204 = vpop.permute.xlu0 %1203
  %1207 = vset.pattern.permute.xlu0 0
  %1208 = vperm.xlu0 %1207, %v390
  %v1209 = vpop.permute.xlu0 %1208
  %1212 = vset.pattern.permute.xlu0 0
  %1213 = vperm.xlu0 %1212, %v391
  %v1214 = vpop.permute.xlu0 %1213
  %1217 = vset.pattern.permute.xlu0 0
  %1218 = vperm.xlu0 %1217, %v392
  %v1219 = vpop.permute.xlu0 %1218
  %1222 = vset.pattern.permute.xlu0 0
  %1223 = vperm.xlu0 %1222, %v393
  %v1224 = vpop.permute.xlu0 %1223
  %1227 = vset.pattern.permute.xlu0 0
  %1228 = vperm.xlu0 %1227, %v394
  %v1229 = vpop.permute.xlu0 %1228
  %1232 = vset.pattern.permute.xlu0 0
  %1233 = vperm.xlu0 %1232, %v395
  %v1234 = vpop.permute.xlu0 %1233
  %1237 = vset.pattern.permute.xlu0 0
  %1238 = vperm.xlu0 %1237, %v396
  %v1239 = vpop.permute.xlu0 %1238
  %1242 = vset.pattern.permute.xlu0 0
  %1243 = vperm.xlu0 %1242, %v397
  %v1244 = vpop.permute.xlu0 %1243
  %1247 = vset.pattern.permute.xlu0 0
  %1248 = vperm.xlu0 %1247, %v398
  %v1249 = vpop.permute.xlu0 %1248
  %1252 = vset.pattern.permute.xlu0 0
  %1253 = vperm.xlu0 %1252, %v399
  %v1254 = vpop.permute.xlu0 %1253
  %1257 = vset.pattern.permute.xlu0 0
  %1258 = vperm.xlu0 %1257, %v400
  %v1259 = vpop.permute.xlu0 %1258
  %1262 = vset.pattern.permute.xlu0 0
  %1263 = vperm.xlu0 %1262, %v401
  %v1264 = vpop.permute.xlu0 %1263
  %1267 = vset.pattern.permute.xlu0 0
  %1268 = vperm.xlu0 %1267, %v402
  %v1269 = vpop.permute.xlu0 %1268
  %1272 = vset.pattern.permute.xlu0 0
  %1273 = vperm.xlu0 %1272, %v403
  %v1274 = vpop.permute.xlu0 %1273
  %1277 = vset.pattern.permute.xlu0 0
  %1278 = vperm.xlu0 %1277, %v404
  %v1279 = vpop.permute.xlu0 %1278
  %1282 = vset.pattern.permute.xlu0 0
  %1283 = vperm.xlu0 %1282, %v405
  %v1284 = vpop.permute.xlu0 %1283
  %1287 = vset.pattern.permute.xlu0 0
  %1288 = vperm.xlu0 %1287, %v406
  %v1289 = vpop.permute.xlu0 %1288
  %1292 = vset.pattern.permute.xlu0 0
  %1293 = vperm.xlu0 %1292, %v407
  %v1294 = vpop.permute.xlu0 %1293
  %1297 = vset.pattern.permute.xlu0 0
  %1298 = vperm.xlu0 %1297, %v408
  %v1299 = vpop.permute.xlu0 %1298
  %1302 = vset.pattern.permute.xlu0 0
  %1303 = vperm.xlu0 %1302, %v409
  %v1304 = vpop.permute.xlu0 %1303
  %1307 = vset.pattern.permute.xlu0 0
  %1308 = vperm.xlu0 %1307, %v410
  %v1309 = vpop.permute.xlu0 %1308
  %1312 = vset.pattern.permute.xlu0 0
  %1313 = vperm.xlu0 %1312, %v411
  %v1314 = vpop.permute.xlu0 %1313
  %1317 = vset.pattern.permute.xlu0 0
  %1318 = vperm.xlu0 %1317, %v412
  %v1319 = vpop.permute.xlu0 %1318
  %1322 = vset.pattern.permute.xlu0 0
  %1323 = vperm.xlu0 %1322, %v413
  %v1324 = vpop.permute.xlu0 %1323
  %1327 = vset.pattern.permute.xlu0 0
  %1328 = vperm.xlu0 %1327, %v414
  %v1329 = vpop.permute.xlu0 %1328
  %1332 = vset.pattern.permute.xlu0 0
  %1333 = vperm.xlu0 %1332, %v415
  %v1334 = vpop.permute.xlu0 %1333
  %1337 = vset.pattern.permute.xlu0 0
  %1338 = vperm.xlu0 %1337, %v416
  %v1339 = vpop.permute.xlu0 %1338
  %1342 = vset.pattern.permute.xlu0 0
  %1343 = vperm.xlu0 %1342, %v417
  %v1344 = vpop.permute.xlu0 %1343
  %1347 = vset.pattern.permute.xlu0 0
  %1348 = vperm.xlu0 %1347, %v418
  %v1349 = vpop.permute.xlu0 %1348
  %1352 = vset.pattern.permute.xlu0 0
  %1353 = vperm.xlu0 %1352, %v419
  %v1354 = vpop.permute.xlu0 %1353
  %1357 = vset.pattern.permute.xlu0 0
  %1358 = vperm.xlu0 %1357, %v420
  %v1359 = vpop.permute.xlu0 %1358
  %1362 = vset.pattern.permute.xlu0 0
  %1363 = vperm.xlu0 %1362, %v421
  %v1364 = vpop.permute.xlu0 %1363
  %1367 = vset.pattern.permute.xlu0 0
  %1368 = vperm.xlu0 %1367, %v422
  %v1369 = vpop.permute.xlu0 %1368
  %1372 = vset.pattern.permute.xlu0 0
  %1373 = vperm.xlu0 %1372, %v423
  %v1374 = vpop.permute.xlu0 %1373
  %1377 = vset.pattern.permute.xlu0 0
  %1378 = vperm.xlu0 %1377, %v424
  %v1379 = vpop.permute.xlu0 %1378
  %1382 = vset.pattern.permute.xlu0 0
  %1383 = vperm.xlu0 %1382, %v425
  %v1384 = vpop.permute.xlu0 %1383
  %1387 = vset.pattern.permute.xlu0 0
  %1388 = vperm.xlu0 %1387, %v426
  %v1389 = vpop.permute.xlu0 %1388
  %1392 = vset.pattern.permute.xlu0 0
  %1393 = vperm.xlu0 %1392, %v427
  %v1394 = vpop.permute.xlu0 %1393
  %1397 = vset.pattern.permute.xlu0 0
  %1398 = vperm.xlu0 %1397, %v428
  %v1399 = vpop.permute.xlu0 %1398
  %1402 = vset.pattern.permute.xlu0 0
  %1403 = vperm.xlu0 %1402, %v429
  %v1404 = vpop.permute.xlu0 %1403
  %1407 = vset.pattern.permute.xlu0 0
  %1408 = vperm.xlu0 %1407, %v430
  %v1409 = vpop.permute.xlu0 %1408
  %1412 = vset.pattern.permute.xlu0 0
  %1413 = vperm.xlu0 %1412, %v431
  %v1414 = vpop.permute.xlu0 %1413
  %1417 = vset.pattern.permute.xlu0 0
  %1418 = vperm.xlu0 %1417, %v432
  %v1419 = vpop.permute.xlu0 %1418
  %1422 = vset.pattern.permute.xlu0 0
  %1423 = vperm.xlu0 %1422, %v433
  %v1424 = vpop.permute.xlu0 %1423
  %1427 = vset.pattern.permute.xlu0 0
  %1428 = vperm.xlu0 %1427, %v434
  %v1429 = vpop.permute.xlu0 %1428
  %1432 = vset.pattern.permute.xlu0 0
  %1433 = vperm.xlu0 %1432, %v435
  %v1434 = vpop.permute.xlu0 %1433
  %1437 = vset.pattern.permute.xlu0 0
  %1438 = vperm.xlu0 %1437, %v436
  %v1439 = vpop.permute.xlu0 %1438
  %1442 = vset.pattern.permute.xlu0 0
  %1443 = vperm.xlu0 %1442, %v437
  %v1444 = vpop.permute.xlu0 %1443
  %1447 = vset.pattern.permute.xlu0 0
  %1448 = vperm.xlu0 %1447, %v438
  %v1449 = vpop.permute.xlu0 %1448
  %1452 = vset.pattern.permute.xlu0 0
  %1453 = vperm.xlu0 %1452, %v439
  %v1454 = vpop.permute.xlu0 %1453
  %1457 = vset.pattern.permute.xlu0 0
  %1458 = vperm.xlu0 %1457, %v440
  %v1459 = vpop.permute.xlu0 %1458
  %1462 = vset.pattern.permute.xlu0 0
  %1463 = vperm.xlu0 %1462, %v441
  %v1464 = vpop.permute.xlu0 %1463
  %1467 = vset.pattern.permute.xlu0 0
  %1468 = vperm.xlu0 %1467, %v442
  %v1469 = vpop.permute.xlu0 %1468
  %1472 = vset.pattern.permute.xlu0 0
  %1473 = vperm.xlu0 %1472, %v443
  %v1474 = vpop.permute.xlu0 %1473
  %1477 = vset.pattern.permute.xlu0 0
  %1478 = vperm.xlu0 %1477, %v444
  %v1479 = vpop.permute.xlu0 %1478
  %1482 = vset.pattern.permute.xlu0 0
  %1483 = vperm.xlu0 %1482, %v445
  %v1484 = vpop.permute.xlu0 %1483
  %1487 = vset.pattern.permute.xlu0 0
  %1488 = vperm.xlu0 %1487, %v446
  %v1489 = vpop.permute.xlu0 %1488
  %1492 = vset.pattern.permute.xlu0 0
  %1493 = vperm.xlu0 %1492, %v447
  %v1494 = vpop.permute.xlu0 %1493
  %1497 = vset.pattern.permute.xlu0 0
  %1498 = vperm.xlu0 %1497, %v448
  %v1499 = vpop.permute.xlu0 %1498
  %1502 = vset.pattern.permute.xlu0 0
  %1503 = vperm.xlu0 %1502, %v449
  %v1504 = vpop.permute.xlu0 %1503
  %1507 = vset.pattern.permute.xlu0 0
  %1508 = vperm.xlu0 %1507, %v450
  %v1509 = vpop.permute.xlu0 %1508
  %1512 = vset.pattern.permute.xlu0 0
  %1513 = vperm.xlu0 %1512, %v451
  %v1514 = vpop.permute.xlu0 %1513
  %1517 = vset.pattern.permute.xlu0 0
  %1518 = vperm.xlu0 %1517, %v452
  %v1519 = vpop.permute.xlu0 %1518
  %1522 = vset.pattern.permute.xlu0 0
  %1523 = vperm.xlu0 %1522, %v453
  %v1524 = vpop.permute.xlu0 %1523
  %1527 = vset.pattern.permute.xlu0 0
  %1528 = vperm.xlu0 %1527, %v454
  %v1529 = vpop.permute.xlu0 %1528
  %1532 = vset.pattern.permute.xlu0 0
  %1533 = vperm.xlu0 %1532, %v455
  %v1534 = vpop.permute.xlu0 %1533
  %1537 = vset.pattern.permute.xlu0 0
  %1538 = vperm.xlu0 %1537, %v456
  %v1539 = vpop.permute.xlu0 %1538
  %1542 = vset.pattern.permute.xlu0 0
  %1543 = vperm.xlu0 %1542, %v457
  %v1544 = vpop.permute.xlu0 %1543
  %1547 = vset.pattern.permute.xlu0 0
  %1548 = vperm.xlu0 %1547, %v458
  %v1549 = vpop.permute.xlu0 %1548
  %1552 = vset.pattern.permute.xlu0 0
  %1553 = vperm.xlu0 %1552, %v459
  %v1554 = vpop.permute.xlu0 %1553
  %1557 = vset.pattern.permute.xlu0 0
  %1558 = vperm.xlu0 %1557, %v460
  %v1559 = vpop.permute.xlu0 %1558
  %1562 = vset.pattern.permute.xlu0 0
  %1563 = vperm.xlu0 %1562, %v461
  %v1564 = vpop.permute.xlu0 %1563
  %1567 = vset.pattern.permute.xlu0 0
  %1568 = vperm.xlu0 %1567, %v462
  %v1569 = vpop.permute.xlu0 %1568
  %1572 = vset.pattern.permute.xlu0 0
  %1573 = vperm.xlu0 %1572, %v463
  %v1574 = vpop.permute.xlu0 %1573
  %1577 = vset.pattern.permute.xlu0 0
  %1578 = vperm.xlu0 %1577, %v464
  %v1579 = vpop.permute.xlu0 %1578
  %1582 = vset.pattern.permute.xlu0 0
  %1583 = vperm.xlu0 %1582, %v465
  %v1584 = vpop.permute.xlu0 %1583
  %1587 = vset.pattern.permute.xlu0 0
  %1588 = vperm.xlu0 %1587, %v466
  %v1589 = vpop.permute.xlu0 %1588
  %1592 = vset.pattern.permute.xlu0 0
  %1593 = vperm.xlu0 %1592, %v467
  %v1594 = vpop.permute.xlu0 %1593
  %1597 = vset.pattern.permute.xlu0 0
  %1598 = vperm.xlu0 %1597, %v468
  %v1599 = vpop.permute.xlu0 %1598
  %1602 = vset.pattern.permute.xlu0 0
  %1603 = vperm.xlu0 %1602, %v469
  %v1604 = vpop.permute.xlu0 %1603
  %1607 = vset.pattern.permute.xlu0 0
  %1608 = vperm.xlu0 %1607, %v470
  %v1609 = vpop.permute.xlu0 %1608
  %v1611 = vmul.f32 %v15, %v474
  %v1612 = vmul.f32 %v16, %v479
  %v1613 = vmul.f32 %v17, %v484
  %v1614 = vmul.f32 %v18, %v489
  %v1615 = vmul.f32 %v19, %v494
  %v1616 = vmul.f32 %v20, %v499
  %v1617 = vmul.f32 %v21, %v504
  %v1618 = vmul.f32 %v22, %v509
  %v1619 = vmul.f32 %v23, %v514
  %v1620 = vmul.f32 %v24, %v519
  %v1621 = vmul.f32 %v25, %v524
  %v1622 = vmul.f32 %v26, %v529
  %v1623 = vmul.f32 %v27, %v534
  %v1624 = vmul.f32 %v28, %v539
  %v1625 = vmul.f32 %v29, %v544
  %v1626 = vmul.f32 %v30, %v549
  %v1627 = vmul.f32 %v31, %v554
  %v1628 = vmul.f32 %v32, %v559
  %v1629 = vmul.f32 %v33, %v564
  %v1630 = vmul.f32 %v34, %v569
  %v1631 = vmul.f32 %v35, %v574
  %v1632 = vmul.f32 %v36, %v579
  %v1633 = vmul.f32 %v37, %v584
  %v1634 = vmul.f32 %v38, %v589
  %v1635 = vmul.f32 %v39, %v594
  %v1636 = vmul.f32 %v40, %v599
  %v1637 = vmul.f32 %v41, %v604
  %v1638 = vmul.f32 %v42, %v609
  %v1639 = vmul.f32 %v43, %v614
  %v1640 = vmul.f32 %v44, %v619
  %v1641 = vmul.f32 %v45, %v624
  %v1642 = vmul.f32 %v46, %v629
  %v1643 = vmul.f32 %v47, %v634
  %v1644 = vmul.f32 %v48, %v639
  %v1645 = vmul.f32 %v49, %v644
  %v1646 = vmul.f32 %v50, %v649
  %v1647 = vmul.f32 %v51, %v654
  %v1648 = vmul.f32 %v52, %v659
  %v1649 = vmul.f32 %v53, %v664
  %v1650 = vmul.f32 %v54, %v669
  %v1651 = vmul.f32 %v55, %v674
  %v1652 = vmul.f32 %v56, %v679
  %v1653 = vmul.f32 %v57, %v684
  %v1654 = vmul.f32 %v58, %v689
  %v1655 = vmul.f32 %v59, %v694
  %v1656 = vmul.f32 %v60, %v699
  %v1657 = vmul.f32 %v61, %v704
  %v1658 = vmul.f32 %v62, %v709
  %v1659 = vmul.f32 %v63, %v714
  %v1660 = vmul.f32 %v64, %v719
  %v1661 = vmul.f32 %v65, %v724
  %v1662 = vmul.f32 %v66, %v729
  %v1663 = vmul.f32 %v67, %v734
  %v1664 = vmul.f32 %v68, %v739
  %v1665 = vmul.f32 %v69, %v744
  %v1666 = vmul.f32 %v70, %v749
  %v1667 = vmul.f32 %v71, %v754
  %v1668 = vmul.f32 %v72, %v759
  %v1669 = vmul.f32 %v73, %v764
  %v1670 = vmul.f32 %v74, %v769
  %v1671 = vmul.f32 %v75, %v774
  %v1672 = vmul.f32 %v76, %v779
  %v1673 = vmul.f32 %v77, %v784
  %v1674 = vmul.f32 %v78, %v789
  %v1675 = vmul.f32 %v79, %v794
  %v1676 = vmul.f32 %v80, %v799
  %v1677 = vmul.f32 %v81, %v804
  %v1678 = vmul.f32 %v82, %v809
  %v1679 = vmul.f32 %v83, %v814
  %v1680 = vmul.f32 %v84, %v819
  %v1681 = vmul.f32 %v85, %v824
  %v1682 = vmul.f32 %v86, %v829
  %v1683 = vmul.f32 %v87, %v834
  %v1684 = vmul.f32 %v88, %v839
  %v1685 = vmul.f32 %v89, %v844
  %v1686 = vmul.f32 %v90, %v849
  %v1687 = vmul.f32 %v91, %v854
  %v1688 = vmul.f32 %v92, %v859
  %v1689 = vmul.f32 %v93, %v864
  %v1690 = vmul.f32 %v94, %v869
  %v1691 = vmul.f32 %v95, %v874
  %v1692 = vmul.f32 %v96, %v879
  %v1693 = vmul.f32 %v97, %v884
  %v1694 = vmul.f32 %v98, %v889
  %v1695 = vmul.f32 %v99, %v894
  %v1696 = vmul.f32 %v100, %v899
  %v1697 = vmul.f32 %v101, %v904
  %v1698 = vmul.f32 %v102, %v909
  %v1699 = vmul.f32 %v103, %v914
  %v1700 = vmul.f32 %v104, %v919
  %v1701 = vmul.f32 %v105, %v924
  %v1702 = vmul.f32 %v106, %v929
  %v1703 = vmul.f32 %v107, %v934
  %v1704 = vmul.f32 %v108, %v939
  %v1705 = vmul.f32 %v109, %v944
  %v1706 = vmul.f32 %v110, %v949
  %v1707 = vmul.f32 %v111, %v954
  %v1708 = vmul.f32 %v112, %v959
  %v1709 = vmul.f32 %v113, %v964
  %v1710 = vmul.f32 %v114, %v969
  %v1711 = vmul.f32 %v115, %v974
  %v1712 = vmul.f32 %v116, %v979
  %v1713 = vmul.f32 %v117, %v984
  %v1714 = vmul.f32 %v118, %v989
  %v1715 = vmul.f32 %v119, %v994
  %v1716 = vmul.f32 %v120, %v999
  %v1717 = vmul.f32 %v121, %v1004
  %v1718 = vmul.f32 %v122, %v1009
  %v1719 = vmul.f32 %v123, %v1014
  %v1720 = vmul.f32 %v124, %v1019
  %v1721 = vmul.f32 %v125, %v1024
  %v1722 = vmul.f32 %v126, %v1029
  %v1723 = vmul.f32 %v127, %v1034
  %v1724 = vmul.f32 %v128, %v1039
  %v1725 = vmul.f32 %v129, %v1044
  %v1726 = vmul.f32 %v130, %v1049
  %v1727 = vmul.f32 %v131, %v1054
  %v1728 = vmul.f32 %v132, %v1059
  %v1729 = vmul.f32 %v133, %v1064
  %v1730 = vmul.f32 %v134, %v1069
  %v1731 = vmul.f32 %v135, %v1074
  %v1732 = vmul.f32 %v136, %v1079
  %v1733 = vmul.f32 %v137, %v1084
  %v1734 = vmul.f32 %v138, %v1089
  %v1735 = vmul.f32 %v139, %v1094
  %v1736 = vmul.f32 %v140, %v1099
  %v1737 = vmul.f32 %v141, %v1104
  %v1738 = vmul.f32 %v142, %v1109
  %v1739 = vmul.f32 %v143, %v1114
  %v1740 = vmul.f32 %v144, %v1119
  %v1741 = vmul.f32 %v145, %v1124
  %v1742 = vmul.f32 %v146, %v1129
  %v1743 = vmul.f32 %v147, %v1134
  %v1744 = vmul.f32 %v148, %v1139
  %v1745 = vmul.f32 %v149, %v1144
  %v1746 = vmul.f32 %v150, %v1149
  %v1747 = vmul.f32 %v151, %v1154
  %v1748 = vmul.f32 %v152, %v1159
  %v1749 = vmul.f32 %v153, %v1164
  %v1750 = vmul.f32 %v154, %v1169
  %v1751 = vmul.f32 %v155, %v1174
  %v1752 = vmul.f32 %v156, %v1179
  %v1753 = vmul.f32 %v157, %v1184
  %v1754 = vmul.f32 %v158, %v1189
  %v1755 = vmul.f32 %v159, %v1194
  %v1756 = vmul.f32 %v160, %v1199
  %v1757 = vmul.f32 %v161, %v1204
  %v1758 = vmul.f32 %v162, %v1209
  %v1759 = vmul.f32 %v163, %v1214
  %v1760 = vmul.f32 %v164, %v1219
  %v1761 = vmul.f32 %v165, %v1224
  %v1762 = vmul.f32 %v166, %v1229
  %v1763 = vmul.f32 %v167, %v1234
  %v1764 = vmul.f32 %v168, %v1239
  %v1765 = vmul.f32 %v169, %v1244
  %v1766 = vmul.f32 %v170, %v1249
  %v1767 = vmul.f32 %v171, %v1254
  %v1768 = vmul.f32 %v172, %v1259
  %v1769 = vmul.f32 %v173, %v1264
  %v1770 = vmul.f32 %v174, %v1269
  %v1771 = vmul.f32 %v175, %v1274
  %v1772 = vmul.f32 %v176, %v1279
  %v1773 = vmul.f32 %v177, %v1284
  %v1774 = vmul.f32 %v178, %v1289
  %v1775 = vmul.f32 %v179, %v1294
  %v1776 = vmul.f32 %v180, %v1299
  %v1777 = vmul.f32 %v181, %v1304
  %v1778 = vmul.f32 %v182, %v1309
  %v1779 = vmul.f32 %v183, %v1314
  %v1780 = vmul.f32 %v184, %v1319
  %v1781 = vmul.f32 %v185, %v1324
  %v1782 = vmul.f32 %v186, %v1329
  %v1783 = vmul.f32 %v187, %v1334
  %v1784 = vmul.f32 %v188, %v1339
  %v1785 = vmul.f32 %v189, %v1344
  %v1786 = vmul.f32 %v190, %v1349
  %v1787 = vmul.f32 %v191, %v1354
  %v1788 = vmul.f32 %v192, %v1359
  %v1789 = vmul.f32 %v193, %v1364
  %v1790 = vmul.f32 %v194, %v1369
  %v1791 = vmul.f32 %v195, %v1374
  %v1792 = vmul.f32 %v196, %v1379
  %v1793 = vmul.f32 %v197, %v1384
  %v1794 = vmul.f32 %v198, %v1389
  %v1795 = vmul.f32 %v199, %v1394
  %v1796 = vmul.f32 %v200, %v1399
  %v1797 = vmul.f32 %v201, %v1404
  %v1798 = vmul.f32 %v202, %v1409
  %v1799 = vmul.f32 %v203, %v1414
  %v1800 = vmul.f32 %v204, %v1419
  %v1801 = vmul.f32 %v205, %v1424
  %v1802 = vmul.f32 %v206, %v1429
  %v1803 = vmul.f32 %v207, %v1434
  %v1804 = vmul.f32 %v208, %v1439
  %v1805 = vmul.f32 %v209, %v1444
  %v1806 = vmul.f32 %v210, %v1449
  %v1807 = vmul.f32 %v211, %v1454
  %v1808 = vmul.f32 %v212, %v1459
  %v1809 = vmul.f32 %v213, %v1464
  %v1810 = vmul.f32 %v214, %v1469
  %v1811 = vmul.f32 %v215, %v1474
  %v1812 = vmul.f32 %v216, %v1479
  %v1813 = vmul.f32 %v217, %v1484
  %v1814 = vmul.f32 %v218, %v1489
  %v1815 = vmul.f32 %v219, %v1494
  %v1816 = vmul.f32 %v220, %v1499
  %v1817 = vmul.f32 %v221, %v1504
  %v1818 = vmul.f32 %v222, %v1509
  %v1819 = vmul.f32 %v223, %v1514
  %v1820 = vmul.f32 %v224, %v1519
  %v1821 = vmul.f32 %v225, %v1524
  %v1822 = vmul.f32 %v226, %v1529
  %v1823 = vmul.f32 %v227, %v1534
  %v1824 = vmul.f32 %v228, %v1539
  %v1825 = vmul.f32 %v229, %v1544
  %v1826 = vmul.f32 %v230, %v1549
  %v1827 = vmul.f32 %v231, %v1554
  %v1828 = vmul.f32 %v232, %v1559
  %v1829 = vmul.f32 %v233, %v1564
  %v1830 = vmul.f32 %v234, %v1569
  %v1831 = vmul.f32 %v235, %v1574
  %v1832 = vmul.f32 %v236, %v1579
  %v1833 = vmul.f32 %v237, %v1584
  %v1834 = vmul.f32 %v238, %v1589
  %v1835 = vmul.f32 %v239, %v1594
  %v1836 = vmul.f32 %v240, %v1599
  %v1837 = vmul.f32 %v241, %v1604
  %v1838 = vmul.f32 %v242, %v1609
  %v1839 = vpack.c.bf16 %v1612, %v1611
  %v1840 = vpack.c.bf16 %v1614, %v1613
  %v1841 = vpack.c.bf16 %v1616, %v1615
  %v1842 = vpack.c.bf16 %v1618, %v1617
  %v1843 = vpack.c.bf16 %v1620, %v1619
  %v1844 = vpack.c.bf16 %v1622, %v1621
  %v1845 = vpack.c.bf16 %v1624, %v1623
  %v1846 = vpack.c.bf16 %v1626, %v1625
  %v1847 = vpack.c.bf16 %v1628, %v1627
  %v1848 = vpack.c.bf16 %v1630, %v1629
  %v1849 = vpack.c.bf16 %v1632, %v1631
  %v1850 = vpack.c.bf16 %v1634, %v1633
  %v1851 = vpack.c.bf16 %v1636, %v1635
  %v1852 = vpack.c.bf16 %v1638, %v1637
  %v1853 = vpack.c.bf16 %v1640, %v1639
  %v1854 = vpack.c.bf16 %v1642, %v1641
  %v1855 = vpack.c.bf16 %v1644, %v1643
  %v1856 = vpack.c.bf16 %v1646, %v1645
  %v1857 = vpack.c.bf16 %v1648, %v1647
  %v1858 = vpack.c.bf16 %v1650, %v1649
  %v1859 = vpack.c.bf16 %v1652, %v1651
  %v1860 = vpack.c.bf16 %v1654, %v1653
  %v1861 = vpack.c.bf16 %v1656, %v1655
  %v1862 = vpack.c.bf16 %v1658, %v1657
  %v1863 = vpack.c.bf16 %v1660, %v1659
  %v1864 = vpack.c.bf16 %v1662, %v1661
  %v1865 = vpack.c.bf16 %v1664, %v1663
  %v1866 = vpack.c.bf16 %v1666, %v1665
  %v1867 = vpack.c.bf16 %v1668, %v1667
  %v1868 = vpack.c.bf16 %v1670, %v1669
  %v1869 = vpack.c.bf16 %v1672, %v1671
  %v1870 = vpack.c.bf16 %v1674, %v1673
  %v1871 = vpack.c.bf16 %v1676, %v1675
  %v1872 = vpack.c.bf16 %v1678, %v1677
  %v1873 = vpack.c.bf16 %v1680, %v1679
  %v1874 = vpack.c.bf16 %v1682, %v1681
  %v1875 = vpack.c.bf16 %v1684, %v1683
  %v1876 = vpack.c.bf16 %v1686, %v1685
  %v1877 = vpack.c.bf16 %v1688, %v1687
  %v1878 = vpack.c.bf16 %v1690, %v1689
  %v1879 = vpack.c.bf16 %v1692, %v1691
  %v1880 = vpack.c.bf16 %v1694, %v1693
  %v1881 = vpack.c.bf16 %v1696, %v1695
  %v1882 = vpack.c.bf16 %v1698, %v1697
  %v1883 = vpack.c.bf16 %v1700, %v1699
  %v1884 = vpack.c.bf16 %v1702, %v1701
  %v1885 = vpack.c.bf16 %v1704, %v1703
  %v1886 = vpack.c.bf16 %v1706, %v1705
  %v1887 = vpack.c.bf16 %v1708, %v1707
  %v1888 = vpack.c.bf16 %v1710, %v1709
  %v1889 = vpack.c.bf16 %v1712, %v1711
  %v1890 = vpack.c.bf16 %v1714, %v1713
  %v1891 = vpack.c.bf16 %v1716, %v1715
  %v1892 = vpack.c.bf16 %v1718, %v1717
  %v1893 = vpack.c.bf16 %v1720, %v1719
  %v1894 = vpack.c.bf16 %v1722, %v1721
  %v1895 = vpack.c.bf16 %v1724, %v1723
  %v1896 = vpack.c.bf16 %v1726, %v1725
  %v1897 = vpack.c.bf16 %v1728, %v1727
  %v1898 = vpack.c.bf16 %v1730, %v1729
  %v1899 = vpack.c.bf16 %v1732, %v1731
  %v1900 = vpack.c.bf16 %v1734, %v1733
  %v1901 = vpack.c.bf16 %v1736, %v1735
  %v1902 = vpack.c.bf16 %v1738, %v1737
  %v1903 = vpack.c.bf16 %v1740, %v1739
  %v1904 = vpack.c.bf16 %v1742, %v1741
  %v1905 = vpack.c.bf16 %v1744, %v1743
  %v1906 = vpack.c.bf16 %v1746, %v1745
  %v1907 = vpack.c.bf16 %v1748, %v1747
  %v1908 = vpack.c.bf16 %v1750, %v1749
  %v1909 = vpack.c.bf16 %v1752, %v1751
  %v1910 = vpack.c.bf16 %v1754, %v1753
  %v1911 = vpack.c.bf16 %v1756, %v1755
  %v1912 = vpack.c.bf16 %v1758, %v1757
  %v1913 = vpack.c.bf16 %v1760, %v1759
  %v1914 = vpack.c.bf16 %v1762, %v1761
  %v1915 = vpack.c.bf16 %v1764, %v1763
  %v1916 = vpack.c.bf16 %v1766, %v1765
  %v1917 = vpack.c.bf16 %v1768, %v1767
  %v1918 = vpack.c.bf16 %v1770, %v1769
  %v1919 = vpack.c.bf16 %v1772, %v1771
  %v1920 = vpack.c.bf16 %v1774, %v1773
  %v1921 = vpack.c.bf16 %v1776, %v1775
  %v1922 = vpack.c.bf16 %v1778, %v1777
  %v1923 = vpack.c.bf16 %v1780, %v1779
  %v1924 = vpack.c.bf16 %v1782, %v1781
  %v1925 = vpack.c.bf16 %v1784, %v1783
  %v1926 = vpack.c.bf16 %v1786, %v1785
  %v1927 = vpack.c.bf16 %v1788, %v1787
  %v1928 = vpack.c.bf16 %v1790, %v1789
  %v1929 = vpack.c.bf16 %v1792, %v1791
  %v1930 = vpack.c.bf16 %v1794, %v1793
  %v1931 = vpack.c.bf16 %v1796, %v1795
  %v1932 = vpack.c.bf16 %v1798, %v1797
  %v1933 = vpack.c.bf16 %v1800, %v1799
  %v1934 = vpack.c.bf16 %v1802, %v1801
  %v1935 = vpack.c.bf16 %v1804, %v1803
  %v1936 = vpack.c.bf16 %v1806, %v1805
  %v1937 = vpack.c.bf16 %v1808, %v1807
  %v1938 = vpack.c.bf16 %v1810, %v1809
  %v1939 = vpack.c.bf16 %v1812, %v1811
  %v1940 = vpack.c.bf16 %v1814, %v1813
  %v1941 = vpack.c.bf16 %v1816, %v1815
  %v1942 = vpack.c.bf16 %v1818, %v1817
  %v1943 = vpack.c.bf16 %v1820, %v1819
  %v1944 = vpack.c.bf16 %v1822, %v1821
  %v1945 = vpack.c.bf16 %v1824, %v1823
  %v1946 = vpack.c.bf16 %v1826, %v1825
  %v1947 = vpack.c.bf16 %v1828, %v1827
  %v1948 = vpack.c.bf16 %v1830, %v1829
  %v1949 = vpack.c.bf16 %v1832, %v1831
  %v1950 = vpack.c.bf16 %v1834, %v1833
  %v1951 = vpack.c.bf16 %v1836, %v1835
  %v1952 = vpack.c.bf16 %v1838, %v1837
  %v1953 = vld [vmem:[%s2] sm:$0xff]
  %v1954 = vld [vmem:[%s2 + $0x8] sm:$0xff]
  %v1955 = vld [vmem:[%s2 + $0x10] sm:$0xff]
  %v1956 = vld [vmem:[%s2 + $0x18] sm:$0xff]
  %v1957 = vld [vmem:[%s2 + $0x20] sm:$0xff]
  %v1958 = vld [vmem:[%s2 + $0x28] sm:$0xff]
  %v1959 = vld [vmem:[%s2 + $0x30] sm:$0xff]
  %v1960 = vld [vmem:[%s2 + $0x38] sm:$0xf]
  %v1961 = vld [vmem:[%s2 + $0x3c] sm:$0xff]
  %v1962 = vld [vmem:[%s2 + $0x44] sm:$0xff]
  %v1963 = vld [vmem:[%s2 + $0x4c] sm:$0xff]
  %v1964 = vld [vmem:[%s2 + $0x54] sm:$0xff]
  %v1965 = vld [vmem:[%s2 + $0x5c] sm:$0xff]
  %v1966 = vld [vmem:[%s2 + $0x64] sm:$0xff]
  %v1967 = vld [vmem:[%s2 + $0x6c] sm:$0xff]
  %v1968 = vld [vmem:[%s2 + $0x74] sm:$0xf]
  %v1969 = vld [vmem:[%s2 + $0x78] sm:$0xff]
  %v1970 = vld [vmem:[%s2 + $0x80] sm:$0xff]
  %v1971 = vld [vmem:[%s2 + $0x88] sm:$0xff]
  %v1972 = vld [vmem:[%s2 + $0x90] sm:$0xff]
  %v1973 = vld [vmem:[%s2 + $0x98] sm:$0xff]
  %v1974 = vld [vmem:[%s2 + $0xa0] sm:$0xff]
  %v1975 = vld [vmem:[%s2 + $0xa8] sm:$0xff]
  %v1976 = vld [vmem:[%s2 + $0xb0] sm:$0xf]
  %v1977 = vld [vmem:[%s2 + $0xb4] sm:$0xff]
  %v1978 = vld [vmem:[%s2 + $0xbc] sm:$0xff]
  %v1979 = vld [vmem:[%s2 + $0xc4] sm:$0xff]
  %v1980 = vld [vmem:[%s2 + $0xcc] sm:$0xff]
  %v1981 = vld [vmem:[%s2 + $0xd4] sm:$0xff]
  %v1982 = vld [vmem:[%s2 + $0xdc] sm:$0xff]
  %v1983 = vld [vmem:[%s2 + $0xe4] sm:$0xff]
  %v1984 = vld [vmem:[%s2 + $0xec] sm:$0xf]
  %v1985 = vld [vmem:[%s2 + $0xf0] sm:$0xff]
  %v1986 = vld [vmem:[%s2 + $0xf8] sm:$0xff]
  %v1987 = vld [vmem:[%s2 + $0x100] sm:$0xff]
  %v1988 = vld [vmem:[%s2 + $0x108] sm:$0xff]
  %v1989 = vld [vmem:[%s2 + $0x110] sm:$0xff]
  %v1990 = vld [vmem:[%s2 + $0x118] sm:$0xff]
  %v1991 = vld [vmem:[%s2 + $0x120] sm:$0xff]
  %v1992 = vld [vmem:[%s2 + $0x128] sm:$0xf]
  %v1993 = vld [vmem:[%s2 + $0x12c] sm:$0xff]
  %v1994 = vld [vmem:[%s2 + $0x134] sm:$0xff]
  %v1995 = vld [vmem:[%s2 + $0x13c] sm:$0xff]
  %v1996 = vld [vmem:[%s2 + $0x144] sm:$0xff]
  %v1997 = vld [vmem:[%s2 + $0x14c] sm:$0xff]
  %v1998 = vld [vmem:[%s2 + $0x154] sm:$0xff]
  %v1999 = vld [vmem:[%s2 + $0x15c] sm:$0xff]
  %v2000 = vld [vmem:[%s2 + $0x164] sm:$0xf]
  %v2001 = vld [vmem:[%s2 + $0x168] sm:$0xff]
  %v2002 = vld [vmem:[%s2 + $0x170] sm:$0xff]
  %v2003 = vld [vmem:[%s2 + $0x178] sm:$0xff]
  %v2004 = vld [vmem:[%s2 + $0x180] sm:$0xff]
  %v2005 = vld [vmem:[%s2 + $0x188] sm:$0xff]
  %v2006 = vld [vmem:[%s2 + $0x190] sm:$0xff]
  %v2007 = vld [vmem:[%s2 + $0x198] sm:$0xff]
  %v2008 = vld [vmem:[%s2 + $0x1a0] sm:$0xf]
  %v2009 = vld [vmem:[%s2 + $0x1a4] sm:$0xff]
  %v2010 = vld [vmem:[%s2 + $0x1ac] sm:$0xff]
  %v2011 = vld [vmem:[%s2 + $0x1b4] sm:$0xff]
  %v2012 = vld [vmem:[%s2 + $0x1bc] sm:$0xff]
  %v2013 = vld [vmem:[%s2 + $0x1c4] sm:$0xff]
  %v2014 = vld [vmem:[%s2 + $0x1cc] sm:$0xff]
  %v2015 = vld [vmem:[%s2 + $0x1d4] sm:$0xff]
  %v2016 = vld [vmem:[%s2 + $0x1dc] sm:$0xf]
  %v2017 = vld [vmem:[%s2 + $0x1e0] sm:$0xff]
  %v2018 = vld [vmem:[%s2 + $0x1e8] sm:$0xff]
  %v2019 = vld [vmem:[%s2 + $0x1f0] sm:$0xff]
  %v2020 = vld [vmem:[%s2 + $0x1f8] sm:$0xff]
  %v2021 = vld [vmem:[%s2 + $0x200] sm:$0xff]
  %v2022 = vld [vmem:[%s2 + $0x208] sm:$0xff]
  %v2023 = vld [vmem:[%s2 + $0x210] sm:$0xff]
  %v2024 = vld [vmem:[%s2 + $0x218] sm:$0xf]
  %v2025 = vld [vmem:[%s2 + $0x21c] sm:$0xff]
  %v2026 = vld [vmem:[%s2 + $0x224] sm:$0xff]
  %v2027 = vld [vmem:[%s2 + $0x22c] sm:$0xff]
  %v2028 = vld [vmem:[%s2 + $0x234] sm:$0xff]
  %v2029 = vld [vmem:[%s2 + $0x23c] sm:$0xff]
  %v2030 = vld [vmem:[%s2 + $0x244] sm:$0xff]
  %v2031 = vld [vmem:[%s2 + $0x24c] sm:$0xff]
  %v2032 = vld [vmem:[%s2 + $0x254] sm:$0xf]
  %v2033 = vld [vmem:[%s2 + $0x258] sm:$0xff]
  %v2034 = vld [vmem:[%s2 + $0x260] sm:$0xff]
  %v2035 = vld [vmem:[%s2 + $0x268] sm:$0xff]
  %v2036 = vld [vmem:[%s2 + $0x270] sm:$0xff]
  %v2037 = vld [vmem:[%s2 + $0x278] sm:$0xff]
  %v2038 = vld [vmem:[%s2 + $0x280] sm:$0xff]
  %v2039 = vld [vmem:[%s2 + $0x288] sm:$0xff]
  %v2040 = vld [vmem:[%s2 + $0x290] sm:$0xf]
  %v2041 = vld [vmem:[%s2 + $0x294] sm:$0xff]
  %v2042 = vld [vmem:[%s2 + $0x29c] sm:$0xff]
  %v2043 = vld [vmem:[%s2 + $0x2a4] sm:$0xff]
  %v2044 = vld [vmem:[%s2 + $0x2ac] sm:$0xff]
  %v2045 = vld [vmem:[%s2 + $0x2b4] sm:$0xff]
  %v2046 = vld [vmem:[%s2 + $0x2bc] sm:$0xff]
  %v2047 = vld [vmem:[%s2 + $0x2c4] sm:$0xff]
  %v2048 = vld [vmem:[%s2 + $0x2cc] sm:$0xf]
  %v2049 = vld [vmem:[%s2 + $0x2d0] sm:$0xff]
  %v2050 = vld [vmem:[%s2 + $0x2d8] sm:$0xff]
  %v2051 = vld [vmem:[%s2 + $0x2e0] sm:$0xff]
  %v2052 = vld [vmem:[%s2 + $0x2e8] sm:$0xff]
  %v2053 = vld [vmem:[%s2 + $0x2f0] sm:$0xff]
  %v2054 = vld [vmem:[%s2 + $0x2f8] sm:$0xff]
  %v2055 = vld [vmem:[%s2 + $0x300] sm:$0xff]
  %v2056 = vld [vmem:[%s2 + $0x308] sm:$0xf]
  %v2057 = vld [vmem:[%s2 + $0x30c] sm:$0xff]
  %v2058 = vld [vmem:[%s2 + $0x314] sm:$0xff]
  %v2059 = vld [vmem:[%s2 + $0x31c] sm:$0xff]
  %v2060 = vld [vmem:[%s2 + $0x324] sm:$0xff]
  %v2061 = vld [vmem:[%s2 + $0x32c] sm:$0xff]
  %v2062 = vld [vmem:[%s2 + $0x334] sm:$0xff]
  %v2063 = vld [vmem:[%s2 + $0x33c] sm:$0xff]
  %v2064 = vld [vmem:[%s2 + $0x344] sm:$0xf]
  %v2065 = vld [vmem:[%s2 + $0x348] sm:$0xff]
  %v2066 = vld [vmem:[%s2 + $0x350] sm:$0xff]
  %v2067 = vld [vmem:[%s2 + $0x358] sm:$0xff]
  %v2068 = vld [vmem:[%s2 + $0x360] sm:$0xff]
  %v2069 = vld [vmem:[%s2 + $0x368] sm:$0xff]
  %v2070 = vld [vmem:[%s2 + $0x370] sm:$0xff]
  %v2071 = vld [vmem:[%s2 + $0x378] sm:$0xff]
  %v2072 = vld [vmem:[%s2 + $0x380] sm:$0xf]
  %v2073 = vld [vmem:[%s2 + $0x384] sm:$0xff]
  %v2074 = vld [vmem:[%s2 + $0x38c] sm:$0xff]
  %v2075 = vld [vmem:[%s2 + $0x394] sm:$0xff]
  %v2076 = vld [vmem:[%s2 + $0x39c] sm:$0xff]
  %v2077 = vld [vmem:[%s2 + $0x3a4] sm:$0xff]
  %v2078 = vld [vmem:[%s2 + $0x3ac] sm:$0xff]
  %v2079 = vld [vmem:[%s2 + $0x3b4] sm:$0xff]
  %v2080 = vld [vmem:[%s2 + $0x3bc] sm:$0xf]
  %v2081 = vld [vmem:[%s2 + $0x3c0] sm:$0xff]
  %v2082 = vld [vmem:[%s2 + $0x3c8] sm:$0xff]
  %v2083 = vld [vmem:[%s2 + $0x3d0] sm:$0xff]
  %v2084 = vld [vmem:[%s2 + $0x3d8] sm:$0xff]
  %v2085 = vld [vmem:[%s2 + $0x3e0] sm:$0xff]
  %v2086 = vld [vmem:[%s2 + $0x3e8] sm:$0xff]
  %v2087 = vld [vmem:[%s2 + $0x3f0] sm:$0xff]
  %v2088 = vld [vmem:[%s2 + $0x3f8] sm:$0xf]
  %v2089 = vld [vmem:[%s2 + $0x3fc] sm:$0xff]
  %v2090 = vld [vmem:[%s2 + $0x404] sm:$0xff]
  %v2091 = vld [vmem:[%s2 + $0x40c] sm:$0xff]
  %v2092 = vld [vmem:[%s2 + $0x414] sm:$0xff]
  %v2093 = vld [vmem:[%s2 + $0x41c] sm:$0xff]
  %v2094 = vld [vmem:[%s2 + $0x424] sm:$0xff]
  %v2095 = vld [vmem:[%s2 + $0x42c] sm:$0xff]
  %v2096 = vld [vmem:[%s2 + $0x434] sm:$0xf]
  %v2097 = vld [vmem:[%s2 + $0x438] sm:$0xff]
  %v2098 = vld [vmem:[%s2 + $0x440] sm:$0xff]
  %v2099 = vld [vmem:[%s2 + $0x448] sm:$0xff]
  %v2100 = vld [vmem:[%s2 + $0x450] sm:$0xff]
  %v2101 = vld [vmem:[%s2 + $0x458] sm:$0xff]
  %v2102 = vld [vmem:[%s2 + $0x460] sm:$0xff]
  %v2103 = vld [vmem:[%s2 + $0x468] sm:$0xff]
  %v2104 = vld [vmem:[%s2 + $0x470] sm:$0xf]
  %v2105 = vld [vmem:[%s2 + $0x474] sm:$0xff]
  %v2106 = vld [vmem:[%s2 + $0x47c] sm:$0xff]
  %v2107 = vld [vmem:[%s2 + $0x484] sm:$0xff]
  %v2108 = vld [vmem:[%s2 + $0x48c] sm:$0xff]
  %v2109 = vld [vmem:[%s2 + $0x494] sm:$0xff]
  %v2110 = vld [vmem:[%s2 + $0x49c] sm:$0xff]
  %v2111 = vld [vmem:[%s2 + $0x4a4] sm:$0xff]
  %v2112 = vld [vmem:[%s2 + $0x4ac] sm:$0xf]
  %v2113 = vld [vmem:[%s2 + $0x4b0] sm:$0xff]
  %v2114 = vld [vmem:[%s2 + $0x4b8] sm:$0xff]
  %v2115 = vld [vmem:[%s2 + $0x4c0] sm:$0xff]
  %v2116 = vld [vmem:[%s2 + $0x4c8] sm:$0xff]
  %v2117 = vld [vmem:[%s2 + $0x4d0] sm:$0xff]
  %v2118 = vld [vmem:[%s2 + $0x4d8] sm:$0xff]
  %v2119 = vld [vmem:[%s2 + $0x4e0] sm:$0xff]
  %v2120 = vld [vmem:[%s2 + $0x4e8] sm:$0xf]
  %v2121 = vld [vmem:[%s2 + $0x4ec] sm:$0xff]
  %v2122 = vld [vmem:[%s2 + $0x4f4] sm:$0xff]
  %v2123 = vld [vmem:[%s2 + $0x4fc] sm:$0xff]
  %v2124 = vld [vmem:[%s2 + $0x504] sm:$0xff]
  %v2125 = vld [vmem:[%s2 + $0x50c] sm:$0xff]
  %v2126 = vld [vmem:[%s2 + $0x514] sm:$0xff]
  %v2127 = vld [vmem:[%s2 + $0x51c] sm:$0xff]
  %v2128 = vld [vmem:[%s2 + $0x524] sm:$0xf]
  %v2129 = vld [vmem:[%s2 + $0x528] sm:$0xff]
  %v2130 = vld [vmem:[%s2 + $0x530] sm:$0xff]
  %v2131 = vld [vmem:[%s2 + $0x538] sm:$0xff]
  %v2132 = vld [vmem:[%s2 + $0x540] sm:$0xff]
  %v2133 = vld [vmem:[%s2 + $0x548] sm:$0xff]
  %v2134 = vld [vmem:[%s2 + $0x550] sm:$0xff]
  %v2135 = vld [vmem:[%s2 + $0x558] sm:$0xff]
  %v2136 = vld [vmem:[%s2 + $0x560] sm:$0xf]
  %v2137 = vld [vmem:[%s2 + $0x564] sm:$0xff]
  %v2138 = vld [vmem:[%s2 + $0x56c] sm:$0xff]
  %v2139 = vld [vmem:[%s2 + $0x574] sm:$0xff]
  %v2140 = vld [vmem:[%s2 + $0x57c] sm:$0xff]
  %v2141 = vld [vmem:[%s2 + $0x584] sm:$0xff]
  %v2142 = vld [vmem:[%s2 + $0x58c] sm:$0xff]
  %v2143 = vld [vmem:[%s2 + $0x594] sm:$0xff]
  %v2144 = vld [vmem:[%s2 + $0x59c] sm:$0xf]
  %v2145 = vld [vmem:[%s2 + $0x5a0] sm:$0xff]
  %v2146 = vld [vmem:[%s2 + $0x5a8] sm:$0xff]
  %v2147 = vld [vmem:[%s2 + $0x5b0] sm:$0xff]
  %v2148 = vld [vmem:[%s2 + $0x5b8] sm:$0xff]
  %v2149 = vld [vmem:[%s2 + $0x5c0] sm:$0xff]
  %v2150 = vld [vmem:[%s2 + $0x5c8] sm:$0xff]
  %v2151 = vld [vmem:[%s2 + $0x5d0] sm:$0xff]
  %v2152 = vld [vmem:[%s2 + $0x5d8] sm:$0xf]
  %v2153 = vld [vmem:[%s2 + $0x5dc] sm:$0xff]
  %v2154 = vld [vmem:[%s2 + $0x5e4] sm:$0xff]
  %v2155 = vld [vmem:[%s2 + $0x5ec] sm:$0xff]
  %v2156 = vld [vmem:[%s2 + $0x5f4] sm:$0xff]
  %v2157 = vld [vmem:[%s2 + $0x5fc] sm:$0xff]
  %v2158 = vld [vmem:[%s2 + $0x604] sm:$0xff]
  %v2159 = vld [vmem:[%s2 + $0x60c] sm:$0xff]
  %v2160 = vld [vmem:[%s2 + $0x614] sm:$0xf]
  %v2161 = vld [vmem:[%s2 + $0x618] sm:$0xff]
  %v2162 = vld [vmem:[%s2 + $0x620] sm:$0xff]
  %v2163 = vld [vmem:[%s2 + $0x628] sm:$0xff]
  %v2164 = vld [vmem:[%s2 + $0x630] sm:$0xff]
  %v2165 = vld [vmem:[%s2 + $0x638] sm:$0xff]
  %v2166 = vld [vmem:[%s2 + $0x640] sm:$0xff]
  %v2167 = vld [vmem:[%s2 + $0x648] sm:$0xff]
  %v2168 = vld [vmem:[%s2 + $0x650] sm:$0xf]
  %v2169 = vld [vmem:[%s2 + $0x654] sm:$0xff]
  %v2170 = vld [vmem:[%s2 + $0x65c] sm:$0xff]
  %v2171 = vld [vmem:[%s2 + $0x664] sm:$0xff]
  %v2172 = vld [vmem:[%s2 + $0x66c] sm:$0xff]
  %v2173 = vld [vmem:[%s2 + $0x674] sm:$0xff]
  %v2174 = vld [vmem:[%s2 + $0x67c] sm:$0xff]
  %v2175 = vld [vmem:[%s2 + $0x684] sm:$0xff]
  %v2176 = vld [vmem:[%s2 + $0x68c] sm:$0xf]
  %v2177 = vld [vmem:[%s2 + $0x690] sm:$0xff]
  %v2178 = vld [vmem:[%s2 + $0x698] sm:$0xff]
  %v2179 = vld [vmem:[%s2 + $0x6a0] sm:$0xff]
  %v2180 = vld [vmem:[%s2 + $0x6a8] sm:$0xff]
  %v2181 = vld [vmem:[%s2 + $0x6b0] sm:$0xff]
  %v2182 = vld [vmem:[%s2 + $0x6b8] sm:$0xff]
  %v2183 = vld [vmem:[%s2 + $0x6c0] sm:$0xff]
  %v2184 = vld [vmem:[%s2 + $0x6c8] sm:$0xf]
  %v2185 = vld [vmem:[%s2 + $0x6cc] sm:$0xff]
  %v2186 = vld [vmem:[%s2 + $0x6d4] sm:$0xff]
  %v2187 = vld [vmem:[%s2 + $0x6dc] sm:$0xff]
  %v2188 = vld [vmem:[%s2 + $0x6e4] sm:$0xff]
  %v2189 = vld [vmem:[%s2 + $0x6ec] sm:$0xff]
  %v2190 = vld [vmem:[%s2 + $0x6f4] sm:$0xff]
  %v2191 = vld [vmem:[%s2 + $0x6fc] sm:$0xff]
  %v2192 = vld [vmem:[%s2 + $0x704] sm:$0xf]
  %v2193 = vld [vmem:[%s2 + $0x708] sm:$0xff]
  %v2194 = vld [vmem:[%s2 + $0x710] sm:$0xff]
  %v2195 = vld [vmem:[%s2 + $0x718] sm:$0xff]
  %v2196 = vld [vmem:[%s2 + $0x720] sm:$0xff]
  %v2197 = vld [vmem:[%s2 + $0x728] sm:$0xff]
  %v2198 = vld [vmem:[%s2 + $0x730] sm:$0xff]
  %v2199 = vld [vmem:[%s2 + $0x738] sm:$0xff]
  %v2200 = vld [vmem:[%s2 + $0x740] sm:$0xf]
  %v2201 = vld [vmem:[%s2 + $0x744] sm:$0xff]
  %v2202 = vld [vmem:[%s2 + $0x74c] sm:$0xff]
  %v2203 = vld [vmem:[%s2 + $0x754] sm:$0xff]
  %v2204 = vld [vmem:[%s2 + $0x75c] sm:$0xff]
  %v2205 = vld [vmem:[%s2 + $0x764] sm:$0xff]
  %v2206 = vld [vmem:[%s2 + $0x76c] sm:$0xff]
  %v2207 = vld [vmem:[%s2 + $0x774] sm:$0xff]
  %v2208 = vld [vmem:[%s2 + $0x77c] sm:$0xf]
  %v2209 = vld [vmem:[%s2 + $0x780] sm:$0xff]
  %v2210 = vld [vmem:[%s2 + $0x788] sm:$0xff]
  %v2211 = vld [vmem:[%s2 + $0x790] sm:$0xff]
  %v2212 = vld [vmem:[%s2 + $0x798] sm:$0xff]
  %v2213 = vld [vmem:[%s2 + $0x7a0] sm:$0xff]
  %v2214 = vld [vmem:[%s2 + $0x7a8] sm:$0xff]
  %v2215 = vld [vmem:[%s2 + $0x7b0] sm:$0xff]
  %v2216 = vld [vmem:[%s2 + $0x7b8] sm:$0xf]
  %v2217 = vld [vmem:[%s2 + $0x7bc] sm:$0xff]
  %v2218 = vld [vmem:[%s2 + $0x7c4] sm:$0xff]
  %v2219 = vld [vmem:[%s2 + $0x7cc] sm:$0xff]
  %v2220 = vld [vmem:[%s2 + $0x7d4] sm:$0xff]
  %v2221 = vld [vmem:[%s2 + $0x7dc] sm:$0xff]
  %v2222 = vld [vmem:[%s2 + $0x7e4] sm:$0xff]
  %v2223 = vld [vmem:[%s2 + $0x7ec] sm:$0xff]
  %v2224 = vld [vmem:[%s2 + $0x7f4] sm:$0xf]
  %v2225 = vld [vmem:[%s2 + $0x7f8] sm:$0xff]
  %v2226 = vld [vmem:[%s2 + $0x800] sm:$0xff]
  %v2227 = vld [vmem:[%s2 + $0x808] sm:$0xff]
  %v2228 = vld [vmem:[%s2 + $0x810] sm:$0xff]
  %v2229 = vld [vmem:[%s2 + $0x818] sm:$0xff]
  %v2230 = vld [vmem:[%s2 + $0x820] sm:$0xff]
  %v2231 = vld [vmem:[%s2 + $0x828] sm:$0xff]
  %v2232 = vld [vmem:[%s2 + $0x830] sm:$0xf]
  %v2233 = vld [vmem:[%s2 + $0x834] sm:$0xff]
  %v2234 = vld [vmem:[%s2 + $0x83c] sm:$0xff]
  %v2235 = vld [vmem:[%s2 + $0x844] sm:$0xff]
  %v2236 = vld [vmem:[%s2 + $0x84c] sm:$0xff]
  %v2237 = vld [vmem:[%s2 + $0x854] sm:$0xff]
  %v2238 = vld [vmem:[%s2 + $0x85c] sm:$0xff]
  %v2239 = vld [vmem:[%s2 + $0x864] sm:$0xff]
  %v2240 = vld [vmem:[%s2 + $0x86c] sm:$0xf]
  %v2241 = vld [vmem:[%s2 + $0x870] sm:$0xff]
  %v2242 = vld [vmem:[%s2 + $0x878] sm:$0xff]
  %v2243 = vld [vmem:[%s2 + $0x880] sm:$0xff]
  %v2244 = vld [vmem:[%s2 + $0x888] sm:$0xff]
  %v2245 = vld [vmem:[%s2 + $0x890] sm:$0xff]
  %v2246 = vld [vmem:[%s2 + $0x898] sm:$0xff]
  %v2247 = vld [vmem:[%s2 + $0x8a0] sm:$0xff]
  %v2248 = vld [vmem:[%s2 + $0x8a8] sm:$0xf]
  %v2249 = vld [vmem:[%s2 + $0x8ac] sm:$0xff]
  %v2250 = vld [vmem:[%s2 + $0x8b4] sm:$0xff]
  %v2251 = vld [vmem:[%s2 + $0x8bc] sm:$0xff]
  %v2252 = vld [vmem:[%s2 + $0x8c4] sm:$0xff]
  %v2253 = vld [vmem:[%s2 + $0x8cc] sm:$0xff]
  %v2254 = vld [vmem:[%s2 + $0x8d4] sm:$0xff]
  %v2255 = vld [vmem:[%s2 + $0x8dc] sm:$0xff]
  %v2256 = vld [vmem:[%s2 + $0x8e4] sm:$0xf]
  %v2561 = vunpack.c.l.b16 %v1953
  %v2562 = vunpack.c.h.b16 %v1953
  %v2563 = vunpack.c.l.b16 %v1954
  %v2564 = vunpack.c.h.b16 %v1954
  %v2565 = vunpack.c.l.b16 %v1955
  %v2566 = vunpack.c.h.b16 %v1955
  %v2567 = vunpack.c.l.b16 %v1956
  %v2568 = vunpack.c.h.b16 %v1956
  %v2569 = vunpack.c.l.b16 %v1957
  %v2570 = vunpack.c.h.b16 %v1957
  %v2571 = vunpack.c.l.b16 %v1958
  %v2572 = vunpack.c.h.b16 %v1958
  %v2573 = vunpack.c.l.b16 %v1959
  %v2574 = vunpack.c.h.b16 %v1959
  %v2575 = vunpack.c.l.b16 %v1960
  %v2576 = vunpack.c.l.b16 %v1961
  %v2577 = vunpack.c.h.b16 %v1961
  %v2578 = vunpack.c.l.b16 %v1962
  %v2579 = vunpack.c.h.b16 %v1962
  %v2580 = vunpack.c.l.b16 %v1963
  %v2581 = vunpack.c.h.b16 %v1963
  %v2582 = vunpack.c.l.b16 %v1964
  %v2583 = vunpack.c.h.b16 %v1964
  %v2584 = vunpack.c.l.b16 %v1965
  %v2585 = vunpack.c.h.b16 %v1965
  %v2586 = vunpack.c.l.b16 %v1966
  %v2587 = vunpack.c.h.b16 %v1966
  %v2588 = vunpack.c.l.b16 %v1967
  %v2589 = vunpack.c.h.b16 %v1967
  %v2590 = vunpack.c.l.b16 %v1968
  %v2591 = vunpack.c.l.b16 %v1969
  %v2592 = vunpack.c.h.b16 %v1969
  %v2593 = vunpack.c.l.b16 %v1970
  %v2594 = vunpack.c.h.b16 %v1970
  %v2595 = vunpack.c.l.b16 %v1971
  %v2596 = vunpack.c.h.b16 %v1971
  %v2597 = vunpack.c.l.b16 %v1972
  %v2598 = vunpack.c.h.b16 %v1972
  %v2599 = vunpack.c.l.b16 %v1973
  %v2600 = vunpack.c.h.b16 %v1973
  %v2601 = vunpack.c.l.b16 %v1974
  %v2602 = vunpack.c.h.b16 %v1974
  %v2603 = vunpack.c.l.b16 %v1975
  %v2604 = vunpack.c.h.b16 %v1975
  %v2605 = vunpack.c.l.b16 %v1976
  %v2606 = vunpack.c.l.b16 %v1977
  %v2607 = vunpack.c.h.b16 %v1977
  %v2608 = vunpack.c.l.b16 %v1978
  %v2609 = vunpack.c.h.b16 %v1978
  %v2610 = vunpack.c.l.b16 %v1979
  %v2611 = vunpack.c.h.b16 %v1979
  %v2612 = vunpack.c.l.b16 %v1980
  %v2613 = vunpack.c.h.b16 %v1980
  %v2614 = vunpack.c.l.b16 %v1981
  %v2615 = vunpack.c.h.b16 %v1981
  %v2616 = vunpack.c.l.b16 %v1982
  %v2617 = vunpack.c.h.b16 %v1982
  %v2618 = vunpack.c.l.b16 %v1983
  %v2619 = vunpack.c.h.b16 %v1983
  %v2620 = vunpack.c.l.b16 %v1984
  %v2621 = vunpack.c.l.b16 %v1985
  %v2622 = vunpack.c.h.b16 %v1985
  %v2623 = vunpack.c.l.b16 %v1986
  %v2624 = vunpack.c.h.b16 %v1986
  %v2625 = vunpack.c.l.b16 %v1987
  %v2626 = vunpack.c.h.b16 %v1987
  %v2627 = vunpack.c.l.b16 %v1988
  %v2628 = vunpack.c.h.b16 %v1988
  %v2629 = vunpack.c.l.b16 %v1989
  %v2630 = vunpack.c.h.b16 %v1989
  %v2631 = vunpack.c.l.b16 %v1990
  %v2632 = vunpack.c.h.b16 %v1990
  %v2633 = vunpack.c.l.b16 %v1991
  %v2634 = vunpack.c.h.b16 %v1991
  %v2635 = vunpack.c.l.b16 %v1992
  %v2636 = vunpack.c.l.b16 %v1993
  %v2637 = vunpack.c.h.b16 %v1993
  %v2638 = vunpack.c.l.b16 %v1994
  %v2639 = vunpack.c.h.b16 %v1994
  %v2640 = vunpack.c.l.b16 %v1995
  %v2641 = vunpack.c.h.b16 %v1995
  %v2642 = vunpack.c.l.b16 %v1996
  %v2643 = vunpack.c.h.b16 %v1996
  %v2644 = vunpack.c.l.b16 %v1997
  %v2645 = vunpack.c.h.b16 %v1997
  %v2646 = vunpack.c.l.b16 %v1998
  %v2647 = vunpack.c.h.b16 %v1998
  %v2648 = vunpack.c.l.b16 %v1999
  %v2649 = vunpack.c.h.b16 %v1999
  %v2650 = vunpack.c.l.b16 %v2000
  %v2651 = vunpack.c.l.b16 %v2001
  %v2652 = vunpack.c.h.b16 %v2001
  %v2653 = vunpack.c.l.b16 %v2002
  %v2654 = vunpack.c.h.b16 %v2002
  %v2655 = vunpack.c.l.b16 %v2003
  %v2656 = vunpack.c.h.b16 %v2003
  %v2657 = vunpack.c.l.b16 %v2004
  %v2658 = vunpack.c.h.b16 %v2004
  %v2659 = vunpack.c.l.b16 %v2005
  %v2660 = vunpack.c.h.b16 %v2005
  %v2661 = vunpack.c.l.b16 %v2006
  %v2662 = vunpack.c.h.b16 %v2006
  %v2663 = vunpack.c.l.b16 %v2007
  %v2664 = vunpack.c.h.b16 %v2007
  %v2665 = vunpack.c.l.b16 %v2008
  %v2666 = vunpack.c.l.b16 %v2009
  %v2667 = vunpack.c.h.b16 %v2009
  %v2668 = vunpack.c.l.b16 %v2010
  %v2669 = vunpack.c.h.b16 %v2010
  %v2670 = vunpack.c.l.b16 %v2011
  %v2671 = vunpack.c.h.b16 %v2011
  %v2672 = vunpack.c.l.b16 %v2012
  %v2673 = vunpack.c.h.b16 %v2012
  %v2674 = vunpack.c.l.b16 %v2013
  %v2675 = vunpack.c.h.b16 %v2013
  %v2676 = vunpack.c.l.b16 %v2014
  %v2677 = vunpack.c.h.b16 %v2014
  %v2678 = vunpack.c.l.b16 %v2015
  %v2679 = vunpack.c.h.b16 %v2015
  %v2680 = vunpack.c.l.b16 %v2016
  %v2681 = vunpack.c.l.b16 %v2017
  %v2682 = vunpack.c.h.b16 %v2017
  %v2683 = vunpack.c.l.b16 %v2018
  %v2684 = vunpack.c.h.b16 %v2018
  %v2685 = vunpack.c.l.b16 %v2019
  %v2686 = vunpack.c.h.b16 %v2019
  %v2687 = vunpack.c.l.b16 %v2020
  %v2688 = vunpack.c.h.b16 %v2020
  %v2689 = vunpack.c.l.b16 %v2021
  %v2690 = vunpack.c.h.b16 %v2021
  %v2691 = vunpack.c.l.b16 %v2022
  %v2692 = vunpack.c.h.b16 %v2022
  %v2693 = vunpack.c.l.b16 %v2023
  %v2694 = vunpack.c.h.b16 %v2023
  %v2695 = vunpack.c.l.b16 %v2024
  %v2696 = vunpack.c.l.b16 %v2025
  %v2697 = vunpack.c.h.b16 %v2025
  %v2698 = vunpack.c.l.b16 %v2026
  %v2699 = vunpack.c.h.b16 %v2026
  %v2700 = vunpack.c.l.b16 %v2027
  %v2701 = vunpack.c.h.b16 %v2027
  %v2702 = vunpack.c.l.b16 %v2028
  %v2703 = vunpack.c.h.b16 %v2028
  %v2704 = vunpack.c.l.b16 %v2029
  %v2705 = vunpack.c.h.b16 %v2029
  %v2706 = vunpack.c.l.b16 %v2030
  %v2707 = vunpack.c.h.b16 %v2030
  %v2708 = vunpack.c.l.b16 %v2031
  %v2709 = vunpack.c.h.b16 %v2031
  %v2710 = vunpack.c.l.b16 %v2032
  %v2711 = vunpack.c.l.b16 %v2033
  %v2712 = vunpack.c.h.b16 %v2033
  %v2713 = vunpack.c.l.b16 %v2034
  %v2714 = vunpack.c.h.b16 %v2034
  %v2715 = vunpack.c.l.b16 %v2035
  %v2716 = vunpack.c.h.b16 %v2035
  %v2717 = vunpack.c.l.b16 %v2036
  %v2718 = vunpack.c.h.b16 %v2036
  %v2719 = vunpack.c.l.b16 %v2037
  %v2720 = vunpack.c.h.b16 %v2037
  %v2721 = vunpack.c.l.b16 %v2038
  %v2722 = vunpack.c.h.b16 %v2038
  %v2723 = vunpack.c.l.b16 %v2039
  %v2724 = vunpack.c.h.b16 %v2039
  %v2725 = vunpack.c.l.b16 %v2040
  %v2726 = vunpack.c.l.b16 %v2041
  %v2727 = vunpack.c.h.b16 %v2041
  %v2728 = vunpack.c.l.b16 %v2042
  %v2729 = vunpack.c.h.b16 %v2042
  %v2730 = vunpack.c.l.b16 %v2043
  %v2731 = vunpack.c.h.b16 %v2043
  %v2732 = vunpack.c.l.b16 %v2044
  %v2733 = vunpack.c.h.b16 %v2044
  %v2734 = vunpack.c.l.b16 %v2045
  %v2735 = vunpack.c.h.b16 %v2045
  %v2736 = vunpack.c.l.b16 %v2046
  %v2737 = vunpack.c.h.b16 %v2046
  %v2738 = vunpack.c.l.b16 %v2047
  %v2739 = vunpack.c.h.b16 %v2047
  %v2740 = vunpack.c.l.b16 %v2048
  %v2741 = vunpack.c.l.b16 %v2049
  %v2742 = vunpack.c.h.b16 %v2049
  %v2743 = vunpack.c.l.b16 %v2050
  %v2744 = vunpack.c.h.b16 %v2050
  %v2745 = vunpack.c.l.b16 %v2051
  %v2746 = vunpack.c.h.b16 %v2051
  %v2747 = vunpack.c.l.b16 %v2052
  %v2748 = vunpack.c.h.b16 %v2052
  %v2749 = vunpack.c.l.b16 %v2053
  %v2750 = vunpack.c.h.b16 %v2053
  %v2751 = vunpack.c.l.b16 %v2054
  %v2752 = vunpack.c.h.b16 %v2054
  %v2753 = vunpack.c.l.b16 %v2055
  %v2754 = vunpack.c.h.b16 %v2055
  %v2755 = vunpack.c.l.b16 %v2056
  %v2756 = vunpack.c.l.b16 %v2057
  %v2757 = vunpack.c.h.b16 %v2057
  %v2758 = vunpack.c.l.b16 %v2058
  %v2759 = vunpack.c.h.b16 %v2058
  %v2760 = vunpack.c.l.b16 %v2059
  %v2761 = vunpack.c.h.b16 %v2059
  %v2762 = vunpack.c.l.b16 %v2060
  %v2763 = vunpack.c.h.b16 %v2060
  %v2764 = vunpack.c.l.b16 %v2061
  %v2765 = vunpack.c.h.b16 %v2061
  %v2766 = vunpack.c.l.b16 %v2062
  %v2767 = vunpack.c.h.b16 %v2062
  %v2768 = vunpack.c.l.b16 %v2063
  %v2769 = vunpack.c.h.b16 %v2063
  %v2770 = vunpack.c.l.b16 %v2064
  %v2771 = vunpack.c.l.b16 %v2065
  %v2772 = vunpack.c.h.b16 %v2065
  %v2773 = vunpack.c.l.b16 %v2066
  %v2774 = vunpack.c.h.b16 %v2066
  %v2775 = vunpack.c.l.b16 %v2067
  %v2776 = vunpack.c.h.b16 %v2067
  %v2777 = vunpack.c.l.b16 %v2068
  %v2778 = vunpack.c.h.b16 %v2068
  %v2779 = vunpack.c.l.b16 %v2069
  %v2780 = vunpack.c.h.b16 %v2069
  %v2781 = vunpack.c.l.b16 %v2070
  %v2782 = vunpack.c.h.b16 %v2070
  %v2783 = vunpack.c.l.b16 %v2071
  %v2784 = vunpack.c.h.b16 %v2071
  %v2785 = vunpack.c.l.b16 %v2072
  %v2786 = vunpack.c.l.b16 %v2073
  %v2787 = vunpack.c.h.b16 %v2073
  %v2788 = vunpack.c.l.b16 %v2074
  %v2789 = vunpack.c.h.b16 %v2074
  %v2790 = vunpack.c.l.b16 %v2075
  %v2791 = vunpack.c.h.b16 %v2075
  %v2792 = vunpack.c.l.b16 %v2076
  %v2793 = vunpack.c.h.b16 %v2076
  %v2794 = vunpack.c.l.b16 %v2077
  %v2795 = vunpack.c.h.b16 %v2077
  %v2796 = vunpack.c.l.b16 %v2078
  %v2797 = vunpack.c.h.b16 %v2078
  %v2798 = vunpack.c.l.b16 %v2079
  %v2799 = vunpack.c.h.b16 %v2079
  %v2800 = vunpack.c.l.b16 %v2080
  %v2801 = vunpack.c.l.b16 %v2081
  %v2802 = vunpack.c.h.b16 %v2081
  %v2803 = vunpack.c.l.b16 %v2082
  %v2804 = vunpack.c.h.b16 %v2082
  %v2805 = vunpack.c.l.b16 %v2083
  %v2806 = vunpack.c.h.b16 %v2083
  %v2807 = vunpack.c.l.b16 %v2084
  %v2808 = vunpack.c.h.b16 %v2084
  %v2809 = vunpack.c.l.b16 %v2085
  %v2810 = vunpack.c.h.b16 %v2085
  %v2811 = vunpack.c.l.b16 %v2086
  %v2812 = vunpack.c.h.b16 %v2086
  %v2813 = vunpack.c.l.b16 %v2087
  %v2814 = vunpack.c.h.b16 %v2087
  %v2815 = vunpack.c.l.b16 %v2088
  %v2816 = vunpack.c.l.b16 %v2089
  %v2817 = vunpack.c.h.b16 %v2089
  %v2818 = vunpack.c.l.b16 %v2090
  %v2819 = vunpack.c.h.b16 %v2090
  %v2820 = vunpack.c.l.b16 %v2091
  %v2821 = vunpack.c.h.b16 %v2091
  %v2822 = vunpack.c.l.b16 %v2092
  %v2823 = vunpack.c.h.b16 %v2092
  %v2824 = vunpack.c.l.b16 %v2093
  %v2825 = vunpack.c.h.b16 %v2093
  %v2826 = vunpack.c.l.b16 %v2094
  %v2827 = vunpack.c.h.b16 %v2094
  %v2828 = vunpack.c.l.b16 %v2095
  %v2829 = vunpack.c.h.b16 %v2095
  %v2830 = vunpack.c.l.b16 %v2096
  %v2831 = vunpack.c.l.b16 %v2097
  %v2832 = vunpack.c.h.b16 %v2097
  %v2833 = vunpack.c.l.b16 %v2098
  %v2834 = vunpack.c.h.b16 %v2098
  %v2835 = vunpack.c.l.b16 %v2099
  %v2836 = vunpack.c.h.b16 %v2099
  %v2837 = vunpack.c.l.b16 %v2100
  %v2838 = vunpack.c.h.b16 %v2100
  %v2839 = vunpack.c.l.b16 %v2101
  %v2840 = vunpack.c.h.b16 %v2101
  %v2841 = vunpack.c.l.b16 %v2102
  %v2842 = vunpack.c.h.b16 %v2102
  %v2843 = vunpack.c.l.b16 %v2103
  %v2844 = vunpack.c.h.b16 %v2103
  %v2845 = vunpack.c.l.b16 %v2104
  %v2846 = vunpack.c.l.b16 %v2105
  %v2847 = vunpack.c.h.b16 %v2105
  %v2848 = vunpack.c.l.b16 %v2106
  %v2849 = vunpack.c.h.b16 %v2106
  %v2850 = vunpack.c.l.b16 %v2107
  %v2851 = vunpack.c.h.b16 %v2107
  %v2852 = vunpack.c.l.b16 %v2108
  %v2853 = vunpack.c.h.b16 %v2108
  %v2854 = vunpack.c.l.b16 %v2109
  %v2855 = vunpack.c.h.b16 %v2109
  %v2856 = vunpack.c.l.b16 %v2110
  %v2857 = vunpack.c.h.b16 %v2110
  %v2858 = vunpack.c.l.b16 %v2111
  %v2859 = vunpack.c.h.b16 %v2111
  %v2860 = vunpack.c.l.b16 %v2112
  %v2861 = vunpack.c.l.b16 %v2113
  %v2862 = vunpack.c.h.b16 %v2113
  %v2863 = vunpack.c.l.b16 %v2114
  %v2864 = vunpack.c.h.b16 %v2114
  %v2865 = vunpack.c.l.b16 %v2115
  %v2866 = vunpack.c.h.b16 %v2115
  %v2867 = vunpack.c.l.b16 %v2116
  %v2868 = vunpack.c.h.b16 %v2116
  %v2869 = vunpack.c.l.b16 %v2117
  %v2870 = vunpack.c.h.b16 %v2117
  %v2871 = vunpack.c.l.b16 %v2118
  %v2872 = vunpack.c.h.b16 %v2118
  %v2873 = vunpack.c.l.b16 %v2119
  %v2874 = vunpack.c.h.b16 %v2119
  %v2875 = vunpack.c.l.b16 %v2120
  %v2876 = vunpack.c.l.b16 %v2121
  %v2877 = vunpack.c.h.b16 %v2121
  %v2878 = vunpack.c.l.b16 %v2122
  %v2879 = vunpack.c.h.b16 %v2122
  %v2880 = vunpack.c.l.b16 %v2123
  %v2881 = vunpack.c.h.b16 %v2123
  %v2882 = vunpack.c.l.b16 %v2124
  %v2883 = vunpack.c.h.b16 %v2124
  %v2884 = vunpack.c.l.b16 %v2125
  %v2885 = vunpack.c.h.b16 %v2125
  %v2886 = vunpack.c.l.b16 %v2126
  %v2887 = vunpack.c.h.b16 %v2126
  %v2888 = vunpack.c.l.b16 %v2127
  %v2889 = vunpack.c.h.b16 %v2127
  %v2890 = vunpack.c.l.b16 %v2128
  %v2891 = vunpack.c.l.b16 %v2129
  %v2892 = vunpack.c.h.b16 %v2129
  %v2893 = vunpack.c.l.b16 %v2130
  %v2894 = vunpack.c.h.b16 %v2130
  %v2895 = vunpack.c.l.b16 %v2131
  %v2896 = vunpack.c.h.b16 %v2131
  %v2897 = vunpack.c.l.b16 %v2132
  %v2898 = vunpack.c.h.b16 %v2132
  %v2899 = vunpack.c.l.b16 %v2133
  %v2900 = vunpack.c.h.b16 %v2133
  %v2901 = vunpack.c.l.b16 %v2134
  %v2902 = vunpack.c.h.b16 %v2134
  %v2903 = vunpack.c.l.b16 %v2135
  %v2904 = vunpack.c.h.b16 %v2135
  %v2905 = vunpack.c.l.b16 %v2136
  %v2906 = vunpack.c.l.b16 %v2137
  %v2907 = vunpack.c.h.b16 %v2137
  %v2908 = vunpack.c.l.b16 %v2138
  %v2909 = vunpack.c.h.b16 %v2138
  %v2910 = vunpack.c.l.b16 %v2139
  %v2911 = vunpack.c.h.b16 %v2139
  %v2912 = vunpack.c.l.b16 %v2140
  %v2913 = vunpack.c.h.b16 %v2140
  %v2914 = vunpack.c.l.b16 %v2141
  %v2915 = vunpack.c.h.b16 %v2141
  %v2916 = vunpack.c.l.b16 %v2142
  %v2917 = vunpack.c.h.b16 %v2142
  %v2918 = vunpack.c.l.b16 %v2143
  %v2919 = vunpack.c.h.b16 %v2143
  %v2920 = vunpack.c.l.b16 %v2144
  %v2921 = vunpack.c.l.b16 %v2145
  %v2922 = vunpack.c.h.b16 %v2145
  %v2923 = vunpack.c.l.b16 %v2146
  %v2924 = vunpack.c.h.b16 %v2146
  %v2925 = vunpack.c.l.b16 %v2147
  %v2926 = vunpack.c.h.b16 %v2147
  %v2927 = vunpack.c.l.b16 %v2148
  %v2928 = vunpack.c.h.b16 %v2148
  %v2929 = vunpack.c.l.b16 %v2149
  %v2930 = vunpack.c.h.b16 %v2149
  %v2931 = vunpack.c.l.b16 %v2150
  %v2932 = vunpack.c.h.b16 %v2150
  %v2933 = vunpack.c.l.b16 %v2151
  %v2934 = vunpack.c.h.b16 %v2151
  %v2935 = vunpack.c.l.b16 %v2152
  %v2936 = vunpack.c.l.b16 %v2153
  %v2937 = vunpack.c.h.b16 %v2153
  %v2938 = vunpack.c.l.b16 %v2154
  %v2939 = vunpack.c.h.b16 %v2154
  %v2940 = vunpack.c.l.b16 %v2155
  %v2941 = vunpack.c.h.b16 %v2155
  %v2942 = vunpack.c.l.b16 %v2156
  %v2943 = vunpack.c.h.b16 %v2156
  %v2944 = vunpack.c.l.b16 %v2157
  %v2945 = vunpack.c.h.b16 %v2157
  %v2946 = vunpack.c.l.b16 %v2158
  %v2947 = vunpack.c.h.b16 %v2158
  %v2948 = vunpack.c.l.b16 %v2159
  %v2949 = vunpack.c.h.b16 %v2159
  %v2950 = vunpack.c.l.b16 %v2160
  %v2951 = vunpack.c.l.b16 %v2161
  %v2952 = vunpack.c.h.b16 %v2161
  %v2953 = vunpack.c.l.b16 %v2162
  %v2954 = vunpack.c.h.b16 %v2162
  %v2955 = vunpack.c.l.b16 %v2163
  %v2956 = vunpack.c.h.b16 %v2163
  %v2957 = vunpack.c.l.b16 %v2164
  %v2958 = vunpack.c.h.b16 %v2164
  %v2959 = vunpack.c.l.b16 %v2165
  %v2960 = vunpack.c.h.b16 %v2165
  %v2961 = vunpack.c.l.b16 %v2166
  %v2962 = vunpack.c.h.b16 %v2166
  %v2963 = vunpack.c.l.b16 %v2167
  %v2964 = vunpack.c.h.b16 %v2167
  %v2965 = vunpack.c.l.b16 %v2168
  %v2966 = vunpack.c.l.b16 %v2169
  %v2967 = vunpack.c.h.b16 %v2169
  %v2968 = vunpack.c.l.b16 %v2170
  %v2969 = vunpack.c.h.b16 %v2170
  %v2970 = vunpack.c.l.b16 %v2171
  %v2971 = vunpack.c.h.b16 %v2171
  %v2972 = vunpack.c.l.b16 %v2172
  %v2973 = vunpack.c.h.b16 %v2172
  %v2974 = vunpack.c.l.b16 %v2173
  %v2975 = vunpack.c.h.b16 %v2173
  %v2976 = vunpack.c.l.b16 %v2174
  %v2977 = vunpack.c.h.b16 %v2174
  %v2978 = vunpack.c.l.b16 %v2175
  %v2979 = vunpack.c.h.b16 %v2175
  %v2980 = vunpack.c.l.b16 %v2176
  %v2981 = vunpack.c.l.b16 %v2177
  %v2982 = vunpack.c.h.b16 %v2177
  %v2983 = vunpack.c.l.b16 %v2178
  %v2984 = vunpack.c.h.b16 %v2178
  %v2985 = vunpack.c.l.b16 %v2179
  %v2986 = vunpack.c.h.b16 %v2179
  %v2987 = vunpack.c.l.b16 %v2180
  %v2988 = vunpack.c.h.b16 %v2180
  %v2989 = vunpack.c.l.b16 %v2181
  %v2990 = vunpack.c.h.b16 %v2181
  %v2991 = vunpack.c.l.b16 %v2182
  %v2992 = vunpack.c.h.b16 %v2182
  %v2993 = vunpack.c.l.b16 %v2183
  %v2994 = vunpack.c.h.b16 %v2183
  %v2995 = vunpack.c.l.b16 %v2184
  %v2996 = vunpack.c.l.b16 %v2185
  %v2997 = vunpack.c.h.b16 %v2185
  %v2998 = vunpack.c.l.b16 %v2186
  %v2999 = vunpack.c.h.b16 %v2186
  %v3000 = vunpack.c.l.b16 %v2187
  %v3001 = vunpack.c.h.b16 %v2187
  %v3002 = vunpack.c.l.b16 %v2188
  %v3003 = vunpack.c.h.b16 %v2188
  %v3004 = vunpack.c.l.b16 %v2189
  %v3005 = vunpack.c.h.b16 %v2189
  %v3006 = vunpack.c.l.b16 %v2190
  %v3007 = vunpack.c.h.b16 %v2190
  %v3008 = vunpack.c.l.b16 %v2191
  %v3009 = vunpack.c.h.b16 %v2191
  %v3010 = vunpack.c.l.b16 %v2192
  %v3011 = vunpack.c.l.b16 %v2193
  %v3012 = vunpack.c.h.b16 %v2193
  %v3013 = vunpack.c.l.b16 %v2194
  %v3014 = vunpack.c.h.b16 %v2194
  %v3015 = vunpack.c.l.b16 %v2195
  %v3016 = vunpack.c.h.b16 %v2195
  %v3017 = vunpack.c.l.b16 %v2196
  %v3018 = vunpack.c.h.b16 %v2196
  %v3019 = vunpack.c.l.b16 %v2197
  %v3020 = vunpack.c.h.b16 %v2197
  %v3021 = vunpack.c.l.b16 %v2198
  %v3022 = vunpack.c.h.b16 %v2198
  %v3023 = vunpack.c.l.b16 %v2199
  %v3024 = vunpack.c.h.b16 %v2199
  %v3025 = vunpack.c.l.b16 %v2200
  %v3026 = vunpack.c.l.b16 %v2201
  %v3027 = vunpack.c.h.b16 %v2201
  %v3028 = vunpack.c.l.b16 %v2202
  %v3029 = vunpack.c.h.b16 %v2202
  %v3030 = vunpack.c.l.b16 %v2203
  %v3031 = vunpack.c.h.b16 %v2203
  %v3032 = vunpack.c.l.b16 %v2204
  %v3033 = vunpack.c.h.b16 %v2204
  %v3034 = vunpack.c.l.b16 %v2205
  %v3035 = vunpack.c.h.b16 %v2205
  %v3036 = vunpack.c.l.b16 %v2206
  %v3037 = vunpack.c.h.b16 %v2206
  %v3038 = vunpack.c.l.b16 %v2207
  %v3039 = vunpack.c.h.b16 %v2207
  %v3040 = vunpack.c.l.b16 %v2208
  %v3041 = vunpack.c.l.b16 %v2209
  %v3042 = vunpack.c.h.b16 %v2209
  %v3043 = vunpack.c.l.b16 %v2210
  %v3044 = vunpack.c.h.b16 %v2210
  %v3045 = vunpack.c.l.b16 %v2211
  %v3046 = vunpack.c.h.b16 %v2211
  %v3047 = vunpack.c.l.b16 %v2212
  %v3048 = vunpack.c.h.b16 %v2212
  %v3049 = vunpack.c.l.b16 %v2213
  %v3050 = vunpack.c.h.b16 %v2213
  %v3051 = vunpack.c.l.b16 %v2214
  %v3052 = vunpack.c.h.b16 %v2214
  %v3053 = vunpack.c.l.b16 %v2215
  %v3054 = vunpack.c.h.b16 %v2215
  %v3055 = vunpack.c.l.b16 %v2216
  %v3056 = vunpack.c.l.b16 %v2217
  %v3057 = vunpack.c.h.b16 %v2217
  %v3058 = vunpack.c.l.b16 %v2218
  %v3059 = vunpack.c.h.b16 %v2218
  %v3060 = vunpack.c.l.b16 %v2219
  %v3061 = vunpack.c.h.b16 %v2219
  %v3062 = vunpack.c.l.b16 %v2220
  %v3063 = vunpack.c.h.b16 %v2220
  %v3064 = vunpack.c.l.b16 %v2221
  %v3065 = vunpack.c.h.b16 %v2221
  %v3066 = vunpack.c.l.b16 %v2222
  %v3067 = vunpack.c.h.b16 %v2222
  %v3068 = vunpack.c.l.b16 %v2223
  %v3069 = vunpack.c.h.b16 %v2223
  %v3070 = vunpack.c.l.b16 %v2224
  %v3071 = vunpack.c.l.b16 %v2225
  %v3072 = vunpack.c.h.b16 %v2225
  %v3073 = vunpack.c.l.b16 %v2226
  %v3074 = vunpack.c.h.b16 %v2226
  %v3075 = vunpack.c.l.b16 %v2227
  %v3076 = vunpack.c.h.b16 %v2227
  %v3077 = vunpack.c.l.b16 %v2228
  %v3078 = vunpack.c.h.b16 %v2228
  %v3079 = vunpack.c.l.b16 %v2229
  %v3080 = vunpack.c.h.b16 %v2229
  %v3081 = vunpack.c.l.b16 %v2230
  %v3082 = vunpack.c.h.b16 %v2230
  %v3083 = vunpack.c.l.b16 %v2231
  %v3084 = vunpack.c.h.b16 %v2231
  %v3085 = vunpack.c.l.b16 %v2232
  %v3086 = vunpack.c.l.b16 %v2233
  %v3087 = vunpack.c.h.b16 %v2233
  %v3088 = vunpack.c.l.b16 %v2234
  %v3089 = vunpack.c.h.b16 %v2234
  %v3090 = vunpack.c.l.b16 %v2235
  %v3091 = vunpack.c.h.b16 %v2235
  %v3092 = vunpack.c.l.b16 %v2236
  %v3093 = vunpack.c.h.b16 %v2236
  %v3094 = vunpack.c.l.b16 %v2237
  %v3095 = vunpack.c.h.b16 %v2237
  %v3096 = vunpack.c.l.b16 %v2238
  %v3097 = vunpack.c.h.b16 %v2238
  %v3098 = vunpack.c.l.b16 %v2239
  %v3099 = vunpack.c.h.b16 %v2239
  %v3100 = vunpack.c.l.b16 %v2240
  %v3101 = vunpack.c.l.b16 %v2241
  %v3102 = vunpack.c.h.b16 %v2241
  %v3103 = vunpack.c.l.b16 %v2242
  %v3104 = vunpack.c.h.b16 %v2242
  %v3105 = vunpack.c.l.b16 %v2243
  %v3106 = vunpack.c.h.b16 %v2243
  %v3107 = vunpack.c.l.b16 %v2244
  %v3108 = vunpack.c.h.b16 %v2244
  %v3109 = vunpack.c.l.b16 %v2245
  %v3110 = vunpack.c.h.b16 %v2245
  %v3111 = vunpack.c.l.b16 %v2246
  %v3112 = vunpack.c.h.b16 %v2246
  %v3113 = vunpack.c.l.b16 %v2247
  %v3114 = vunpack.c.h.b16 %v2247
  %v3115 = vunpack.c.l.b16 %v2248
  %v3116 = vunpack.c.l.b16 %v2249
  %v3117 = vunpack.c.h.b16 %v2249
  %v3118 = vunpack.c.l.b16 %v2250
  %v3119 = vunpack.c.h.b16 %v2250
  %v3120 = vunpack.c.l.b16 %v2251
  %v3121 = vunpack.c.h.b16 %v2251
  %v3122 = vunpack.c.l.b16 %v2252
  %v3123 = vunpack.c.h.b16 %v2252
  %v3124 = vunpack.c.l.b16 %v2253
  %v3125 = vunpack.c.h.b16 %v2253
  %v3126 = vunpack.c.l.b16 %v2254
  %v3127 = vunpack.c.h.b16 %v2254
  %v3128 = vunpack.c.l.b16 %v2255
  %v3129 = vunpack.c.h.b16 %v2255
  %v3130 = vunpack.c.l.b16 %v2256
  %v3131 = vpack.c.b16 %v2576, %v2561
  %v3132 = vpack.c.b16 %v2577, %v2562
  %v3133 = vpack.c.b16 %v2578, %v2563
  %v3134 = vpack.c.b16 %v2579, %v2564
  %v3135 = vpack.c.b16 %v2580, %v2565
  %v3136 = vpack.c.b16 %v2581, %v2566
  %v3137 = vpack.c.b16 %v2582, %v2567
  %v3138 = vpack.c.b16 %v2583, %v2568
  %v3139 = vpack.c.b16 %v2584, %v2569
  %v3140 = vpack.c.b16 %v2585, %v2570
  %v3141 = vpack.c.b16 %v2586, %v2571
  %v3142 = vpack.c.b16 %v2587, %v2572
  %v3143 = vpack.c.b16 %v2588, %v2573
  %v3144 = vpack.c.b16 %v2589, %v2574
  %v3145 = vpack.c.b16 %v2590, %v2575
  %v3146 = vpack.c.b16 %v2606, %v2591
  %v3147 = vpack.c.b16 %v2607, %v2592
  %v3148 = vpack.c.b16 %v2608, %v2593
  %v3149 = vpack.c.b16 %v2609, %v2594
  %v3150 = vpack.c.b16 %v2610, %v2595
  %v3151 = vpack.c.b16 %v2611, %v2596
  %v3152 = vpack.c.b16 %v2612, %v2597
  %v3153 = vpack.c.b16 %v2613, %v2598
  %v3154 = vpack.c.b16 %v2614, %v2599
  %v3155 = vpack.c.b16 %v2615, %v2600
  %v3156 = vpack.c.b16 %v2616, %v2601
  %v3157 = vpack.c.b16 %v2617, %v2602
  %v3158 = vpack.c.b16 %v2618, %v2603
  %v3159 = vpack.c.b16 %v2619, %v2604
  %v3160 = vpack.c.b16 %v2620, %v2605
  %v3161 = vpack.c.b16 %v2636, %v2621
  %v3162 = vpack.c.b16 %v2637, %v2622
  %v3163 = vpack.c.b16 %v2638, %v2623
  %v3164 = vpack.c.b16 %v2639, %v2624
  %v3165 = vpack.c.b16 %v2640, %v2625
  %v3166 = vpack.c.b16 %v2641, %v2626
  %v3167 = vpack.c.b16 %v2642, %v2627
  %v3168 = vpack.c.b16 %v2643, %v2628
  %v3169 = vpack.c.b16 %v2644, %v2629
  %v3170 = vpack.c.b16 %v2645, %v2630
  %v3171 = vpack.c.b16 %v2646, %v2631
  %v3172 = vpack.c.b16 %v2647, %v2632
  %v3173 = vpack.c.b16 %v2648, %v2633
  %v3174 = vpack.c.b16 %v2649, %v2634
  %v3175 = vpack.c.b16 %v2650, %v2635
  %v3176 = vpack.c.b16 %v2666, %v2651
  %v3177 = vpack.c.b16 %v2667, %v2652
  %v3178 = vpack.c.b16 %v2668, %v2653
  %v3179 = vpack.c.b16 %v2669, %v2654
  %v3180 = vpack.c.b16 %v2670, %v2655
  %v3181 = vpack.c.b16 %v2671, %v2656
  %v3182 = vpack.c.b16 %v2672, %v2657
  %v3183 = vpack.c.b16 %v2673, %v2658
  %v3184 = vpack.c.b16 %v2674, %v2659
  %v3185 = vpack.c.b16 %v2675, %v2660
  %v3186 = vpack.c.b16 %v2676, %v2661
  %v3187 = vpack.c.b16 %v2677, %v2662
  %v3188 = vpack.c.b16 %v2678, %v2663
  %v3189 = vpack.c.b16 %v2679, %v2664
  %v3190 = vpack.c.b16 %v2680, %v2665
  %v3191 = vpack.c.b16 %v2696, %v2681
  %v3192 = vpack.c.b16 %v2697, %v2682
  %v3193 = vpack.c.b16 %v2698, %v2683
  %v3194 = vpack.c.b16 %v2699, %v2684
  %v3195 = vpack.c.b16 %v2700, %v2685
  %v3196 = vpack.c.b16 %v2701, %v2686
  %v3197 = vpack.c.b16 %v2702, %v2687
  %v3198 = vpack.c.b16 %v2703, %v2688
  %v3199 = vpack.c.b16 %v2704, %v2689
  %v3200 = vpack.c.b16 %v2705, %v2690
  %v3201 = vpack.c.b16 %v2706, %v2691
  %v3202 = vpack.c.b16 %v2707, %v2692
  %v3203 = vpack.c.b16 %v2708, %v2693
  %v3204 = vpack.c.b16 %v2709, %v2694
  %v3205 = vpack.c.b16 %v2710, %v2695
  %v3206 = vpack.c.b16 %v2726, %v2711
  %v3207 = vpack.c.b16 %v2727, %v2712
  %v3208 = vpack.c.b16 %v2728, %v2713
  %v3209 = vpack.c.b16 %v2729, %v2714
  %v3210 = vpack.c.b16 %v2730, %v2715
  %v3211 = vpack.c.b16 %v2731, %v2716
  %v3212 = vpack.c.b16 %v2732, %v2717
  %v3213 = vpack.c.b16 %v2733, %v2718
  %v3214 = vpack.c.b16 %v2734, %v2719
  %v3215 = vpack.c.b16 %v2735, %v2720
  %v3216 = vpack.c.b16 %v2736, %v2721
  %v3217 = vpack.c.b16 %v2737, %v2722
  %v3218 = vpack.c.b16 %v2738, %v2723
  %v3219 = vpack.c.b16 %v2739, %v2724
  %v3220 = vpack.c.b16 %v2740, %v2725
  %v3221 = vpack.c.b16 %v2756, %v2741
  %v3222 = vpack.c.b16 %v2757, %v2742
  %v3223 = vpack.c.b16 %v2758, %v2743
  %v3224 = vpack.c.b16 %v2759, %v2744
  %v3225 = vpack.c.b16 %v2760, %v2745
  %v3226 = vpack.c.b16 %v2761, %v2746
  %v3227 = vpack.c.b16 %v2762, %v2747
  %v3228 = vpack.c.b16 %v2763, %v2748
  %v3229 = vpack.c.b16 %v2764, %v2749
  %v3230 = vpack.c.b16 %v2765, %v2750
  %v3231 = vpack.c.b16 %v2766, %v2751
  %v3232 = vpack.c.b16 %v2767, %v2752
  %v3233 = vpack.c.b16 %v2768, %v2753
  %v3234 = vpack.c.b16 %v2769, %v2754
  %v3235 = vpack.c.b16 %v2770, %v2755
  %v3236 = vpack.c.b16 %v2786, %v2771
  %v3237 = vpack.c.b16 %v2787, %v2772
  %v3238 = vpack.c.b16 %v2788, %v2773
  %v3239 = vpack.c.b16 %v2789, %v2774
  %v3240 = vpack.c.b16 %v2790, %v2775
  %v3241 = vpack.c.b16 %v2791, %v2776
  %v3242 = vpack.c.b16 %v2792, %v2777
  %v3243 = vpack.c.b16 %v2793, %v2778
  %v3244 = vpack.c.b16 %v2794, %v2779
  %v3245 = vpack.c.b16 %v2795, %v2780
  %v3246 = vpack.c.b16 %v2796, %v2781
  %v3247 = vpack.c.b16 %v2797, %v2782
  %v3248 = vpack.c.b16 %v2798, %v2783
  %v3249 = vpack.c.b16 %v2799, %v2784
  %v3250 = vpack.c.b16 %v2800, %v2785
  %v3251 = vpack.c.b16 %v2816, %v2801
  %v3252 = vpack.c.b16 %v2817, %v2802
  %v3253 = vpack.c.b16 %v2818, %v2803
  %v3254 = vpack.c.b16 %v2819, %v2804
  %v3255 = vpack.c.b16 %v2820, %v2805
  %v3256 = vpack.c.b16 %v2821, %v2806
  %v3257 = vpack.c.b16 %v2822, %v2807
  %v3258 = vpack.c.b16 %v2823, %v2808
  %v3259 = vpack.c.b16 %v2824, %v2809
  %v3260 = vpack.c.b16 %v2825, %v2810
  %v3261 = vpack.c.b16 %v2826, %v2811
  %v3262 = vpack.c.b16 %v2827, %v2812
  %v3263 = vpack.c.b16 %v2828, %v2813
  %v3264 = vpack.c.b16 %v2829, %v2814
  %v3265 = vpack.c.b16 %v2830, %v2815
  %v3266 = vpack.c.b16 %v2846, %v2831
  %v3267 = vpack.c.b16 %v2847, %v2832
  %v3268 = vpack.c.b16 %v2848, %v2833
  %v3269 = vpack.c.b16 %v2849, %v2834
  %v3270 = vpack.c.b16 %v2850, %v2835
  %v3271 = vpack.c.b16 %v2851, %v2836
  %v3272 = vpack.c.b16 %v2852, %v2837
  %v3273 = vpack.c.b16 %v2853, %v2838
  %v3274 = vpack.c.b16 %v2854, %v2839
  %v3275 = vpack.c.b16 %v2855, %v2840
  %v3276 = vpack.c.b16 %v2856, %v2841
  %v3277 = vpack.c.b16 %v2857, %v2842
  %v3278 = vpack.c.b16 %v2858, %v2843
  %v3279 = vpack.c.b16 %v2859, %v2844
  %v3280 = vpack.c.b16 %v2860, %v2845
  %v3281 = vpack.c.b16 %v2876, %v2861
  %v3282 = vpack.c.b16 %v2877, %v2862
  %v3283 = vpack.c.b16 %v2878, %v2863
  %v3284 = vpack.c.b16 %v2879, %v2864
  %v3285 = vpack.c.b16 %v2880, %v2865
  %v3286 = vpack.c.b16 %v2881, %v2866
  %v3287 = vpack.c.b16 %v2882, %v2867
  %v3288 = vpack.c.b16 %v2883, %v2868
  %v3289 = vpack.c.b16 %v2884, %v2869
  %v3290 = vpack.c.b16 %v2885, %v2870
  %v3291 = vpack.c.b16 %v2886, %v2871
  %v3292 = vpack.c.b16 %v2887, %v2872
  %v3293 = vpack.c.b16 %v2888, %v2873
  %v3294 = vpack.c.b16 %v2889, %v2874
  %v3295 = vpack.c.b16 %v2890, %v2875
  %v3296 = vpack.c.b16 %v2906, %v2891
  %v3297 = vpack.c.b16 %v2907, %v2892
  %v3298 = vpack.c.b16 %v2908, %v2893
  %v3299 = vpack.c.b16 %v2909, %v2894
  %v3300 = vpack.c.b16 %v2910, %v2895
  %v3301 = vpack.c.b16 %v2911, %v2896
  %v3302 = vpack.c.b16 %v2912, %v2897
  %v3303 = vpack.c.b16 %v2913, %v2898
  %v3304 = vpack.c.b16 %v2914, %v2899
  %v3305 = vpack.c.b16 %v2915, %v2900
  %v3306 = vpack.c.b16 %v2916, %v2901
  %v3307 = vpack.c.b16 %v2917, %v2902
  %v3308 = vpack.c.b16 %v2918, %v2903
  %v3309 = vpack.c.b16 %v2919, %v2904
  %v3310 = vpack.c.b16 %v2920, %v2905
  %v3311 = vpack.c.b16 %v2936, %v2921
  %v3312 = vpack.c.b16 %v2937, %v2922
  %v3313 = vpack.c.b16 %v2938, %v2923
  %v3314 = vpack.c.b16 %v2939, %v2924
  %v3315 = vpack.c.b16 %v2940, %v2925
  %v3316 = vpack.c.b16 %v2941, %v2926
  %v3317 = vpack.c.b16 %v2942, %v2927
  %v3318 = vpack.c.b16 %v2943, %v2928
  %v3319 = vpack.c.b16 %v2944, %v2929
  %v3320 = vpack.c.b16 %v2945, %v2930
  %v3321 = vpack.c.b16 %v2946, %v2931
  %v3322 = vpack.c.b16 %v2947, %v2932
  %v3323 = vpack.c.b16 %v2948, %v2933
  %v3324 = vpack.c.b16 %v2949, %v2934
  %v3325 = vpack.c.b16 %v2950, %v2935
  %v3326 = vpack.c.b16 %v2966, %v2951
  %v3327 = vpack.c.b16 %v2967, %v2952
  %v3328 = vpack.c.b16 %v2968, %v2953
  %v3329 = vpack.c.b16 %v2969, %v2954
  %v3330 = vpack.c.b16 %v2970, %v2955
  %v3331 = vpack.c.b16 %v2971, %v2956
  %v3332 = vpack.c.b16 %v2972, %v2957
  %v3333 = vpack.c.b16 %v2973, %v2958
  %v3334 = vpack.c.b16 %v2974, %v2959
  %v3335 = vpack.c.b16 %v2975, %v2960
  %v3336 = vpack.c.b16 %v2976, %v2961
  %v3337 = vpack.c.b16 %v2977, %v2962
  %v3338 = vpack.c.b16 %v2978, %v2963
  %v3339 = vpack.c.b16 %v2979, %v2964
  %v3340 = vpack.c.b16 %v2980, %v2965
  %v3341 = vpack.c.b16 %v2996, %v2981
  %v3342 = vpack.c.b16 %v2997, %v2982
  %v3343 = vpack.c.b16 %v2998, %v2983
  %v3344 = vpack.c.b16 %v2999, %v2984
  %v3345 = vpack.c.b16 %v3000, %v2985
  %v3346 = vpack.c.b16 %v3001, %v2986
  %v3347 = vpack.c.b16 %v3002, %v2987
  %v3348 = vpack.c.b16 %v3003, %v2988
  %v3349 = vpack.c.b16 %v3004, %v2989
  %v3350 = vpack.c.b16 %v3005, %v2990
  %v3351 = vpack.c.b16 %v3006, %v2991
  %v3352 = vpack.c.b16 %v3007, %v2992
  %v3353 = vpack.c.b16 %v3008, %v2993
  %v3354 = vpack.c.b16 %v3009, %v2994
  %v3355 = vpack.c.b16 %v3010, %v2995
  %v3356 = vpack.c.b16 %v3026, %v3011
  %v3357 = vpack.c.b16 %v3027, %v3012
  %v3358 = vpack.c.b16 %v3028, %v3013
  %v3359 = vpack.c.b16 %v3029, %v3014
  %v3360 = vpack.c.b16 %v3030, %v3015
  %v3361 = vpack.c.b16 %v3031, %v3016
  %v3362 = vpack.c.b16 %v3032, %v3017
  %v3363 = vpack.c.b16 %v3033, %v3018
  %v3364 = vpack.c.b16 %v3034, %v3019
  %v3365 = vpack.c.b16 %v3035, %v3020
  %v3366 = vpack.c.b16 %v3036, %v3021
  %v3367 = vpack.c.b16 %v3037, %v3022
  %v3368 = vpack.c.b16 %v3038, %v3023
  %v3369 = vpack.c.b16 %v3039, %v3024
  %v3370 = vpack.c.b16 %v3040, %v3025
  %v3371 = vpack.c.b16 %v3056, %v3041
  %v3372 = vpack.c.b16 %v3057, %v3042
  %v3373 = vpack.c.b16 %v3058, %v3043
  %v3374 = vpack.c.b16 %v3059, %v3044
  %v3375 = vpack.c.b16 %v3060, %v3045
  %v3376 = vpack.c.b16 %v3061, %v3046
  %v3377 = vpack.c.b16 %v3062, %v3047
  %v3378 = vpack.c.b16 %v3063, %v3048
  %v3379 = vpack.c.b16 %v3064, %v3049
  %v3380 = vpack.c.b16 %v3065, %v3050
  %v3381 = vpack.c.b16 %v3066, %v3051
  %v3382 = vpack.c.b16 %v3067, %v3052
  %v3383 = vpack.c.b16 %v3068, %v3053
  %v3384 = vpack.c.b16 %v3069, %v3054
  %v3385 = vpack.c.b16 %v3070, %v3055
  %v3386 = vpack.c.b16 %v3086, %v3071
  %v3387 = vpack.c.b16 %v3087, %v3072
  %v3388 = vpack.c.b16 %v3088, %v3073
  %v3389 = vpack.c.b16 %v3089, %v3074
  %v3390 = vpack.c.b16 %v3090, %v3075
  %v3391 = vpack.c.b16 %v3091, %v3076
  %v3392 = vpack.c.b16 %v3092, %v3077
  %v3393 = vpack.c.b16 %v3093, %v3078
  %v3394 = vpack.c.b16 %v3094, %v3079
  %v3395 = vpack.c.b16 %v3095, %v3080
  %v3396 = vpack.c.b16 %v3096, %v3081
  %v3397 = vpack.c.b16 %v3097, %v3082
  %v3398 = vpack.c.b16 %v3098, %v3083
  %v3399 = vpack.c.b16 %v3099, %v3084
  %v3400 = vpack.c.b16 %v3100, %v3085
  %v3401 = vpack.c.b16 %v3116, %v3101
  %v3402 = vpack.c.b16 %v3117, %v3102
  %v3403 = vpack.c.b16 %v3118, %v3103
  %v3404 = vpack.c.b16 %v3119, %v3104
  %v3405 = vpack.c.b16 %v3120, %v3105
  %v3406 = vpack.c.b16 %v3121, %v3106
  %v3407 = vpack.c.b16 %v3122, %v3107
  %v3408 = vpack.c.b16 %v3123, %v3108
  %v3409 = vpack.c.b16 %v3124, %v3109
  %v3410 = vpack.c.b16 %v3125, %v3110
  %v3411 = vpack.c.b16 %v3126, %v3111
  %v3412 = vpack.c.b16 %v3127, %v3112
  %v3413 = vpack.c.b16 %v3128, %v3113
  %v3414 = vpack.c.b16 %v3129, %v3114
  %v3415 = vpack.c.b16 %v3130, %v3115
  %vm3682 = vcmask 261120
  %v3684 = vsel %vm3682, %v3145, 0
  %v3687 = vsel %vm3682, %v3160, 0
  %v3690 = vsel %vm3682, %v3175, 0
  %v3693 = vsel %vm3682, %v3190, 0
  %v3696 = vsel %vm3682, %v3205, 0
  %v3699 = vsel %vm3682, %v3220, 0
  %v3702 = vsel %vm3682, %v3235, 0
  %v3705 = vsel %vm3682, %v3250, 0
  %v3708 = vsel %vm3682, %v3265, 0
  %v3711 = vsel %vm3682, %v3280, 0
  %v3714 = vsel %vm3682, %v3295, 0
  %v3717 = vsel %vm3682, %v3310, 0
  %v3720 = vsel %vm3682, %v3325, 0
  %v3723 = vsel %vm3682, %v3340, 0
  %v3726 = vsel %vm3682, %v3355, 0
  %v3729 = vsel %vm3682, %v3370, 0
  %v3732 = vsel %vm3682, %v3385, 0
  %v3735 = vsel %vm3682, %v3400, 0
  %v3738 = vsel %vm3682, %v3415, 0
  %3740 = vmatprep.subr.bf16.mxu0 0
  %3741 = vmatpush1.bf16.msra.mxu0 %v1839
  %3742 = vmatprep.subr.bf16.mxu0 0
  %3743 = vmatpush1.bf16.msra.mxu0 %v1840
  %3744 = vmatprep.subr.bf16.mxu0 0
  %3745 = vmatpush1.bf16.msra.mxu0 %v1841
  %3746 = vmatprep.subr.bf16.mxu0 0
  %3747 = vmatpush1.bf16.msra.mxu0 %v1842
  %3748 = vmatprep.subr.bf16.mxu0 0
  %3749 = vmatpush1.bf16.msra.mxu0 %v1843
  %3750 = vmatprep.subr.bf16.mxu0 0
  %3751 = vmatpush1.bf16.msra.mxu0 %v1844
  %3752 = vmatprep.subr.bf16.mxu0 0
  %3753 = vmatpush1.bf16.msra.mxu0 %v1845
  %3754 = vmatprep.subr.bf16.mxu0 0
  %3755 = vmatpush1.bf16.msra.mxu0 %v1846
  %3756 = vmatprep.subr.bf16.mxu0 0
  %3757 = vmatpush1.bf16.msra.mxu0 %v1847
  %3758 = vmatprep.subr.bf16.mxu0 0
  %3759 = vmatpush1.bf16.msra.mxu0 %v1848
  %3760 = vmatprep.subr.bf16.mxu0 0
  %3761 = vmatpush1.bf16.msra.mxu0 %v1849
  %3762 = vmatprep.subr.bf16.mxu0 0
  %3763 = vmatpush1.bf16.msra.mxu0 %v1850
  %3764 = vmatprep.subr.bf16.mxu0 0
  %3765 = vmatpush1.bf16.msra.mxu0 %v1851
  %3766 = vmatprep.subr.bf16.mxu0 0
  %3767 = vmatpush1.bf16.msra.mxu0 %v1852
  %3768 = vmatprep.subr.bf16.mxu0 0
  %3769 = vmatpush1.bf16.msra.mxu0 %v1853
  %3770 = vmatprep.subr.bf16.mxu0 0
  %3771 = vmatpush1.bf16.msra.mxu0 %v1854
  %3772 = vmatprep.mubr.bf16.mxu0 %v3132
  %3773 = vmatmul.mubr.bf16.gmra.mrb[0].mxu0 %v3131
  %v3774 = vpop.f32.mrb[0].mxu0
  %v3775 = vadd.f32 0.0, %v3774
  %v3776 = vpop.f32.mrb[0].mxu0
  %v3777 = vpop.f32.mrb[0].mxu0
  %v3778 = vadd.f32 0.0, %v3777
  %v3779 = vpop.f32.mrb[0].mxu0
  %3780 = vmatprep.mubr.bf16.mxu0 %v3147
  %3781 = vmatmul.mubr.bf16.gmra.mrb[0].mxu0 %v3146
  %v3782 = vpop.f32.mrb[0].mxu0
  %v3783 = vadd.f32 0.0, %v3782
  %v3784 = vpop.f32.mrb[0].mxu0
  %v3785 = vpop.f32.mrb[0].mxu0
  %v3786 = vadd.f32 0.0, %v3785
  %v3787 = vpop.f32.mrb[0].mxu0
  %3788 = vmatprep.mubr.bf16.mxu0 %v3162
  %3789 = vmatmul.mubr.bf16.gmra.mrb[0].mxu0 %v3161
  %v3790 = vpop.f32.mrb[0].mxu0
  %v3791 = vadd.f32 0.0, %v3790
  %v3792 = vpop.f32.mrb[0].mxu0
  %v3793 = vpop.f32.mrb[0].mxu0
  %v3794 = vadd.f32 0.0, %v3793
  %v3795 = vpop.f32.mrb[0].mxu0
  %3796 = vmatprep.mubr.bf16.mxu0 %v3177
  %3797 = vmatmul.mubr.bf16.gmra.mrb[0].mxu0 %v3176
  %v3798 = vpop.f32.mrb[0].mxu0
  %v3799 = vadd.f32 0.0, %v3798
  %v3800 = vpop.f32.mrb[0].mxu0
  %v3801 = vpop.f32.mrb[0].mxu0
  %v3802 = vadd.f32 0.0, %v3801
  %v3803 = vpop.f32.mrb[0].mxu0
  %3804 = vmatprep.mubr.bf16.mxu0 %v3192
  %3805 = vmatmul.mubr.bf16.gmra.mrb[0].mxu0 %v3191
  %v3806 = vpop.f32.mrb[0].mxu0
  %v3807 = vadd.f32 0.0, %v3806
  %v3808 = vpop.f32.mrb[0].mxu0
  %v3809 = vpop.f32.mrb[0].mxu0
  %v3810 = vadd.f32 0.0, %v3809
  %v3811 = vpop.f32.mrb[0].mxu0
  %3812 = vmatprep.mubr.bf16.mxu0 %v3207
  %3813 = vmatmul.mubr.bf16.gmra.mrb[0].mxu0 %v3206
  %v3814 = vpop.f32.mrb[0].mxu0
  %v3815 = vadd.f32 0.0, %v3814
  %v3816 = vpop.f32.mrb[0].mxu0
  %v3817 = vpop.f32.mrb[0].mxu0
  %v3818 = vadd.f32 0.0, %v3817
  %v3819 = vpop.f32.mrb[0].mxu0
  %3820 = vmatprep.mubr.bf16.mxu0 %v3222
  %3821 = vmatmul.mubr.bf16.gmra.mrb[0].mxu0 %v3221
  %v3822 = vpop.f32.mrb[0].mxu0
  %v3823 = vadd.f32 0.0, %v3822
  %v3824 = vpop.f32.mrb[0].mxu0
  %v3825 = vpop.f32.mrb[0].mxu0
  %v3826 = vadd.f32 0.0, %v3825
  %v3827 = vpop.f32.mrb[0].mxu0
  %3828 = vmatprep.mubr.bf16.mxu0 %v3237
  %3829 = vmatmul.mubr.bf16.gmra.mrb[0].mxu0 %v3236
  %v3830 = vpop.f32.mrb[0].mxu0
  %v3831 = vadd.f32 0.0, %v3830
  %v3832 = vpop.f32.mrb[0].mxu0
  %v3833 = vpop.f32.mrb[0].mxu0
  %v3834 = vadd.f32 0.0, %v3833
  %v3835 = vpop.f32.mrb[0].mxu0
  %3836 = vmatprep.mubr.bf16.mxu0 %v3252
  %3837 = vmatmul.mubr.bf16.gmra.mrb[0].mxu0 %v3251
  %v3838 = vpop.f32.mrb[0].mxu0
  %v3839 = vadd.f32 0.0, %v3838
  %v3840 = vpop.f32.mrb[0].mxu0
  %v3841 = vpop.f32.mrb[0].mxu0
  %v3842 = vadd.f32 0.0, %v3841
  %v3843 = vpop.f32.mrb[0].mxu0
  %3844 = vmatprep.mubr.bf16.mxu0 %v3267
  %3845 = vmatmul.mubr.bf16.gmra.mrb[0].mxu0 %v3266
  %v3846 = vpop.f32.mrb[0].mxu0
  %v3847 = vadd.f32 0.0, %v3846
  %v3848 = vpop.f32.mrb[0].mxu0
  %v3849 = vpop.f32.mrb[0].mxu0
  %v3850 = vadd.f32 0.0, %v3849
  %v3851 = vpop.f32.mrb[0].mxu0
  %3852 = vmatprep.mubr.bf16.mxu0 %v3282
  %3853 = vmatmul.mubr.bf16.gmra.mrb[0].mxu0 %v3281
  %v3854 = vpop.f32.mrb[0].mxu0
  %v3855 = vadd.f32 0.0, %v3854
  %v3856 = vpop.f32.mrb[0].mxu0
  %v3857 = vpop.f32.mrb[0].mxu0
  %v3858 = vadd.f32 0.0, %v3857
  %v3859 = vpop.f32.mrb[0].mxu0
  %3860 = vmatprep.mubr.bf16.mxu0 %v3297
  %3861 = vmatmul.mubr.bf16.gmra.mrb[0].mxu0 %v3296
  %v3862 = vpop.f32.mrb[0].mxu0
  %v3863 = vadd.f32 0.0, %v3862
  %v3864 = vpop.f32.mrb[0].mxu0
  %v3865 = vpop.f32.mrb[0].mxu0
  %v3866 = vadd.f32 0.0, %v3865
  %v3867 = vpop.f32.mrb[0].mxu0
  %3868 = vmatprep.mubr.bf16.mxu0 %v3312
  %3869 = vmatmul.mubr.bf16.gmra.mrb[0].mxu0 %v3311
  %v3870 = vpop.f32.mrb[0].mxu0
  %v3871 = vadd.f32 0.0, %v3870
  %v3872 = vpop.f32.mrb[0].mxu0
  %v3873 = vpop.f32.mrb[0].mxu0
  %v3874 = vadd.f32 0.0, %v3873
  %v3875 = vpop.f32.mrb[0].mxu0
  %3876 = vmatprep.mubr.bf16.mxu0 %v3327
  %3877 = vmatmul.mubr.bf16.gmra.mrb[0].mxu0 %v3326
  %v3878 = vpop.f32.mrb[0].mxu0
  %v3879 = vadd.f32 0.0, %v3878
  %v3880 = vpop.f32.mrb[0].mxu0
  %v3881 = vpop.f32.mrb[0].mxu0
  %v3882 = vadd.f32 0.0, %v3881
  %v3883 = vpop.f32.mrb[0].mxu0
  %3884 = vmatprep.mubr.bf16.mxu0 %v3342
  %3885 = vmatmul.mubr.bf16.gmra.mrb[0].mxu0 %v3341
  %v3886 = vpop.f32.mrb[0].mxu0
  %v3887 = vadd.f32 0.0, %v3886
  %v3888 = vpop.f32.mrb[0].mxu0
  %v3889 = vpop.f32.mrb[0].mxu0
  %v3890 = vadd.f32 0.0, %v3889
  %v3891 = vpop.f32.mrb[0].mxu0
  %3892 = vmatprep.mubr.bf16.mxu0 %v3357
  %3893 = vmatmul.mubr.bf16.gmra.mrb[0].mxu0 %v3356
  %v3894 = vpop.f32.mrb[0].mxu0
  %v3895 = vadd.f32 0.0, %v3894
  %v3896 = vpop.f32.mrb[0].mxu0
  %v3897 = vpop.f32.mrb[0].mxu0
  %v3898 = vadd.f32 0.0, %v3897
  %v3899 = vpop.f32.mrb[0].mxu0
  %3900 = vmatprep.mubr.bf16.mxu0 %v3372
  %3901 = vmatmul.mubr.bf16.gmra.mrb[0].mxu0 %v3371
  %v3902 = vpop.f32.mrb[0].mxu0
  %v3903 = vadd.f32 0.0, %v3902
  %v3904 = vpop.f32.mrb[0].mxu0
  %v3905 = vpop.f32.mrb[0].mxu0
  %v3906 = vadd.f32 0.0, %v3905
  %v3907 = vpop.f32.mrb[0].mxu0
  %3908 = vmatprep.mubr.bf16.mxu0 %v3387
  %3909 = vmatmul.mubr.bf16.gmra.mrb[0].mxu0 %v3386
  %v3910 = vpop.f32.mrb[0].mxu0
  %v3911 = vadd.f32 0.0, %v3910
  %v3912 = vpop.f32.mrb[0].mxu0
  %v3913 = vpop.f32.mrb[0].mxu0
  %v3914 = vadd.f32 0.0, %v3913
  %v3915 = vpop.f32.mrb[0].mxu0
  %3916 = vmatprep.mubr.bf16.mxu0 %v3402
  %3917 = vmatmul.mubr.bf16.gmra.mrb[0].mxu0 %v3401
  %v3918 = vpop.f32.mrb[0].mxu0
  %v3919 = vadd.f32 0.0, %v3918
  %v3920 = vpop.f32.mrb[0].mxu0
  %v3921 = vpop.f32.mrb[0].mxu0
  %v3922 = vadd.f32 0.0, %v3921
  %v3923 = vpop.f32.mrb[0].mxu0
  %3924 = vdwg.mxu0
  %3925 = vmatprep.subr.bf16.mxu0 0
  %3926 = vmatpush1.bf16.msra.mxu0 %v1855
  %3927 = vmatprep.subr.bf16.mxu0 0
  %3928 = vmatpush1.bf16.msra.mxu0 %v1856
  %3929 = vmatprep.subr.bf16.mxu0 0
  %3930 = vmatpush1.bf16.msra.mxu0 %v1857
  %3931 = vmatprep.subr.bf16.mxu0 0
  %3932 = vmatpush1.bf16.msra.mxu0 %v1858
  %3933 = vmatprep.subr.bf16.mxu0 0
  %3934 = vmatpush1.bf16.msra.mxu0 %v1859
  %3935 = vmatprep.subr.bf16.mxu0 0
  %3936 = vmatpush1.bf16.msra.mxu0 %v1860
  %3937 = vmatprep.subr.bf16.mxu0 0
  %3938 = vmatpush1.bf16.msra.mxu0 %v1861
  %3939 = vmatprep.subr.bf16.mxu0 0
  %3940 = vmatpush1.bf16.msra.mxu0 %v1862
  %3941 = vmatprep.subr.bf16.mxu0 0
  %3942 = vmatpush1.bf16.msra.mxu0 %v1863
  %3943 = vmatprep.subr.bf16.mxu0 0
  %3944 = vmatpush1.bf16.msra.mxu0 %v1864
  %3945 = vmatprep.subr.bf16.mxu0 0
  %3946 = vmatpush1.bf16.msra.mxu0 %v1865
  %3947 = vmatprep.subr.bf16.mxu0 0
  %3948 = vmatpush1.bf16.msra.mxu0 %v1866
  %3949 = vmatprep.subr.bf16.mxu0 0
  %3950 = vmatpush1.bf16.msra.mxu0 %v1867
  %3951 = vmatprep.subr.bf16.mxu0 0
  %3952 = vmatpush1.bf16.msra.mxu0 %v1868
  %3953 = vmatprep.subr.bf16.mxu0 0
  %3954 = vmatpush1.bf16.msra.mxu0 %v1869
  %3955 = vmatprep.subr.bf16.mxu0 0
  %3956 = vmatpush1.bf16.msra.mxu0 %v1870
  %3957 = vmatprep.mubr.bf16.mxu0 %v3134
  %3958 = vmatmul.mubr.bf16.gmra.mrb[0].mxu0 %v3133
  %v3959 = vpop.f32.mrb[0].mxu0
  %v3960 = vadd.f32 %v3775, %v3959
  %v3961 = vpop.f32.mrb[0].mxu0
  %v3962 = vpop.f32.mrb[0].mxu0
  %v3963 = vadd.f32 %v3778, %v3962
  %v3964 = vpop.f32.mrb[0].mxu0
  %3965 = vmatprep.mubr.bf16.mxu0 %v3149
  %3966 = vmatmul.mubr.bf16.gmra.mrb[0].mxu0 %v3148
  %v3967 = vpop.f32.mrb[0].mxu0
  %v3968 = vadd.f32 %v3783, %v3967
  %v3969 = vpop.f32.mrb[0].mxu0
  %v3970 = vpop.f32.mrb[0].mxu0
  %v3971 = vadd.f32 %v3786, %v3970
  %v3972 = vpop.f32.mrb[0].mxu0
  %3973 = vmatprep.mubr.bf16.mxu0 %v3164
  %3974 = vmatmul.mubr.bf16.gmra.mrb[0].mxu0 %v3163
  %v3975 = vpop.f32.mrb[0].mxu0
  %v3976 = vadd.f32 %v3791, %v3975
  %v3977 = vpop.f32.mrb[0].mxu0
  %v3978 = vpop.f32.mrb[0].mxu0
  %v3979 = vadd.f32 %v3794, %v3978
  %v3980 = vpop.f32.mrb[0].mxu0
  %3981 = vmatprep.mubr.bf16.mxu0 %v3179
  %3982 = vmatmul.mubr.bf16.gmra.mrb[0].mxu0 %v3178
  %v3983 = vpop.f32.mrb[0].mxu0
  %v3984 = vadd.f32 %v3799, %v3983
  %v3985 = vpop.f32.mrb[0].mxu0
  %v3986 = vpop.f32.mrb[0].mxu0
  %v3987 = vadd.f32 %v3802, %v3986
  %v3988 = vpop.f32.mrb[0].mxu0
  %3989 = vmatprep.mubr.bf16.mxu0 %v3194
  %3990 = vmatmul.mubr.bf16.gmra.mrb[0].mxu0 %v3193
  %v3991 = vpop.f32.mrb[0].mxu0
  %v3992 = vadd.f32 %v3807, %v3991
  %v3993 = vpop.f32.mrb[0].mxu0
  %v3994 = vpop.f32.mrb[0].mxu0
  %v3995 = vadd.f32 %v3810, %v3994
  %v3996 = vpop.f32.mrb[0].mxu0
  %3997 = vmatprep.mubr.bf16.mxu0 %v3209
  %3998 = vmatmul.mubr.bf16.gmra.mrb[0].mxu0 %v3208
  %v3999 = vpop.f32.mrb[0].mxu0
  %v4000 = vadd.f32 %v3815, %v3999
  %v4001 = vpop.f32.mrb[0].mxu0
  %v4002 = vpop.f32.mrb[0].mxu0
  %v4003 = vadd.f32 %v3818, %v4002
  %v4004 = vpop.f32.mrb[0].mxu0
  %4005 = vmatprep.mubr.bf16.mxu0 %v3224
  %4006 = vmatmul.mubr.bf16.gmra.mrb[0].mxu0 %v3223
  %v4007 = vpop.f32.mrb[0].mxu0
  %v4008 = vadd.f32 %v3823, %v4007
  %v4009 = vpop.f32.mrb[0].mxu0
  %v4010 = vpop.f32.mrb[0].mxu0
  %v4011 = vadd.f32 %v3826, %v4010
  %v4012 = vpop.f32.mrb[0].mxu0
  %4013 = vmatprep.mubr.bf16.mxu0 %v3239
  %4014 = vmatmul.mubr.bf16.gmra.mrb[0].mxu0 %v3238
  %v4015 = vpop.f32.mrb[0].mxu0
  %v4016 = vadd.f32 %v3831, %v4015
  %v4017 = vpop.f32.mrb[0].mxu0
  %v4018 = vpop.f32.mrb[0].mxu0
  %v4019 = vadd.f32 %v3834, %v4018
  %v4020 = vpop.f32.mrb[0].mxu0
  %4021 = vmatprep.mubr.bf16.mxu0 %v3254
  %4022 = vmatmul.mubr.bf16.gmra.mrb[0].mxu0 %v3253
  %v4023 = vpop.f32.mrb[0].mxu0
  %v4024 = vadd.f32 %v3839, %v4023
  %v4025 = vpop.f32.mrb[0].mxu0
  %v4026 = vpop.f32.mrb[0].mxu0
  %v4027 = vadd.f32 %v3842, %v4026
  %v4028 = vpop.f32.mrb[0].mxu0
  %4029 = vmatprep.mubr.bf16.mxu0 %v3269
  %4030 = vmatmul.mubr.bf16.gmra.mrb[0].mxu0 %v3268
  %v4031 = vpop.f32.mrb[0].mxu0
  %v4032 = vadd.f32 %v3847, %v4031
  %v4033 = vpop.f32.mrb[0].mxu0
  %v4034 = vpop.f32.mrb[0].mxu0
  %v4035 = vadd.f32 %v3850, %v4034
  %v4036 = vpop.f32.mrb[0].mxu0
  %4037 = vmatprep.mubr.bf16.mxu0 %v3284
  %4038 = vmatmul.mubr.bf16.gmra.mrb[0].mxu0 %v3283
  %v4039 = vpop.f32.mrb[0].mxu0
  %v4040 = vadd.f32 %v3855, %v4039
  %v4041 = vpop.f32.mrb[0].mxu0
  %v4042 = vpop.f32.mrb[0].mxu0
  %v4043 = vadd.f32 %v3858, %v4042
  %v4044 = vpop.f32.mrb[0].mxu0
  %4045 = vmatprep.mubr.bf16.mxu0 %v3299
  %4046 = vmatmul.mubr.bf16.gmra.mrb[0].mxu0 %v3298
  %v4047 = vpop.f32.mrb[0].mxu0
  %v4048 = vadd.f32 %v3863, %v4047
  %v4049 = vpop.f32.mrb[0].mxu0
  %v4050 = vpop.f32.mrb[0].mxu0
  %v4051 = vadd.f32 %v3866, %v4050
  %v4052 = vpop.f32.mrb[0].mxu0
  %4053 = vmatprep.mubr.bf16.mxu0 %v3314
  %4054 = vmatmul.mubr.bf16.gmra.mrb[0].mxu0 %v3313
  %v4055 = vpop.f32.mrb[0].mxu0
  %v4056 = vadd.f32 %v3871, %v4055
  %v4057 = vpop.f32.mrb[0].mxu0
  %v4058 = vpop.f32.mrb[0].mxu0
  %v4059 = vadd.f32 %v3874, %v4058
  %v4060 = vpop.f32.mrb[0].mxu0
  %4061 = vmatprep.mubr.bf16.mxu0 %v3329
  %4062 = vmatmul.mubr.bf16.gmra.mrb[0].mxu0 %v3328
  %v4063 = vpop.f32.mrb[0].mxu0
  %v4064 = vadd.f32 %v3879, %v4063
  %v4065 = vpop.f32.mrb[0].mxu0
  %v4066 = vpop.f32.mrb[0].mxu0
  %v4067 = vadd.f32 %v3882, %v4066
  %v4068 = vpop.f32.mrb[0].mxu0
  %4069 = vmatprep.mubr.bf16.mxu0 %v3344
  %4070 = vmatmul.mubr.bf16.gmra.mrb[0].mxu0 %v3343
  %v4071 = vpop.f32.mrb[0].mxu0
  %v4072 = vadd.f32 %v3887, %v4071
  %v4073 = vpop.f32.mrb[0].mxu0
  %v4074 = vpop.f32.mrb[0].mxu0
  %v4075 = vadd.f32 %v3890, %v4074
  %v4076 = vpop.f32.mrb[0].mxu0
  %4077 = vmatprep.mubr.bf16.mxu0 %v3359
  %4078 = vmatmul.mubr.bf16.gmra.mrb[0].mxu0 %v3358
  %v4079 = vpop.f32.mrb[0].mxu0
  %v4080 = vadd.f32 %v3895, %v4079
  %v4081 = vpop.f32.mrb[0].mxu0
  %v4082 = vpop.f32.mrb[0].mxu0
  %v4083 = vadd.f32 %v3898, %v4082
  %v4084 = vpop.f32.mrb[0].mxu0
  %4085 = vmatprep.mubr.bf16.mxu0 %v3374
  %4086 = vmatmul.mubr.bf16.gmra.mrb[0].mxu0 %v3373
  %v4087 = vpop.f32.mrb[0].mxu0
  %v4088 = vadd.f32 %v3903, %v4087
  %v4089 = vpop.f32.mrb[0].mxu0
  %v4090 = vpop.f32.mrb[0].mxu0
  %v4091 = vadd.f32 %v3906, %v4090
  %v4092 = vpop.f32.mrb[0].mxu0
  %4093 = vmatprep.mubr.bf16.mxu0 %v3389
  %4094 = vmatmul.mubr.bf16.gmra.mrb[0].mxu0 %v3388
  %v4095 = vpop.f32.mrb[0].mxu0
  %v4096 = vadd.f32 %v3911, %v4095
  %v4097 = vpop.f32.mrb[0].mxu0
  %v4098 = vpop.f32.mrb[0].mxu0
  %v4099 = vadd.f32 %v3914, %v4098
  %v4100 = vpop.f32.mrb[0].mxu0
  %4101 = vmatprep.mubr.bf16.mxu0 %v3404
  %4102 = vmatmul.mubr.bf16.gmra.mrb[0].mxu0 %v3403
  %v4103 = vpop.f32.mrb[0].mxu0
  %v4104 = vadd.f32 %v3919, %v4103
  %v4105 = vpop.f32.mrb[0].mxu0
  %v4106 = vpop.f32.mrb[0].mxu0
  %v4107 = vadd.f32 %v3922, %v4106
  %v4108 = vpop.f32.mrb[0].mxu0
  %4109 = vdwg.mxu0
  %4110 = vmatprep.subr.bf16.mxu0 0
  %4111 = vmatpush1.bf16.msra.mxu0 %v1871
  %4112 = vmatprep.subr.bf16.mxu0 0
  %4113 = vmatpush1.bf16.msra.mxu0 %v1872
  %4114 = vmatprep.subr.bf16.mxu0 0
  %4115 = vmatpush1.bf16.msra.mxu0 %v1873
  %4116 = vmatprep.subr.bf16.mxu0 0
  %4117 = vmatpush1.bf16.msra.mxu0 %v1874
  %4118 = vmatprep.subr.bf16.mxu0 0
  %4119 = vmatpush1.bf16.msra.mxu0 %v1875
  %4120 = vmatprep.subr.bf16.mxu0 0
  %4121 = vmatpush1.bf16.msra.mxu0 %v1876
  %4122 = vmatprep.subr.bf16.mxu0 0
  %4123 = vmatpush1.bf16.msra.mxu0 %v1877
  %4124 = vmatprep.subr.bf16.mxu0 0
  %4125 = vmatpush1.bf16.msra.mxu0 %v1878
  %4126 = vmatprep.subr.bf16.mxu0 0
  %4127 = vmatpush1.bf16.msra.mxu0 %v1879
  %4128 = vmatprep.subr.bf16.mxu0 0
  %4129 = vmatpush1.bf16.msra.mxu0 %v1880
  %4130 = vmatprep.subr.bf16.mxu0 0
  %4131 = vmatpush1.bf16.msra.mxu0 %v1881
  %4132 = vmatprep.subr.bf16.mxu0 0
  %4133 = vmatpush1.bf16.msra.mxu0 %v1882
  %4134 = vmatprep.subr.bf16.mxu0 0
  %4135 = vmatpush1.bf16.msra.mxu0 %v1883
  %4136 = vmatprep.subr.bf16.mxu0 0
  %4137 = vmatpush1.bf16.msra.mxu0 %v1884
  %4138 = vmatprep.subr.bf16.mxu0 0
  %4139 = vmatpush1.bf16.msra.mxu0 %v1885
  %4140 = vmatprep.subr.bf16.mxu0 0
  %4141 = vmatpush1.bf16.msra.mxu0 %v1886
  %4142 = vmatprep.mubr.bf16.mxu0 %v3136
  %4143 = vmatmul.mubr.bf16.gmra.mrb[0].mxu0 %v3135
  %v4144 = vpop.f32.mrb[0].mxu0
  %v4145 = vadd.f32 %v3960, %v4144
  %v4146 = vpop.f32.mrb[0].mxu0
  %v4147 = vpop.f32.mrb[0].mxu0
  %v4148 = vadd.f32 %v3963, %v4147
  %v4149 = vpop.f32.mrb[0].mxu0
  %4150 = vmatprep.mubr.bf16.mxu0 %v3151
  %4151 = vmatmul.mubr.bf16.gmra.mrb[0].mxu0 %v3150
  %v4152 = vpop.f32.mrb[0].mxu0
  %v4153 = vadd.f32 %v3968, %v4152
  %v4154 = vpop.f32.mrb[0].mxu0
  %v4155 = vpop.f32.mrb[0].mxu0
  %v4156 = vadd.f32 %v3971, %v4155
  %v4157 = vpop.f32.mrb[0].mxu0
  %4158 = vmatprep.mubr.bf16.mxu0 %v3166
  %4159 = vmatmul.mubr.bf16.gmra.mrb[0].mxu0 %v3165
  %v4160 = vpop.f32.mrb[0].mxu0
  %v4161 = vadd.f32 %v3976, %v4160
  %v4162 = vpop.f32.mrb[0].mxu0
  %v4163 = vpop.f32.mrb[0].mxu0
  %v4164 = vadd.f32 %v3979, %v4163
  %v4165 = vpop.f32.mrb[0].mxu0
  %4166 = vmatprep.mubr.bf16.mxu0 %v3181
  %4167 = vmatmul.mubr.bf16.gmra.mrb[0].mxu0 %v3180
  %v4168 = vpop.f32.mrb[0].mxu0
  %v4169 = vadd.f32 %v3984, %v4168
  %v4170 = vpop.f32.mrb[0].mxu0
  %v4171 = vpop.f32.mrb[0].mxu0
  %v4172 = vadd.f32 %v3987, %v4171
  %v4173 = vpop.f32.mrb[0].mxu0
  %4174 = vmatprep.mubr.bf16.mxu0 %v3196
  %4175 = vmatmul.mubr.bf16.gmra.mrb[0].mxu0 %v3195
  %v4176 = vpop.f32.mrb[0].mxu0
  %v4177 = vadd.f32 %v3992, %v4176
  %v4178 = vpop.f32.mrb[0].mxu0
  %v4179 = vpop.f32.mrb[0].mxu0
  %v4180 = vadd.f32 %v3995, %v4179
  %v4181 = vpop.f32.mrb[0].mxu0
  %4182 = vmatprep.mubr.bf16.mxu0 %v3211
  %4183 = vmatmul.mubr.bf16.gmra.mrb[0].mxu0 %v3210
  %v4184 = vpop.f32.mrb[0].mxu0
  %v4185 = vadd.f32 %v4000, %v4184
  %v4186 = vpop.f32.mrb[0].mxu0
  %v4187 = vpop.f32.mrb[0].mxu0
  %v4188 = vadd.f32 %v4003, %v4187
  %v4189 = vpop.f32.mrb[0].mxu0
  %4190 = vmatprep.mubr.bf16.mxu0 %v3226
  %4191 = vmatmul.mubr.bf16.gmra.mrb[0].mxu0 %v3225
  %v4192 = vpop.f32.mrb[0].mxu0
  %v4193 = vadd.f32 %v4008, %v4192
  %v4194 = vpop.f32.mrb[0].mxu0
  %v4195 = vpop.f32.mrb[0].mxu0
  %v4196 = vadd.f32 %v4011, %v4195
  %v4197 = vpop.f32.mrb[0].mxu0
  %4198 = vmatprep.mubr.bf16.mxu0 %v3241
  %4199 = vmatmul.mubr.bf16.gmra.mrb[0].mxu0 %v3240
  %v4200 = vpop.f32.mrb[0].mxu0
  %v4201 = vadd.f32 %v4016, %v4200
  %v4202 = vpop.f32.mrb[0].mxu0
  %v4203 = vpop.f32.mrb[0].mxu0
  %v4204 = vadd.f32 %v4019, %v4203
  %v4205 = vpop.f32.mrb[0].mxu0
  %4206 = vmatprep.mubr.bf16.mxu0 %v3256
  %4207 = vmatmul.mubr.bf16.gmra.mrb[0].mxu0 %v3255
  %v4208 = vpop.f32.mrb[0].mxu0
  %v4209 = vadd.f32 %v4024, %v4208
  %v4210 = vpop.f32.mrb[0].mxu0
  %v4211 = vpop.f32.mrb[0].mxu0
  %v4212 = vadd.f32 %v4027, %v4211
  %v4213 = vpop.f32.mrb[0].mxu0
  %4214 = vmatprep.mubr.bf16.mxu0 %v3271
  %4215 = vmatmul.mubr.bf16.gmra.mrb[0].mxu0 %v3270
  %v4216 = vpop.f32.mrb[0].mxu0
  %v4217 = vadd.f32 %v4032, %v4216
  %v4218 = vpop.f32.mrb[0].mxu0
  %v4219 = vpop.f32.mrb[0].mxu0
  %v4220 = vadd.f32 %v4035, %v4219
  %v4221 = vpop.f32.mrb[0].mxu0
  %4222 = vmatprep.mubr.bf16.mxu0 %v3286
  %4223 = vmatmul.mubr.bf16.gmra.mrb[0].mxu0 %v3285
  %v4224 = vpop.f32.mrb[0].mxu0
  %v4225 = vadd.f32 %v4040, %v4224
  %v4226 = vpop.f32.mrb[0].mxu0
  %v4227 = vpop.f32.mrb[0].mxu0
  %v4228 = vadd.f32 %v4043, %v4227
  %v4229 = vpop.f32.mrb[0].mxu0
  %4230 = vmatprep.mubr.bf16.mxu0 %v3301
  %4231 = vmatmul.mubr.bf16.gmra.mrb[0].mxu0 %v3300
  %v4232 = vpop.f32.mrb[0].mxu0
  %v4233 = vadd.f32 %v4048, %v4232
  %v4234 = vpop.f32.mrb[0].mxu0
  %v4235 = vpop.f32.mrb[0].mxu0
  %v4236 = vadd.f32 %v4051, %v4235
  %v4237 = vpop.f32.mrb[0].mxu0
  %4238 = vmatprep.mubr.bf16.mxu0 %v3316
  %4239 = vmatmul.mubr.bf16.gmra.mrb[0].mxu0 %v3315
  %v4240 = vpop.f32.mrb[0].mxu0
  %v4241 = vadd.f32 %v4056, %v4240
  %v4242 = vpop.f32.mrb[0].mxu0
  %v4243 = vpop.f32.mrb[0].mxu0
  %v4244 = vadd.f32 %v4059, %v4243
  %v4245 = vpop.f32.mrb[0].mxu0
  %4246 = vmatprep.mubr.bf16.mxu0 %v3331
  %4247 = vmatmul.mubr.bf16.gmra.mrb[0].mxu0 %v3330
  %v4248 = vpop.f32.mrb[0].mxu0
  %v4249 = vadd.f32 %v4064, %v4248
  %v4250 = vpop.f32.mrb[0].mxu0
  %v4251 = vpop.f32.mrb[0].mxu0
  %v4252 = vadd.f32 %v4067, %v4251
  %v4253 = vpop.f32.mrb[0].mxu0
  %4254 = vmatprep.mubr.bf16.mxu0 %v3346
  %4255 = vmatmul.mubr.bf16.gmra.mrb[0].mxu0 %v3345
  %v4256 = vpop.f32.mrb[0].mxu0
  %v4257 = vadd.f32 %v4072, %v4256
  %v4258 = vpop.f32.mrb[0].mxu0
  %v4259 = vpop.f32.mrb[0].mxu0
  %v4260 = vadd.f32 %v4075, %v4259
  %v4261 = vpop.f32.mrb[0].mxu0
  %4262 = vmatprep.mubr.bf16.mxu0 %v3361
  %4263 = vmatmul.mubr.bf16.gmra.mrb[0].mxu0 %v3360
  %v4264 = vpop.f32.mrb[0].mxu0
  %v4265 = vadd.f32 %v4080, %v4264
  %v4266 = vpop.f32.mrb[0].mxu0
  %v4267 = vpop.f32.mrb[0].mxu0
  %v4268 = vadd.f32 %v4083, %v4267
  %v4269 = vpop.f32.mrb[0].mxu0
  %4270 = vmatprep.mubr.bf16.mxu0 %v3376
  %4271 = vmatmul.mubr.bf16.gmra.mrb[0].mxu0 %v3375
  %v4272 = vpop.f32.mrb[0].mxu0
  %v4273 = vadd.f32 %v4088, %v4272
  %v4274 = vpop.f32.mrb[0].mxu0
  %v4275 = vpop.f32.mrb[0].mxu0
  %v4276 = vadd.f32 %v4091, %v4275
  %v4277 = vpop.f32.mrb[0].mxu0
  %4278 = vmatprep.mubr.bf16.mxu0 %v3391
  %4279 = vmatmul.mubr.bf16.gmra.mrb[0].mxu0 %v3390
  %v4280 = vpop.f32.mrb[0].mxu0
  %v4281 = vadd.f32 %v4096, %v4280
  %v4282 = vpop.f32.mrb[0].mxu0
  %v4283 = vpop.f32.mrb[0].mxu0
  %v4284 = vadd.f32 %v4099, %v4283
  %v4285 = vpop.f32.mrb[0].mxu0
  %4286 = vmatprep.mubr.bf16.mxu0 %v3406
  %4287 = vmatmul.mubr.bf16.gmra.mrb[0].mxu0 %v3405
  %v4288 = vpop.f32.mrb[0].mxu0
  %v4289 = vadd.f32 %v4104, %v4288
  %v4290 = vpop.f32.mrb[0].mxu0
  %v4291 = vpop.f32.mrb[0].mxu0
  %v4292 = vadd.f32 %v4107, %v4291
  %v4293 = vpop.f32.mrb[0].mxu0
  %4294 = vdwg.mxu0
  %4295 = vmatprep.subr.bf16.mxu0 0
  %4296 = vmatpush1.bf16.msra.mxu0 %v1887
  %4297 = vmatprep.subr.bf16.mxu0 0
  %4298 = vmatpush1.bf16.msra.mxu0 %v1888
  %4299 = vmatprep.subr.bf16.mxu0 0
  %4300 = vmatpush1.bf16.msra.mxu0 %v1889
  %4301 = vmatprep.subr.bf16.mxu0 0
  %4302 = vmatpush1.bf16.msra.mxu0 %v1890
  %4303 = vmatprep.subr.bf16.mxu0 0
  %4304 = vmatpush1.bf16.msra.mxu0 %v1891
  %4305 = vmatprep.subr.bf16.mxu0 0
  %4306 = vmatpush1.bf16.msra.mxu0 %v1892
  %4307 = vmatprep.subr.bf16.mxu0 0
  %4308 = vmatpush1.bf16.msra.mxu0 %v1893
  %4309 = vmatprep.subr.bf16.mxu0 0
  %4310 = vmatpush1.bf16.msra.mxu0 %v1894
  %4311 = vmatprep.subr.bf16.mxu0 0
  %4312 = vmatpush1.bf16.msra.mxu0 %v1895
  %4313 = vmatprep.subr.bf16.mxu0 0
  %4314 = vmatpush1.bf16.msra.mxu0 %v1896
  %4315 = vmatprep.subr.bf16.mxu0 0
  %4316 = vmatpush1.bf16.msra.mxu0 %v1897
  %4317 = vmatprep.subr.bf16.mxu0 0
  %4318 = vmatpush1.bf16.msra.mxu0 %v1898
  %4319 = vmatprep.subr.bf16.mxu0 0
  %4320 = vmatpush1.bf16.msra.mxu0 %v1899
  %4321 = vmatprep.subr.bf16.mxu0 0
  %4322 = vmatpush1.bf16.msra.mxu0 %v1900
  %4323 = vmatprep.subr.bf16.mxu0 0
  %4324 = vmatpush1.bf16.msra.mxu0 %v1901
  %4325 = vmatprep.subr.bf16.mxu0 0
  %4326 = vmatpush1.bf16.msra.mxu0 %v1902
  %4327 = vmatprep.mubr.bf16.mxu0 %v3138
  %4328 = vmatmul.mubr.bf16.gmra.mrb[0].mxu0 %v3137
  %v4329 = vpop.f32.mrb[0].mxu0
  %v4330 = vadd.f32 %v4145, %v4329
  %v4331 = vpop.f32.mrb[0].mxu0
  %v4332 = vpop.f32.mrb[0].mxu0
  %v4333 = vadd.f32 %v4148, %v4332
  %v4334 = vpop.f32.mrb[0].mxu0
  %4335 = vmatprep.mubr.bf16.mxu0 %v3153
  %4336 = vmatmul.mubr.bf16.gmra.mrb[0].mxu0 %v3152
  %v4337 = vpop.f32.mrb[0].mxu0
  %v4338 = vadd.f32 %v4153, %v4337
  %v4339 = vpop.f32.mrb[0].mxu0
  %v4340 = vpop.f32.mrb[0].mxu0
  %v4341 = vadd.f32 %v4156, %v4340
  %v4342 = vpop.f32.mrb[0].mxu0
  %4343 = vmatprep.mubr.bf16.mxu0 %v3168
  %4344 = vmatmul.mubr.bf16.gmra.mrb[0].mxu0 %v3167
  %v4345 = vpop.f32.mrb[0].mxu0
  %v4346 = vadd.f32 %v4161, %v4345
  %v4347 = vpop.f32.mrb[0].mxu0
  %v4348 = vpop.f32.mrb[0].mxu0
  %v4349 = vadd.f32 %v4164, %v4348
  %v4350 = vpop.f32.mrb[0].mxu0
  %4351 = vmatprep.mubr.bf16.mxu0 %v3183
  %4352 = vmatmul.mubr.bf16.gmra.mrb[0].mxu0 %v3182
  %v4353 = vpop.f32.mrb[0].mxu0
  %v4354 = vadd.f32 %v4169, %v4353
  %v4355 = vpop.f32.mrb[0].mxu0
  %v4356 = vpop.f32.mrb[0].mxu0
  %v4357 = vadd.f32 %v4172, %v4356
  %v4358 = vpop.f32.mrb[0].mxu0
  %4359 = vmatprep.mubr.bf16.mxu0 %v3198
  %4360 = vmatmul.mubr.bf16.gmra.mrb[0].mxu0 %v3197
  %v4361 = vpop.f32.mrb[0].mxu0
  %v4362 = vadd.f32 %v4177, %v4361
  %v4363 = vpop.f32.mrb[0].mxu0
  %v4364 = vpop.f32.mrb[0].mxu0
  %v4365 = vadd.f32 %v4180, %v4364
  %v4366 = vpop.f32.mrb[0].mxu0
  %4367 = vmatprep.mubr.bf16.mxu0 %v3213
  %4368 = vmatmul.mubr.bf16.gmra.mrb[0].mxu0 %v3212
  %v4369 = vpop.f32.mrb[0].mxu0
  %v4370 = vadd.f32 %v4185, %v4369
  %v4371 = vpop.f32.mrb[0].mxu0
  %v4372 = vpop.f32.mrb[0].mxu0
  %v4373 = vadd.f32 %v4188, %v4372
  %v4374 = vpop.f32.mrb[0].mxu0
  %4375 = vmatprep.mubr.bf16.mxu0 %v3228
  %4376 = vmatmul.mubr.bf16.gmra.mrb[0].mxu0 %v3227
  %v4377 = vpop.f32.mrb[0].mxu0
  %v4378 = vadd.f32 %v4193, %v4377
  %v4379 = vpop.f32.mrb[0].mxu0
  %v4380 = vpop.f32.mrb[0].mxu0
  %v4381 = vadd.f32 %v4196, %v4380
  %v4382 = vpop.f32.mrb[0].mxu0
  %4383 = vmatprep.mubr.bf16.mxu0 %v3243
  %4384 = vmatmul.mubr.bf16.gmra.mrb[0].mxu0 %v3242
  %v4385 = vpop.f32.mrb[0].mxu0
  %v4386 = vadd.f32 %v4201, %v4385
  %v4387 = vpop.f32.mrb[0].mxu0
  %v4388 = vpop.f32.mrb[0].mxu0
  %v4389 = vadd.f32 %v4204, %v4388
  %v4390 = vpop.f32.mrb[0].mxu0
  %4391 = vmatprep.mubr.bf16.mxu0 %v3258
  %4392 = vmatmul.mubr.bf16.gmra.mrb[0].mxu0 %v3257
  %v4393 = vpop.f32.mrb[0].mxu0
  %v4394 = vadd.f32 %v4209, %v4393
  %v4395 = vpop.f32.mrb[0].mxu0
  %v4396 = vpop.f32.mrb[0].mxu0
  %v4397 = vadd.f32 %v4212, %v4396
  %v4398 = vpop.f32.mrb[0].mxu0
  %4399 = vmatprep.mubr.bf16.mxu0 %v3273
  %4400 = vmatmul.mubr.bf16.gmra.mrb[0].mxu0 %v3272
  %v4401 = vpop.f32.mrb[0].mxu0
  %v4402 = vadd.f32 %v4217, %v4401
  %v4403 = vpop.f32.mrb[0].mxu0
  %v4404 = vpop.f32.mrb[0].mxu0
  %v4405 = vadd.f32 %v4220, %v4404
  %v4406 = vpop.f32.mrb[0].mxu0
  %4407 = vmatprep.mubr.bf16.mxu0 %v3288
  %4408 = vmatmul.mubr.bf16.gmra.mrb[0].mxu0 %v3287
  %v4409 = vpop.f32.mrb[0].mxu0
  %v4410 = vadd.f32 %v4225, %v4409
  %v4411 = vpop.f32.mrb[0].mxu0
  %v4412 = vpop.f32.mrb[0].mxu0
  %v4413 = vadd.f32 %v4228, %v4412
  %v4414 = vpop.f32.mrb[0].mxu0
  %4415 = vmatprep.mubr.bf16.mxu0 %v3303
  %4416 = vmatmul.mubr.bf16.gmra.mrb[0].mxu0 %v3302
  %v4417 = vpop.f32.mrb[0].mxu0
  %v4418 = vadd.f32 %v4233, %v4417
  %v4419 = vpop.f32.mrb[0].mxu0
  %v4420 = vpop.f32.mrb[0].mxu0
  %v4421 = vadd.f32 %v4236, %v4420
  %v4422 = vpop.f32.mrb[0].mxu0
  %4423 = vmatprep.mubr.bf16.mxu0 %v3318
  %4424 = vmatmul.mubr.bf16.gmra.mrb[0].mxu0 %v3317
  %v4425 = vpop.f32.mrb[0].mxu0
  %v4426 = vadd.f32 %v4241, %v4425
  %v4427 = vpop.f32.mrb[0].mxu0
  %v4428 = vpop.f32.mrb[0].mxu0
  %v4429 = vadd.f32 %v4244, %v4428
  %v4430 = vpop.f32.mrb[0].mxu0
  %4431 = vmatprep.mubr.bf16.mxu0 %v3333
  %4432 = vmatmul.mubr.bf16.gmra.mrb[0].mxu0 %v3332
  %v4433 = vpop.f32.mrb[0].mxu0
  %v4434 = vadd.f32 %v4249, %v4433
  %v4435 = vpop.f32.mrb[0].mxu0
  %v4436 = vpop.f32.mrb[0].mxu0
  %v4437 = vadd.f32 %v4252, %v4436
  %v4438 = vpop.f32.mrb[0].mxu0
  %4439 = vmatprep.mubr.bf16.mxu0 %v3348
  %4440 = vmatmul.mubr.bf16.gmra.mrb[0].mxu0 %v3347
  %v4441 = vpop.f32.mrb[0].mxu0
  %v4442 = vadd.f32 %v4257, %v4441
  %v4443 = vpop.f32.mrb[0].mxu0
  %v4444 = vpop.f32.mrb[0].mxu0
  %v4445 = vadd.f32 %v4260, %v4444
  %v4446 = vpop.f32.mrb[0].mxu0
  %4447 = vmatprep.mubr.bf16.mxu0 %v3363
  %4448 = vmatmul.mubr.bf16.gmra.mrb[0].mxu0 %v3362
  %v4449 = vpop.f32.mrb[0].mxu0
  %v4450 = vadd.f32 %v4265, %v4449
  %v4451 = vpop.f32.mrb[0].mxu0
  %v4452 = vpop.f32.mrb[0].mxu0
  %v4453 = vadd.f32 %v4268, %v4452
  %v4454 = vpop.f32.mrb[0].mxu0
  %4455 = vmatprep.mubr.bf16.mxu0 %v3378
  %4456 = vmatmul.mubr.bf16.gmra.mrb[0].mxu0 %v3377
  %v4457 = vpop.f32.mrb[0].mxu0
  %v4458 = vadd.f32 %v4273, %v4457
  %v4459 = vpop.f32.mrb[0].mxu0
  %v4460 = vpop.f32.mrb[0].mxu0
  %v4461 = vadd.f32 %v4276, %v4460
  %v4462 = vpop.f32.mrb[0].mxu0
  %4463 = vmatprep.mubr.bf16.mxu0 %v3393
  %4464 = vmatmul.mubr.bf16.gmra.mrb[0].mxu0 %v3392
  %v4465 = vpop.f32.mrb[0].mxu0
  %v4466 = vadd.f32 %v4281, %v4465
  %v4467 = vpop.f32.mrb[0].mxu0
  %v4468 = vpop.f32.mrb[0].mxu0
  %v4469 = vadd.f32 %v4284, %v4468
  %v4470 = vpop.f32.mrb[0].mxu0
  %4471 = vmatprep.mubr.bf16.mxu0 %v3408
  %4472 = vmatmul.mubr.bf16.gmra.mrb[0].mxu0 %v3407
  %v4473 = vpop.f32.mrb[0].mxu0
  %v4474 = vadd.f32 %v4289, %v4473
  %v4475 = vpop.f32.mrb[0].mxu0
  %v4476 = vpop.f32.mrb[0].mxu0
  %v4477 = vadd.f32 %v4292, %v4476
  %v4478 = vpop.f32.mrb[0].mxu0
  %4479 = vdwg.mxu0
  %4480 = vmatprep.subr.bf16.mxu0 0
  %4481 = vmatpush1.bf16.msra.mxu0 %v1903
  %4482 = vmatprep.subr.bf16.mxu0 0
  %4483 = vmatpush1.bf16.msra.mxu0 %v1904
  %4484 = vmatprep.subr.bf16.mxu0 0
  %4485 = vmatpush1.bf16.msra.mxu0 %v1905
  %4486 = vmatprep.subr.bf16.mxu0 0
  %4487 = vmatpush1.bf16.msra.mxu0 %v1906
  %4488 = vmatprep.subr.bf16.mxu0 0
  %4489 = vmatpush1.bf16.msra.mxu0 %v1907
  %4490 = vmatprep.subr.bf16.mxu0 0
  %4491 = vmatpush1.bf16.msra.mxu0 %v1908
  %4492 = vmatprep.subr.bf16.mxu0 0
  %4493 = vmatpush1.bf16.msra.mxu0 %v1909
  %4494 = vmatprep.subr.bf16.mxu0 0
  %4495 = vmatpush1.bf16.msra.mxu0 %v1910
  %4496 = vmatprep.subr.bf16.mxu0 0
  %4497 = vmatpush1.bf16.msra.mxu0 %v1911
  %4498 = vmatprep.subr.bf16.mxu0 0
  %4499 = vmatpush1.bf16.msra.mxu0 %v1912
  %4500 = vmatprep.subr.bf16.mxu0 0
  %4501 = vmatpush1.bf16.msra.mxu0 %v1913
  %4502 = vmatprep.subr.bf16.mxu0 0
  %4503 = vmatpush1.bf16.msra.mxu0 %v1914
  %4504 = vmatprep.subr.bf16.mxu0 0
  %4505 = vmatpush1.bf16.msra.mxu0 %v1915
  %4506 = vmatprep.subr.bf16.mxu0 0
  %4507 = vmatpush1.bf16.msra.mxu0 %v1916
  %4508 = vmatprep.subr.bf16.mxu0 0
  %4509 = vmatpush1.bf16.msra.mxu0 %v1917
  %4510 = vmatprep.subr.bf16.mxu0 0
  %4511 = vmatpush1.bf16.msra.mxu0 %v1918
  %4512 = vmatprep.mubr.bf16.mxu0 %v3140
  %4513 = vmatmul.mubr.bf16.gmra.mrb[0].mxu0 %v3139
  %v4514 = vpop.f32.mrb[0].mxu0
  %v4515 = vadd.f32 %v4330, %v4514
  %v4516 = vpop.f32.mrb[0].mxu0
  %v4517 = vpop.f32.mrb[0].mxu0
  %v4518 = vadd.f32 %v4333, %v4517
  %v4519 = vpop.f32.mrb[0].mxu0
  %4520 = vmatprep.mubr.bf16.mxu0 %v3155
  %4521 = vmatmul.mubr.bf16.gmra.mrb[0].mxu0 %v3154
  %v4522 = vpop.f32.mrb[0].mxu0
  %v4523 = vadd.f32 %v4338, %v4522
  %v4524 = vpop.f32.mrb[0].mxu0
  %v4525 = vpop.f32.mrb[0].mxu0
  %v4526 = vadd.f32 %v4341, %v4525
  %v4527 = vpop.f32.mrb[0].mxu0
  %4528 = vmatprep.mubr.bf16.mxu0 %v3170
  %4529 = vmatmul.mubr.bf16.gmra.mrb[0].mxu0 %v3169
  %v4530 = vpop.f32.mrb[0].mxu0
  %v4531 = vadd.f32 %v4346, %v4530
  %v4532 = vpop.f32.mrb[0].mxu0
  %v4533 = vpop.f32.mrb[0].mxu0
  %v4534 = vadd.f32 %v4349, %v4533
  %v4535 = vpop.f32.mrb[0].mxu0
  %4536 = vmatprep.mubr.bf16.mxu0 %v3185
  %4537 = vmatmul.mubr.bf16.gmra.mrb[0].mxu0 %v3184
  %v4538 = vpop.f32.mrb[0].mxu0
  %v4539 = vadd.f32 %v4354, %v4538
  %v4540 = vpop.f32.mrb[0].mxu0
  %v4541 = vpop.f32.mrb[0].mxu0
  %v4542 = vadd.f32 %v4357, %v4541
  %v4543 = vpop.f32.mrb[0].mxu0
  %4544 = vmatprep.mubr.bf16.mxu0 %v3200
  %4545 = vmatmul.mubr.bf16.gmra.mrb[0].mxu0 %v3199
  %v4546 = vpop.f32.mrb[0].mxu0
  %v4547 = vadd.f32 %v4362, %v4546
  %v4548 = vpop.f32.mrb[0].mxu0
  %v4549 = vpop.f32.mrb[0].mxu0
  %v4550 = vadd.f32 %v4365, %v4549
  %v4551 = vpop.f32.mrb[0].mxu0
  %4552 = vmatprep.mubr.bf16.mxu0 %v3215
  %4553 = vmatmul.mubr.bf16.gmra.mrb[0].mxu0 %v3214
  %v4554 = vpop.f32.mrb[0].mxu0
  %v4555 = vadd.f32 %v4370, %v4554
  %v4556 = vpop.f32.mrb[0].mxu0
  %v4557 = vpop.f32.mrb[0].mxu0
  %v4558 = vadd.f32 %v4373, %v4557
  %v4559 = vpop.f32.mrb[0].mxu0
  %4560 = vmatprep.mubr.bf16.mxu0 %v3230
  %4561 = vmatmul.mubr.bf16.gmra.mrb[0].mxu0 %v3229
  %v4562 = vpop.f32.mrb[0].mxu0
  %v4563 = vadd.f32 %v4378, %v4562
  %v4564 = vpop.f32.mrb[0].mxu0
  %v4565 = vpop.f32.mrb[0].mxu0
  %v4566 = vadd.f32 %v4381, %v4565
  %v4567 = vpop.f32.mrb[0].mxu0
  %4568 = vmatprep.mubr.bf16.mxu0 %v3245
  %4569 = vmatmul.mubr.bf16.gmra.mrb[0].mxu0 %v3244
  %v4570 = vpop.f32.mrb[0].mxu0
  %v4571 = vadd.f32 %v4386, %v4570
  %v4572 = vpop.f32.mrb[0].mxu0
  %v4573 = vpop.f32.mrb[0].mxu0
  %v4574 = vadd.f32 %v4389, %v4573
  %v4575 = vpop.f32.mrb[0].mxu0
  %4576 = vmatprep.mubr.bf16.mxu0 %v3260
  %4577 = vmatmul.mubr.bf16.gmra.mrb[0].mxu0 %v3259
  %v4578 = vpop.f32.mrb[0].mxu0
  %v4579 = vadd.f32 %v4394, %v4578
  %v4580 = vpop.f32.mrb[0].mxu0
  %v4581 = vpop.f32.mrb[0].mxu0
  %v4582 = vadd.f32 %v4397, %v4581
  %v4583 = vpop.f32.mrb[0].mxu0
  %4584 = vmatprep.mubr.bf16.mxu0 %v3275
  %4585 = vmatmul.mubr.bf16.gmra.mrb[0].mxu0 %v3274
  %v4586 = vpop.f32.mrb[0].mxu0
  %v4587 = vadd.f32 %v4402, %v4586
  %v4588 = vpop.f32.mrb[0].mxu0
  %v4589 = vpop.f32.mrb[0].mxu0
  %v4590 = vadd.f32 %v4405, %v4589
  %v4591 = vpop.f32.mrb[0].mxu0
  %4592 = vmatprep.mubr.bf16.mxu0 %v3290
  %4593 = vmatmul.mubr.bf16.gmra.mrb[0].mxu0 %v3289
  %v4594 = vpop.f32.mrb[0].mxu0
  %v4595 = vadd.f32 %v4410, %v4594
  %v4596 = vpop.f32.mrb[0].mxu0
  %v4597 = vpop.f32.mrb[0].mxu0
  %v4598 = vadd.f32 %v4413, %v4597
  %v4599 = vpop.f32.mrb[0].mxu0
  %4600 = vmatprep.mubr.bf16.mxu0 %v3305
  %4601 = vmatmul.mubr.bf16.gmra.mrb[0].mxu0 %v3304
  %v4602 = vpop.f32.mrb[0].mxu0
  %v4603 = vadd.f32 %v4418, %v4602
  %v4604 = vpop.f32.mrb[0].mxu0
  %v4605 = vpop.f32.mrb[0].mxu0
  %v4606 = vadd.f32 %v4421, %v4605
  %v4607 = vpop.f32.mrb[0].mxu0
  %4608 = vmatprep.mubr.bf16.mxu0 %v3320
  %4609 = vmatmul.mubr.bf16.gmra.mrb[0].mxu0 %v3319
  %v4610 = vpop.f32.mrb[0].mxu0
  %v4611 = vadd.f32 %v4426, %v4610
  %v4612 = vpop.f32.mrb[0].mxu0
  %v4613 = vpop.f32.mrb[0].mxu0
  %v4614 = vadd.f32 %v4429, %v4613
  %v4615 = vpop.f32.mrb[0].mxu0
  %4616 = vmatprep.mubr.bf16.mxu0 %v3335
  %4617 = vmatmul.mubr.bf16.gmra.mrb[0].mxu0 %v3334
  %v4618 = vpop.f32.mrb[0].mxu0
  %v4619 = vadd.f32 %v4434, %v4618
  %v4620 = vpop.f32.mrb[0].mxu0
  %v4621 = vpop.f32.mrb[0].mxu0
  %v4622 = vadd.f32 %v4437, %v4621
  %v4623 = vpop.f32.mrb[0].mxu0
  %4624 = vmatprep.mubr.bf16.mxu0 %v3350
  %4625 = vmatmul.mubr.bf16.gmra.mrb[0].mxu0 %v3349
  %v4626 = vpop.f32.mrb[0].mxu0
  %v4627 = vadd.f32 %v4442, %v4626
  %v4628 = vpop.f32.mrb[0].mxu0
  %v4629 = vpop.f32.mrb[0].mxu0
  %v4630 = vadd.f32 %v4445, %v4629
  %v4631 = vpop.f32.mrb[0].mxu0
  %4632 = vmatprep.mubr.bf16.mxu0 %v3365
  %4633 = vmatmul.mubr.bf16.gmra.mrb[0].mxu0 %v3364
  %v4634 = vpop.f32.mrb[0].mxu0
  %v4635 = vadd.f32 %v4450, %v4634
  %v4636 = vpop.f32.mrb[0].mxu0
  %v4637 = vpop.f32.mrb[0].mxu0
  %v4638 = vadd.f32 %v4453, %v4637
  %v4639 = vpop.f32.mrb[0].mxu0
  %4640 = vmatprep.mubr.bf16.mxu0 %v3380
  %4641 = vmatmul.mubr.bf16.gmra.mrb[0].mxu0 %v3379
  %v4642 = vpop.f32.mrb[0].mxu0
  %v4643 = vadd.f32 %v4458, %v4642
  %v4644 = vpop.f32.mrb[0].mxu0
  %v4645 = vpop.f32.mrb[0].mxu0
  %v4646 = vadd.f32 %v4461, %v4645
  %v4647 = vpop.f32.mrb[0].mxu0
  %4648 = vmatprep.mubr.bf16.mxu0 %v3395
  %4649 = vmatmul.mubr.bf16.gmra.mrb[0].mxu0 %v3394
  %v4650 = vpop.f32.mrb[0].mxu0
  %v4651 = vadd.f32 %v4466, %v4650
  %v4652 = vpop.f32.mrb[0].mxu0
  %v4653 = vpop.f32.mrb[0].mxu0
  %v4654 = vadd.f32 %v4469, %v4653
  %v4655 = vpop.f32.mrb[0].mxu0
  %4656 = vmatprep.mubr.bf16.mxu0 %v3410
  %4657 = vmatmul.mubr.bf16.gmra.mrb[0].mxu0 %v3409
  %v4658 = vpop.f32.mrb[0].mxu0
  %v4659 = vadd.f32 %v4474, %v4658
  %v4660 = vpop.f32.mrb[0].mxu0
  %v4661 = vpop.f32.mrb[0].mxu0
  %v4662 = vadd.f32 %v4477, %v4661
  %v4663 = vpop.f32.mrb[0].mxu0
  %4664 = vdwg.mxu0
  %4665 = vmatprep.subr.bf16.mxu0 0
  %4666 = vmatpush1.bf16.msra.mxu0 %v1919
  %4667 = vmatprep.subr.bf16.mxu0 0
  %4668 = vmatpush1.bf16.msra.mxu0 %v1920
  %4669 = vmatprep.subr.bf16.mxu0 0
  %4670 = vmatpush1.bf16.msra.mxu0 %v1921
  %4671 = vmatprep.subr.bf16.mxu0 0
  %4672 = vmatpush1.bf16.msra.mxu0 %v1922
  %4673 = vmatprep.subr.bf16.mxu0 0
  %4674 = vmatpush1.bf16.msra.mxu0 %v1923
  %4675 = vmatprep.subr.bf16.mxu0 0
  %4676 = vmatpush1.bf16.msra.mxu0 %v1924
  %4677 = vmatprep.subr.bf16.mxu0 0
  %4678 = vmatpush1.bf16.msra.mxu0 %v1925
  %4679 = vmatprep.subr.bf16.mxu0 0
  %4680 = vmatpush1.bf16.msra.mxu0 %v1926
  %4681 = vmatprep.subr.bf16.mxu0 0
  %4682 = vmatpush1.bf16.msra.mxu0 %v1927
  %4683 = vmatprep.subr.bf16.mxu0 0
  %4684 = vmatpush1.bf16.msra.mxu0 %v1928
  %4685 = vmatprep.subr.bf16.mxu0 0
  %4686 = vmatpush1.bf16.msra.mxu0 %v1929
  %4687 = vmatprep.subr.bf16.mxu0 0
  %4688 = vmatpush1.bf16.msra.mxu0 %v1930
  %4689 = vmatprep.subr.bf16.mxu0 0
  %4690 = vmatpush1.bf16.msra.mxu0 %v1931
  %4691 = vmatprep.subr.bf16.mxu0 0
  %4692 = vmatpush1.bf16.msra.mxu0 %v1932
  %4693 = vmatprep.subr.bf16.mxu0 0
  %4694 = vmatpush1.bf16.msra.mxu0 %v1933
  %4695 = vmatprep.subr.bf16.mxu0 0
  %4696 = vmatpush1.bf16.msra.mxu0 %v1934
  %4697 = vmatprep.mubr.bf16.mxu0 %v3142
  %4698 = vmatmul.mubr.bf16.gmra.mrb[0].mxu0 %v3141
  %v4699 = vpop.f32.mrb[0].mxu0
  %v4700 = vadd.f32 %v4515, %v4699
  %v4701 = vpop.f32.mrb[0].mxu0
  %v4702 = vpop.f32.mrb[0].mxu0
  %v4703 = vadd.f32 %v4518, %v4702
  %v4704 = vpop.f32.mrb[0].mxu0
  %4705 = vmatprep.mubr.bf16.mxu0 %v3157
  %4706 = vmatmul.mubr.bf16.gmra.mrb[0].mxu0 %v3156
  %v4707 = vpop.f32.mrb[0].mxu0
  %v4708 = vadd.f32 %v4523, %v4707
  %v4709 = vpop.f32.mrb[0].mxu0
  %v4710 = vpop.f32.mrb[0].mxu0
  %v4711 = vadd.f32 %v4526, %v4710
  %v4712 = vpop.f32.mrb[0].mxu0
  %4713 = vmatprep.mubr.bf16.mxu0 %v3172
  %4714 = vmatmul.mubr.bf16.gmra.mrb[0].mxu0 %v3171
  %v4715 = vpop.f32.mrb[0].mxu0
  %v4716 = vadd.f32 %v4531, %v4715
  %v4717 = vpop.f32.mrb[0].mxu0
  %v4718 = vpop.f32.mrb[0].mxu0
  %v4719 = vadd.f32 %v4534, %v4718
  %v4720 = vpop.f32.mrb[0].mxu0
  %4721 = vmatprep.mubr.bf16.mxu0 %v3187
  %4722 = vmatmul.mubr.bf16.gmra.mrb[0].mxu0 %v3186
  %v4723 = vpop.f32.mrb[0].mxu0
  %v4724 = vadd.f32 %v4539, %v4723
  %v4725 = vpop.f32.mrb[0].mxu0
  %v4726 = vpop.f32.mrb[0].mxu0
  %v4727 = vadd.f32 %v4542, %v4726
  %v4728 = vpop.f32.mrb[0].mxu0
  %4729 = vmatprep.mubr.bf16.mxu0 %v3202
  %4730 = vmatmul.mubr.bf16.gmra.mrb[0].mxu0 %v3201
  %v4731 = vpop.f32.mrb[0].mxu0
  %v4732 = vadd.f32 %v4547, %v4731
  %v4733 = vpop.f32.mrb[0].mxu0
  %v4734 = vpop.f32.mrb[0].mxu0
  %v4735 = vadd.f32 %v4550, %v4734
  %v4736 = vpop.f32.mrb[0].mxu0
  %4737 = vmatprep.mubr.bf16.mxu0 %v3217
  %4738 = vmatmul.mubr.bf16.gmra.mrb[0].mxu0 %v3216
  %v4739 = vpop.f32.mrb[0].mxu0
  %v4740 = vadd.f32 %v4555, %v4739
  %v4741 = vpop.f32.mrb[0].mxu0
  %v4742 = vpop.f32.mrb[0].mxu0
  %v4743 = vadd.f32 %v4558, %v4742
  %v4744 = vpop.f32.mrb[0].mxu0
  %4745 = vmatprep.mubr.bf16.mxu0 %v3232
  %4746 = vmatmul.mubr.bf16.gmra.mrb[0].mxu0 %v3231
  %v4747 = vpop.f32.mrb[0].mxu0
  %v4748 = vadd.f32 %v4563, %v4747
  %v4749 = vpop.f32.mrb[0].mxu0
  %v4750 = vpop.f32.mrb[0].mxu0
  %v4751 = vadd.f32 %v4566, %v4750
  %v4752 = vpop.f32.mrb[0].mxu0
  %4753 = vmatprep.mubr.bf16.mxu0 %v3247
  %4754 = vmatmul.mubr.bf16.gmra.mrb[0].mxu0 %v3246
  %v4755 = vpop.f32.mrb[0].mxu0
  %v4756 = vadd.f32 %v4571, %v4755
  %v4757 = vpop.f32.mrb[0].mxu0
  %v4758 = vpop.f32.mrb[0].mxu0
  %v4759 = vadd.f32 %v4574, %v4758
  %v4760 = vpop.f32.mrb[0].mxu0
  %4761 = vmatprep.mubr.bf16.mxu0 %v3262
  %4762 = vmatmul.mubr.bf16.gmra.mrb[0].mxu0 %v3261
  %v4763 = vpop.f32.mrb[0].mxu0
  %v4764 = vadd.f32 %v4579, %v4763
  %v4765 = vpop.f32.mrb[0].mxu0
  %v4766 = vpop.f32.mrb[0].mxu0
  %v4767 = vadd.f32 %v4582, %v4766
  %v4768 = vpop.f32.mrb[0].mxu0
  %4769 = vmatprep.mubr.bf16.mxu0 %v3277
  %4770 = vmatmul.mubr.bf16.gmra.mrb[0].mxu0 %v3276
  %v4771 = vpop.f32.mrb[0].mxu0
  %v4772 = vadd.f32 %v4587, %v4771
  %v4773 = vpop.f32.mrb[0].mxu0
  %v4774 = vpop.f32.mrb[0].mxu0
  %v4775 = vadd.f32 %v4590, %v4774
  %v4776 = vpop.f32.mrb[0].mxu0
  %4777 = vmatprep.mubr.bf16.mxu0 %v3292
  %4778 = vmatmul.mubr.bf16.gmra.mrb[0].mxu0 %v3291
  %v4779 = vpop.f32.mrb[0].mxu0
  %v4780 = vadd.f32 %v4595, %v4779
  %v4781 = vpop.f32.mrb[0].mxu0
  %v4782 = vpop.f32.mrb[0].mxu0
  %v4783 = vadd.f32 %v4598, %v4782
  %v4784 = vpop.f32.mrb[0].mxu0
  %4785 = vmatprep.mubr.bf16.mxu0 %v3307
  %4786 = vmatmul.mubr.bf16.gmra.mrb[0].mxu0 %v3306
  %v4787 = vpop.f32.mrb[0].mxu0
  %v4788 = vadd.f32 %v4603, %v4787
  %v4789 = vpop.f32.mrb[0].mxu0
  %v4790 = vpop.f32.mrb[0].mxu0
  %v4791 = vadd.f32 %v4606, %v4790
  %v4792 = vpop.f32.mrb[0].mxu0
  %4793 = vmatprep.mubr.bf16.mxu0 %v3322
  %4794 = vmatmul.mubr.bf16.gmra.mrb[0].mxu0 %v3321
  %v4795 = vpop.f32.mrb[0].mxu0
  %v4796 = vadd.f32 %v4611, %v4795
  %v4797 = vpop.f32.mrb[0].mxu0
  %v4798 = vpop.f32.mrb[0].mxu0
  %v4799 = vadd.f32 %v4614, %v4798
  %v4800 = vpop.f32.mrb[0].mxu0
  %4801 = vmatprep.mubr.bf16.mxu0 %v3337
  %4802 = vmatmul.mubr.bf16.gmra.mrb[0].mxu0 %v3336
  %v4803 = vpop.f32.mrb[0].mxu0
  %v4804 = vadd.f32 %v4619, %v4803
  %v4805 = vpop.f32.mrb[0].mxu0
  %v4806 = vpop.f32.mrb[0].mxu0
  %v4807 = vadd.f32 %v4622, %v4806
  %v4808 = vpop.f32.mrb[0].mxu0
  %4809 = vmatprep.mubr.bf16.mxu0 %v3352
  %4810 = vmatmul.mubr.bf16.gmra.mrb[0].mxu0 %v3351
  %v4811 = vpop.f32.mrb[0].mxu0
  %v4812 = vadd.f32 %v4627, %v4811
  %v4813 = vpop.f32.mrb[0].mxu0
  %v4814 = vpop.f32.mrb[0].mxu0
  %v4815 = vadd.f32 %v4630, %v4814
  %v4816 = vpop.f32.mrb[0].mxu0
  %4817 = vmatprep.mubr.bf16.mxu0 %v3367
  %4818 = vmatmul.mubr.bf16.gmra.mrb[0].mxu0 %v3366
  %v4819 = vpop.f32.mrb[0].mxu0
  %v4820 = vadd.f32 %v4635, %v4819
  %v4821 = vpop.f32.mrb[0].mxu0
  %v4822 = vpop.f32.mrb[0].mxu0
  %v4823 = vadd.f32 %v4638, %v4822
  %v4824 = vpop.f32.mrb[0].mxu0
  %4825 = vmatprep.mubr.bf16.mxu0 %v3382
  %4826 = vmatmul.mubr.bf16.gmra.mrb[0].mxu0 %v3381
  %v4827 = vpop.f32.mrb[0].mxu0
  %v4828 = vadd.f32 %v4643, %v4827
  %v4829 = vpop.f32.mrb[0].mxu0
  %v4830 = vpop.f32.mrb[0].mxu0
  %v4831 = vadd.f32 %v4646, %v4830
  %v4832 = vpop.f32.mrb[0].mxu0
  %4833 = vmatprep.mubr.bf16.mxu0 %v3397
  %4834 = vmatmul.mubr.bf16.gmra.mrb[0].mxu0 %v3396
  %v4835 = vpop.f32.mrb[0].mxu0
  %v4836 = vadd.f32 %v4651, %v4835
  %v4837 = vpop.f32.mrb[0].mxu0
  %v4838 = vpop.f32.mrb[0].mxu0
  %v4839 = vadd.f32 %v4654, %v4838
  %v4840 = vpop.f32.mrb[0].mxu0
  %4841 = vmatprep.mubr.bf16.mxu0 %v3412
  %4842 = vmatmul.mubr.bf16.gmra.mrb[0].mxu0 %v3411
  %v4843 = vpop.f32.mrb[0].mxu0
  %v4844 = vadd.f32 %v4659, %v4843
  %v4845 = vpop.f32.mrb[0].mxu0
  %v4846 = vpop.f32.mrb[0].mxu0
  %v4847 = vadd.f32 %v4662, %v4846
  %v4848 = vpop.f32.mrb[0].mxu0
  %4849 = vdwg.mxu0
  %4850 = vmatprep.subr.bf16.mxu0 0
  %4851 = vmatpush1.bf16.msra.mxu0 %v1935
  %4852 = vmatprep.subr.bf16.mxu0 0
  %4853 = vmatpush1.bf16.msra.mxu0 %v1936
  %4854 = vmatprep.subr.bf16.mxu0 0
  %4855 = vmatpush1.bf16.msra.mxu0 %v1937
  %4856 = vmatprep.subr.bf16.mxu0 0
  %4857 = vmatpush1.bf16.msra.mxu0 %v1938
  %4858 = vmatprep.subr.bf16.mxu0 0
  %4859 = vmatpush1.bf16.msra.mxu0 %v1939
  %4860 = vmatprep.subr.bf16.mxu0 0
  %4861 = vmatpush1.bf16.msra.mxu0 %v1940
  %4862 = vmatprep.subr.bf16.mxu0 0
  %4863 = vmatpush1.bf16.msra.mxu0 %v1941
  %4864 = vmatprep.subr.bf16.mxu0 0
  %4865 = vmatpush1.bf16.msra.mxu0 %v1942
  %4866 = vmatprep.subr.bf16.mxu0 0
  %4867 = vmatpush1.bf16.msra.mxu0 %v1943
  %4868 = vmatprep.subr.bf16.mxu0 0
  %4869 = vmatpush1.bf16.msra.mxu0 %v1944
  %4870 = vmatprep.subr.bf16.mxu0 0
  %4871 = vmatpush1.bf16.msra.mxu0 %v1945
  %4872 = vmatprep.subr.bf16.mxu0 0
  %4873 = vmatpush1.bf16.msra.mxu0 %v1946
  %4874 = vmatprep.subr.bf16.mxu0 0
  %4875 = vmatpush1.bf16.msra.mxu0 %v1947
  %4876 = vmatprep.subr.bf16.mxu0 0
  %4877 = vmatpush1.bf16.msra.mxu0 %v1948
  %4878 = vmatprep.subr.bf16.mxu0 0
  %4879 = vmatpush1.bf16.msra.mxu0 %v1949
  %4880 = vmatprep.subr.bf16.mxu0 0
  %4881 = vmatpush1.bf16.msra.mxu0 %v1950
  %4882 = vmatprep.mubr.bf16.mxu0 %v3144
  %4883 = vmatmul.mubr.bf16.gmra.mrb[0].mxu0 %v3143
  %v4884 = vpop.f32.mrb[0].mxu0
  %v4885 = vadd.f32 %v4700, %v4884
  %v4886 = vpop.f32.mrb[0].mxu0
  %v4887 = vpop.f32.mrb[0].mxu0
  %v4888 = vadd.f32 %v4703, %v4887
  %v4889 = vpop.f32.mrb[0].mxu0
  %4890 = vmatprep.mubr.bf16.mxu0 %v3159
  %4891 = vmatmul.mubr.bf16.gmra.mrb[0].mxu0 %v3158
  %v4892 = vpop.f32.mrb[0].mxu0
  %v4893 = vadd.f32 %v4708, %v4892
  %v4894 = vpop.f32.mrb[0].mxu0
  %v4895 = vpop.f32.mrb[0].mxu0
  %v4896 = vadd.f32 %v4711, %v4895
  %v4897 = vpop.f32.mrb[0].mxu0
  %4898 = vmatprep.mubr.bf16.mxu0 %v3174
  %4899 = vmatmul.mubr.bf16.gmra.mrb[0].mxu0 %v3173
  %v4900 = vpop.f32.mrb[0].mxu0
  %v4901 = vadd.f32 %v4716, %v4900
  %v4902 = vpop.f32.mrb[0].mxu0
  %v4903 = vpop.f32.mrb[0].mxu0
  %v4904 = vadd.f32 %v4719, %v4903
  %v4905 = vpop.f32.mrb[0].mxu0
  %4906 = vmatprep.mubr.bf16.mxu0 %v3189
  %4907 = vmatmul.mubr.bf16.gmra.mrb[0].mxu0 %v3188
  %v4908 = vpop.f32.mrb[0].mxu0
  %v4909 = vadd.f32 %v4724, %v4908
  %v4910 = vpop.f32.mrb[0].mxu0
  %v4911 = vpop.f32.mrb[0].mxu0
  %v4912 = vadd.f32 %v4727, %v4911
  %v4913 = vpop.f32.mrb[0].mxu0
  %4914 = vmatprep.mubr.bf16.mxu0 %v3204
  %4915 = vmatmul.mubr.bf16.gmra.mrb[0].mxu0 %v3203
  %v4916 = vpop.f32.mrb[0].mxu0
  %v4917 = vadd.f32 %v4732, %v4916
  %v4918 = vpop.f32.mrb[0].mxu0
  %v4919 = vpop.f32.mrb[0].mxu0
  %v4920 = vadd.f32 %v4735, %v4919
  %v4921 = vpop.f32.mrb[0].mxu0
  %4922 = vmatprep.mubr.bf16.mxu0 %v3219
  %4923 = vmatmul.mubr.bf16.gmra.mrb[0].mxu0 %v3218
  %v4924 = vpop.f32.mrb[0].mxu0
  %v4925 = vadd.f32 %v4740, %v4924
  %v4926 = vpop.f32.mrb[0].mxu0
  %v4927 = vpop.f32.mrb[0].mxu0
  %v4928 = vadd.f32 %v4743, %v4927
  %v4929 = vpop.f32.mrb[0].mxu0
  %4930 = vmatprep.mubr.bf16.mxu0 %v3234
  %4931 = vmatmul.mubr.bf16.gmra.mrb[0].mxu0 %v3233
  %v4932 = vpop.f32.mrb[0].mxu0
  %v4933 = vadd.f32 %v4748, %v4932
  %v4934 = vpop.f32.mrb[0].mxu0
  %v4935 = vpop.f32.mrb[0].mxu0
  %v4936 = vadd.f32 %v4751, %v4935
  %v4937 = vpop.f32.mrb[0].mxu0
  %4938 = vmatprep.mubr.bf16.mxu0 %v3249
  %4939 = vmatmul.mubr.bf16.gmra.mrb[0].mxu0 %v3248
  %v4940 = vpop.f32.mrb[0].mxu0
  %v4941 = vadd.f32 %v4756, %v4940
  %v4942 = vpop.f32.mrb[0].mxu0
  %v4943 = vpop.f32.mrb[0].mxu0
  %v4944 = vadd.f32 %v4759, %v4943
  %v4945 = vpop.f32.mrb[0].mxu0
  %4946 = vmatprep.mubr.bf16.mxu0 %v3264
  %4947 = vmatmul.mubr.bf16.gmra.mrb[0].mxu0 %v3263
  %v4948 = vpop.f32.mrb[0].mxu0
  %v4949 = vadd.f32 %v4764, %v4948
  %v4950 = vpop.f32.mrb[0].mxu0
  %v4951 = vpop.f32.mrb[0].mxu0
  %v4952 = vadd.f32 %v4767, %v4951
  %v4953 = vpop.f32.mrb[0].mxu0
  %4954 = vmatprep.mubr.bf16.mxu0 %v3279
  %4955 = vmatmul.mubr.bf16.gmra.mrb[0].mxu0 %v3278
  %v4956 = vpop.f32.mrb[0].mxu0
  %v4957 = vadd.f32 %v4772, %v4956
  %v4958 = vpop.f32.mrb[0].mxu0
  %v4959 = vpop.f32.mrb[0].mxu0
  %v4960 = vadd.f32 %v4775, %v4959
  %v4961 = vpop.f32.mrb[0].mxu0
  %4962 = vmatprep.mubr.bf16.mxu0 %v3294
  %4963 = vmatmul.mubr.bf16.gmra.mrb[0].mxu0 %v3293
  %v4964 = vpop.f32.mrb[0].mxu0
  %v4965 = vadd.f32 %v4780, %v4964
  %v4966 = vpop.f32.mrb[0].mxu0
  %v4967 = vpop.f32.mrb[0].mxu0
  %v4968 = vadd.f32 %v4783, %v4967
  %v4969 = vpop.f32.mrb[0].mxu0
  %4970 = vmatprep.mubr.bf16.mxu0 %v3309
  %4971 = vmatmul.mubr.bf16.gmra.mrb[0].mxu0 %v3308
  %v4972 = vpop.f32.mrb[0].mxu0
  %v4973 = vadd.f32 %v4788, %v4972
  %v4974 = vpop.f32.mrb[0].mxu0
  %v4975 = vpop.f32.mrb[0].mxu0
  %v4976 = vadd.f32 %v4791, %v4975
  %v4977 = vpop.f32.mrb[0].mxu0
  %4978 = vmatprep.mubr.bf16.mxu0 %v3324
  %4979 = vmatmul.mubr.bf16.gmra.mrb[0].mxu0 %v3323
  %v4980 = vpop.f32.mrb[0].mxu0
  %v4981 = vadd.f32 %v4796, %v4980
  %v4982 = vpop.f32.mrb[0].mxu0
  %v4983 = vpop.f32.mrb[0].mxu0
  %v4984 = vadd.f32 %v4799, %v4983
  %v4985 = vpop.f32.mrb[0].mxu0
  %4986 = vmatprep.mubr.bf16.mxu0 %v3339
  %4987 = vmatmul.mubr.bf16.gmra.mrb[0].mxu0 %v3338
  %v4988 = vpop.f32.mrb[0].mxu0
  %v4989 = vadd.f32 %v4804, %v4988
  %v4990 = vpop.f32.mrb[0].mxu0
  %v4991 = vpop.f32.mrb[0].mxu0
  %v4992 = vadd.f32 %v4807, %v4991
  %v4993 = vpop.f32.mrb[0].mxu0
  %4994 = vmatprep.mubr.bf16.mxu0 %v3354
  %4995 = vmatmul.mubr.bf16.gmra.mrb[0].mxu0 %v3353
  %v4996 = vpop.f32.mrb[0].mxu0
  %v4997 = vadd.f32 %v4812, %v4996
  %v4998 = vpop.f32.mrb[0].mxu0
  %v4999 = vpop.f32.mrb[0].mxu0
  %v5000 = vadd.f32 %v4815, %v4999
  %v5001 = vpop.f32.mrb[0].mxu0
  %5002 = vmatprep.mubr.bf16.mxu0 %v3369
  %5003 = vmatmul.mubr.bf16.gmra.mrb[0].mxu0 %v3368
  %v5004 = vpop.f32.mrb[0].mxu0
  %v5005 = vadd.f32 %v4820, %v5004
  %v5006 = vpop.f32.mrb[0].mxu0
  %v5007 = vpop.f32.mrb[0].mxu0
  %v5008 = vadd.f32 %v4823, %v5007
  %v5009 = vpop.f32.mrb[0].mxu0
  %5010 = vmatprep.mubr.bf16.mxu0 %v3384
  %5011 = vmatmul.mubr.bf16.gmra.mrb[0].mxu0 %v3383
  %v5012 = vpop.f32.mrb[0].mxu0
  %v5013 = vadd.f32 %v4828, %v5012
  %v5014 = vpop.f32.mrb[0].mxu0
  %v5015 = vpop.f32.mrb[0].mxu0
  %v5016 = vadd.f32 %v4831, %v5015
  %v5017 = vpop.f32.mrb[0].mxu0
  %5018 = vmatprep.mubr.bf16.mxu0 %v3399
  %5019 = vmatmul.mubr.bf16.gmra.mrb[0].mxu0 %v3398
  %v5020 = vpop.f32.mrb[0].mxu0
  %v5021 = vadd.f32 %v4836, %v5020
  %v5022 = vpop.f32.mrb[0].mxu0
  %v5023 = vpop.f32.mrb[0].mxu0
  %v5024 = vadd.f32 %v4839, %v5023
  %v5025 = vpop.f32.mrb[0].mxu0
  %5026 = vmatprep.mubr.bf16.mxu0 %v3414
  %5027 = vmatmul.mubr.bf16.gmra.mrb[0].mxu0 %v3413
  %v5028 = vpop.f32.mrb[0].mxu0
  %v5029 = vadd.f32 %v4844, %v5028
  %v5030 = vpop.f32.mrb[0].mxu0
  %v5031 = vpop.f32.mrb[0].mxu0
  %v5032 = vadd.f32 %v4847, %v5031
  %v5033 = vpop.f32.mrb[0].mxu0
  %5034 = vdwg.mxu0
  %5035 = vmatprep.subr.bf16.mxu0 0
  %5036 = vmatpush1.bf16.msra.mxu0 %v1951
  %5037 = vmatprep.subr.bf16.mxu0 0
  %5038 = vmatpush1.bf16.msra.mxu0 %v1952
  %5039 = vmatprep.subr.bf16.mxu0 0
  %5040 = vmatpush1.bf16.msra.mxu0 0
  %5041 = vmatprep.subr.bf16.mxu0 0
  %5042 = vmatpush1.bf16.msra.mxu0 0
  %5043 = vmatprep.subr.bf16.mxu0 0
  %5044 = vmatpush1.bf16.msra.mxu0 0
  %5045 = vmatprep.subr.bf16.mxu0 0
  %5046 = vmatpush1.bf16.msra.mxu0 0
  %5047 = vmatprep.subr.bf16.mxu0 0
  %5048 = vmatpush1.bf16.msra.mxu0 0
  %5049 = vmatprep.subr.bf16.mxu0 0
  %5050 = vmatpush1.bf16.msra.mxu0 0
  %5051 = vmatprep.subr.bf16.mxu0 0
  %5052 = vmatpush1.bf16.msra.mxu0 0
  %5053 = vmatprep.subr.bf16.mxu0 0
  %5054 = vmatpush1.bf16.msra.mxu0 0
  %5055 = vmatprep.subr.bf16.mxu0 0
  %5056 = vmatpush1.bf16.msra.mxu0 0
  %5057 = vmatprep.subr.bf16.mxu0 0
  %5058 = vmatpush1.bf16.msra.mxu0 0
  %5059 = vmatprep.subr.bf16.mxu0 0
  %5060 = vmatpush1.bf16.msra.mxu0 0
  %5061 = vmatprep.subr.bf16.mxu0 0
  %5062 = vmatpush1.bf16.msra.mxu0 0
  %5063 = vmatprep.subr.bf16.mxu0 0
  %5064 = vmatpush1.bf16.msra.mxu0 0
  %5065 = vmatprep.subr.bf16.mxu0 0
  %5066 = vmatpush1.bf16.msra.mxu0 0
  %5067 = vmatprep.mubr.bf16.mxu0 0
  %5068 = vmatmul.mubr.bf16.gmra.mrb[0].mxu0 %v3684
  %v5069 = vpop.f32.mrb[0].mxu0
  %v5070 = vadd.f32 %v4885, %v5069
  %v5071 = vpop.f32.mrb[0].mxu0
  %v5072 = vpop.f32.mrb[0].mxu0
  %v5073 = vadd.f32 %v4888, %v5072
  %v5074 = vpop.f32.mrb[0].mxu0
  %5075 = vmatprep.mubr.bf16.mxu0 0
  %5076 = vmatmul.mubr.bf16.gmra.mrb[0].mxu0 %v3687
  %v5077 = vpop.f32.mrb[0].mxu0
  %v5078 = vadd.f32 %v4893, %v5077
  %v5079 = vpop.f32.mrb[0].mxu0
  %v5080 = vpop.f32.mrb[0].mxu0
  %v5081 = vadd.f32 %v4896, %v5080
  %v5082 = vpop.f32.mrb[0].mxu0
  %5083 = vmatprep.mubr.bf16.mxu0 0
  %5084 = vmatmul.mubr.bf16.gmra.mrb[0].mxu0 %v3690
  %v5085 = vpop.f32.mrb[0].mxu0
  %v5086 = vadd.f32 %v4901, %v5085
  %v5087 = vpop.f32.mrb[0].mxu0
  %v5088 = vpop.f32.mrb[0].mxu0
  %v5089 = vadd.f32 %v4904, %v5088
  %v5090 = vpop.f32.mrb[0].mxu0
  %5091 = vmatprep.mubr.bf16.mxu0 0
  %5092 = vmatmul.mubr.bf16.gmra.mrb[0].mxu0 %v3693
  %v5093 = vpop.f32.mrb[0].mxu0
  %v5094 = vadd.f32 %v4909, %v5093
  %v5095 = vpop.f32.mrb[0].mxu0
  %v5096 = vpop.f32.mrb[0].mxu0
  %v5097 = vadd.f32 %v4912, %v5096
  %v5098 = vpop.f32.mrb[0].mxu0
  %5099 = vmatprep.mubr.bf16.mxu0 0
  %5100 = vmatmul.mubr.bf16.gmra.mrb[0].mxu0 %v3696
  %v5101 = vpop.f32.mrb[0].mxu0
  %v5102 = vadd.f32 %v4917, %v5101
  %v5103 = vpop.f32.mrb[0].mxu0
  %v5104 = vpop.f32.mrb[0].mxu0
  %v5105 = vadd.f32 %v4920, %v5104
  %v5106 = vpop.f32.mrb[0].mxu0
  %5107 = vmatprep.mubr.bf16.mxu0 0
  %5108 = vmatmul.mubr.bf16.gmra.mrb[0].mxu0 %v3699
  %v5109 = vpop.f32.mrb[0].mxu0
  %v5110 = vadd.f32 %v4925, %v5109
  %v5111 = vpop.f32.mrb[0].mxu0
  %v5112 = vpop.f32.mrb[0].mxu0
  %v5113 = vadd.f32 %v4928, %v5112
  %v5114 = vpop.f32.mrb[0].mxu0
  %5115 = vmatprep.mubr.bf16.mxu0 0
  %5116 = vmatmul.mubr.bf16.gmra.mrb[0].mxu0 %v3702
  %v5117 = vpop.f32.mrb[0].mxu0
  %v5118 = vadd.f32 %v4933, %v5117
  %v5119 = vpop.f32.mrb[0].mxu0
  %v5120 = vpop.f32.mrb[0].mxu0
  %v5121 = vadd.f32 %v4936, %v5120
  %v5122 = vpop.f32.mrb[0].mxu0
  %5123 = vmatprep.mubr.bf16.mxu0 0
  %5124 = vmatmul.mubr.bf16.gmra.mrb[0].mxu0 %v3705
  %v5125 = vpop.f32.mrb[0].mxu0
  %v5126 = vadd.f32 %v4941, %v5125
  %v5127 = vpop.f32.mrb[0].mxu0
  %v5128 = vpop.f32.mrb[0].mxu0
  %v5129 = vadd.f32 %v4944, %v5128
  %v5130 = vpop.f32.mrb[0].mxu0
  %5131 = vmatprep.mubr.bf16.mxu0 0
  %5132 = vmatmul.mubr.bf16.gmra.mrb[0].mxu0 %v3708
  %v5133 = vpop.f32.mrb[0].mxu0
  %v5134 = vadd.f32 %v4949, %v5133
  %v5135 = vpop.f32.mrb[0].mxu0
  %v5136 = vpop.f32.mrb[0].mxu0
  %v5137 = vadd.f32 %v4952, %v5136
  %v5138 = vpop.f32.mrb[0].mxu0
  %5139 = vmatprep.mubr.bf16.mxu0 0
  %5140 = vmatmul.mubr.bf16.gmra.mrb[0].mxu0 %v3711
  %v5141 = vpop.f32.mrb[0].mxu0
  %v5142 = vadd.f32 %v4957, %v5141
  %v5143 = vpop.f32.mrb[0].mxu0
  %v5144 = vpop.f32.mrb[0].mxu0
  %v5145 = vadd.f32 %v4960, %v5144
  %v5146 = vpop.f32.mrb[0].mxu0
  %5147 = vmatprep.mubr.bf16.mxu0 0
  %5148 = vmatmul.mubr.bf16.gmra.mrb[0].mxu0 %v3714
  %v5149 = vpop.f32.mrb[0].mxu0
  %v5150 = vadd.f32 %v4965, %v5149
  %v5151 = vpop.f32.mrb[0].mxu0
  %v5152 = vpop.f32.mrb[0].mxu0
  %v5153 = vadd.f32 %v4968, %v5152
  %v5154 = vpop.f32.mrb[0].mxu0
  %5155 = vmatprep.mubr.bf16.mxu0 0
  %5156 = vmatmul.mubr.bf16.gmra.mrb[0].mxu0 %v3717
  %v5157 = vpop.f32.mrb[0].mxu0
  %v5158 = vadd.f32 %v4973, %v5157
  %v5159 = vpop.f32.mrb[0].mxu0
  %v5160 = vpop.f32.mrb[0].mxu0
  %v5161 = vadd.f32 %v4976, %v5160
  %v5162 = vpop.f32.mrb[0].mxu0
  %5163 = vmatprep.mubr.bf16.mxu0 0
  %5164 = vmatmul.mubr.bf16.gmra.mrb[0].mxu0 %v3720
  %v5165 = vpop.f32.mrb[0].mxu0
  %v5166 = vadd.f32 %v4981, %v5165
  %v5167 = vpop.f32.mrb[0].mxu0
  %v5168 = vpop.f32.mrb[0].mxu0
  %v5169 = vadd.f32 %v4984, %v5168
  %v5170 = vpop.f32.mrb[0].mxu0
  %5171 = vmatprep.mubr.bf16.mxu0 0
  %5172 = vmatmul.mubr.bf16.gmra.mrb[0].mxu0 %v3723
  %v5173 = vpop.f32.mrb[0].mxu0
  %v5174 = vadd.f32 %v4989, %v5173
  %v5175 = vpop.f32.mrb[0].mxu0
  %v5176 = vpop.f32.mrb[0].mxu0
  %v5177 = vadd.f32 %v4992, %v5176
  %v5178 = vpop.f32.mrb[0].mxu0
  %5179 = vmatprep.mubr.bf16.mxu0 0
  %5180 = vmatmul.mubr.bf16.gmra.mrb[0].mxu0 %v3726
  %v5181 = vpop.f32.mrb[0].mxu0
  %v5182 = vadd.f32 %v4997, %v5181
  %v5183 = vpop.f32.mrb[0].mxu0
  %v5184 = vpop.f32.mrb[0].mxu0
  %v5185 = vadd.f32 %v5000, %v5184
  %v5186 = vpop.f32.mrb[0].mxu0
  %5187 = vmatprep.mubr.bf16.mxu0 0
  %5188 = vmatmul.mubr.bf16.gmra.mrb[0].mxu0 %v3729
  %v5189 = vpop.f32.mrb[0].mxu0
  %v5190 = vadd.f32 %v5005, %v5189
  %v5191 = vpop.f32.mrb[0].mxu0
  %v5192 = vpop.f32.mrb[0].mxu0
  %v5193 = vadd.f32 %v5008, %v5192
  %v5194 = vpop.f32.mrb[0].mxu0
  %5195 = vmatprep.mubr.bf16.mxu0 0
  %5196 = vmatmul.mubr.bf16.gmra.mrb[0].mxu0 %v3732
  %v5197 = vpop.f32.mrb[0].mxu0
  %v5198 = vadd.f32 %v5013, %v5197
  %v5199 = vpop.f32.mrb[0].mxu0
  %v5200 = vpop.f32.mrb[0].mxu0
  %v5201 = vadd.f32 %v5016, %v5200
  %v5202 = vpop.f32.mrb[0].mxu0
  %5203 = vmatprep.mubr.bf16.mxu0 0
  %5204 = vmatmul.mubr.bf16.gmra.mrb[0].mxu0 %v3735
  %v5205 = vpop.f32.mrb[0].mxu0
  %v5206 = vadd.f32 %v5021, %v5205
  %v5207 = vpop.f32.mrb[0].mxu0
  %v5208 = vpop.f32.mrb[0].mxu0
  %v5209 = vadd.f32 %v5024, %v5208
  %v5210 = vpop.f32.mrb[0].mxu0
  %5211 = vmatprep.mubr.bf16.mxu0 0
  %5212 = vmatmul.mubr.bf16.gmra.mrb[0].mxu0 %v3738
  %v5213 = vpop.f32.mrb[0].mxu0
  %v5214 = vadd.f32 %v5029, %v5213
  %v5215 = vpop.f32.mrb[0].mxu0
  %v5216 = vpop.f32.mrb[0].mxu0
  %v5217 = vadd.f32 %v5032, %v5216
  %v5218 = vpop.f32.mrb[0].mxu0
  %5219 = vdwg.mxu0
  %vm5220 = vcmask 400384
  %5221 = vst.msk [vmem:[%s3] sm:$0xff] %vm5220, %v5070
  %5222 = vst.msk [vmem:[%s3 + $0x8] sm:$0xff] %vm5220, %v5073
  %5223 = vst.msk [vmem:[%s3 + $0x10] sm:$0xff] %vm5220, %v5078
  %5224 = vst.msk [vmem:[%s3 + $0x18] sm:$0xff] %vm5220, %v5081
  %5225 = vst.msk [vmem:[%s3 + $0x20] sm:$0xff] %vm5220, %v5086
  %5226 = vst.msk [vmem:[%s3 + $0x28] sm:$0xff] %vm5220, %v5089
  %5227 = vst.msk [vmem:[%s3 + $0x30] sm:$0xff] %vm5220, %v5094
  %5228 = vst.msk [vmem:[%s3 + $0x38] sm:$0xff] %vm5220, %v5097
  %5229 = vst.msk [vmem:[%s3 + $0x40] sm:$0xff] %vm5220, %v5102
  %5230 = vst.msk [vmem:[%s3 + $0x48] sm:$0xff] %vm5220, %v5105
  %5231 = vst.msk [vmem:[%s3 + $0x50] sm:$0xff] %vm5220, %v5110
  %5232 = vst.msk [vmem:[%s3 + $0x58] sm:$0xff] %vm5220, %v5113
  %5233 = vst.msk [vmem:[%s3 + $0x60] sm:$0xff] %vm5220, %v5118
  %5234 = vst.msk [vmem:[%s3 + $0x68] sm:$0xff] %vm5220, %v5121
  %5235 = vst.msk [vmem:[%s3 + $0x70] sm:$0xff] %vm5220, %v5126
  %5236 = vst.msk [vmem:[%s3 + $0x78] sm:$0xff] %vm5220, %v5129
  %5237 = vst.msk [vmem:[%s3 + $0x80] sm:$0xff] %vm5220, %v5134
  %5238 = vst.msk [vmem:[%s3 + $0x88] sm:$0xff] %vm5220, %v5137
  %5239 = vst.msk [vmem:[%s3 + $0x90] sm:$0xff] %vm5220, %v5142
  %5240 = vst.msk [vmem:[%s3 + $0x98] sm:$0xff] %vm5220, %v5145
  %5241 = vst.msk [vmem:[%s3 + $0xa0] sm:$0xff] %vm5220, %v5150
  %5242 = vst.msk [vmem:[%s3 + $0xa8] sm:$0xff] %vm5220, %v5153
  %5243 = vst.msk [vmem:[%s3 + $0xb0] sm:$0xff] %vm5220, %v5158
  %5244 = vst.msk [vmem:[%s3 + $0xb8] sm:$0xff] %vm5220, %v5161
  %5245 = vst.msk [vmem:[%s3 + $0xc0] sm:$0xff] %vm5220, %v5166
  %5246 = vst.msk [vmem:[%s3 + $0xc8] sm:$0xff] %vm5220, %v5169
  %5247 = vst.msk [vmem:[%s3 + $0xd0] sm:$0xff] %vm5220, %v5174
  %5248 = vst.msk [vmem:[%s3 + $0xd8] sm:$0xff] %vm5220, %v5177
  %5249 = vst.msk [vmem:[%s3 + $0xe0] sm:$0xff] %vm5220, %v5182
  %5250 = vst.msk [vmem:[%s3 + $0xe8] sm:$0xff] %vm5220, %v5185
  %5251 = vst.msk [vmem:[%s3 + $0xf0] sm:$0xff] %vm5220, %v5190
  %5252 = vst.msk [vmem:[%s3 + $0xf8] sm:$0xff] %vm5220, %v5193
  %5253 = vst.msk [vmem:[%s3 + $0x100] sm:$0xff] %vm5220, %v5198
  %5254 = vst.msk [vmem:[%s3 + $0x108] sm:$0xff] %vm5220, %v5201
  %5255 = vst.msk [vmem:[%s3 + $0x110] sm:$0xff] %vm5220, %v5206
  %5256 = vst.msk [vmem:[%s3 + $0x118] sm:$0xff] %vm5220, %v5209
  %5257 = vst.msk [vmem:[%s3 + $0x120] sm:$0xff] %vm5220, %v5214
  %5258 = vst.msk [vmem:[%s3 + $0x128] sm:$0xff] %vm5220, %v5217
  // Predicated region
  $region14: #{tpu_custom_call.1} parent=0 // pred_check
    _
  $region15: #{tpu_custom_call.1} parent=0 // pred_check_branch
    %5260 = sbr.rel (0) target = $region17
  $region16: #{tpu_custom_call.1} parent=0 // pred_region
    _
  $region17: #{tpu_custom_call.1} parent=0 // pred_fallthru
    _
  // Predicated region
  $region18: #{tpu_custom_call.1} parent=0 // pred_check
    _
  $region19: #{tpu_custom_call.1} parent=0 // pred_check_branch
    %5262 = sbr.rel (0) target = $region21
  $region20: #{tpu_custom_call.1} parent=0 // pred_region
    _
  $region21: #{tpu_custom_call.1} parent=0 // pred_fallthru
    _

</llo_original>
